<compile_context>
chip_gen: v7x
topology: tpu7x:2x2x1
jax: 0.10.0
libtpu: 0.0.40
codegen_flags: <defaults>
</compile_context>

<pallas_src>
import jax
import jax.numpy as jnp
from jax import lax
from jax.experimental import pallas as pl
from jax.experimental.pallas import tpu as pltpu


def _round_up(n, m):
    return ((n + m - 1) // m) * m


def qnetwork_kernel(x_ref, a_ref, w1x_ref, w1a_ref, b1_ref, w2_ref, b2_ref,
                    w3_ref, b3_ref, o_ref):
    cdt = w1x_ref.dtype                       # MXU operand dtype (bf16 or f32)
    t_b = (((1,), (1,)), ((), ()))            # contract last dims: A @ B^T

    # fc1, split over [x | a]: (hidden, k) . (block_b, k)^T -> (hidden, block_b)
    # Feature-major result; f32 accumulation on the MXU.
    h1 = lax.dot_general(w1x_ref[...], x_ref[...].astype(cdt), t_b,
                         preferred_element_type=jnp.float32)
    h1 = h1 + lax.dot_general(w1a_ref[...], a_ref[...].astype(cdt), t_b,
                              preferred_element_type=jnp.float32)
    h1 = jnp.maximum(h1 + b1_ref[...], 0.0)                 # bias + ReLU (f32 VPU)

    # fc2: (hidden, hidden) @ (hidden, block_b) -> (hidden, block_b)
    h2 = jnp.dot(w2_ref[...], h1.astype(cdt),
                 preferred_element_type=jnp.float32)
    h2 = jnp.maximum(h2 + b2_ref[...], 0.0)                 # bias + ReLU (f32 VPU)

    # fc3 (N=1 head) off the MXU: VPU multiply + sublane reduce over hidden.
    # Result is already lane-dense (1, block_b); scalar bias comes from SMEM.
    q = jnp.sum(h2 * w3_ref[...], axis=0, keepdims=True) + b3_ref[0]
    o_ref[...] = q.astype(o_ref.dtype)


def qnetwork_forward(x, a, params, *, block_b=1024, dot_dtype=jnp.bfloat16):
    """x: (B, obs_dim), a: (B, act_dim) -> (B, 1) float32.

    params are PyTorch-layout: w_i (out_features, in_features), b_i (out_features,).
    dot_dtype controls the MXU operand dtype (bf16 default); accumulation and
    all elementwise work stay f32.
    """
    B, obs_dim = x.shape
    _, act_dim = a.shape
    w1, b1, w2, b2, w3, b3 = params
    hidden = w1.shape[0]

    # Trace-time weight prep (tiny arrays; no per-step cost).  Splitting W1
    # lets x and a stay un-concatenated in HBM.
    w1x = w1[:, :obs_dim].astype(dot_dtype)
    w1a = w1[:, obs_dim:].astype(dot_dtype)
    w2c = w2.astype(dot_dtype)
    b1c = b1.reshape(hidden, 1).astype(jnp.float32)
    b2c = b2.reshape(hidden, 1).astype(jnp.float32)
    w3c = w3.reshape(hidden, 1).astype(jnp.float32)    # head stays f32 (VPU/XLU)
    b3c = b3.reshape(1).astype(jnp.float32)

    # Tile selection: big tiles amortize the ~0.35us/grid-step overhead, but
    # keep >=2 blocks when possible so the "parallel" axis feeds both v7x TCs.
    # Also keep block_b <= B so every block start is in-bounds (boundary
    # blocks are clamped/masked by Pallas).
    if B <= 256:
        block_b = B                                      # single full-extent block
    else:
        block_b = max(256, min(block_b, _round_up(pl.cdiv(B, 2), 256)))
        block_b = min(block_b, (B // 256) * 256)
    num_blocks = pl.cdiv(B, block_b)

    compiler_kwargs = dict(dimension_semantics=("parallel",))
    if block_b >= 2048:
        # Very large tiles can exceed v5e's 16 MiB default scoped-VMEM limit.
        compiler_kwargs["vmem_limit_bytes"] = 48 * 1024 * 1024

    out = pl.pallas_call(
        qnetwork_kernel,
        out_shape=jax.ShapeDtypeStruct((1, B), jnp.float32),
        grid_spec=pltpu.PrefetchScalarGridSpec(
            num_scalar_prefetch=0,
            grid=(num_blocks,),
            in_specs=[
                pl.BlockSpec((block_b, obs_dim), lambda i: (i, 0)),   # x tile
                pl.BlockSpec((block_b, act_dim), lambda i: (i, 0)),   # a tile
                # Grid-invariant weights/biases (index_map -> (0,0)): never
                # re-DMA'd; ~0.2 MiB total in bf16, so default buffering is
                # harmless at these tile sizes.
                pl.BlockSpec((hidden, obs_dim), lambda i: (0, 0)),    # W1[:, :obs]
                pl.BlockSpec((hidden, act_dim), lambda i: (0, 0)),    # W1[:, obs:]
                pl.BlockSpec((hidden, 1), lambda i: (0, 0)),          # b1 column
                pl.BlockSpec((hidden, hidden), lambda i: (0, 0)),     # W2
                pl.BlockSpec((hidden, 1), lambda i: (0, 0)),          # b2 column
                pl.BlockSpec((hidden, 1), lambda i: (0, 0)),          # w3 column
                pl.BlockSpec(memory_space=pltpu.MemorySpace.SMEM),    # b3 scalar
            ],
            out_specs=pl.BlockSpec((1, block_b), lambda i: (0, i)),
        ),
        compiler_params=pltpu.CompilerParams(**compiler_kwargs),
    )(x, a, w1x, w1a, b1c, w2c, b2c, w3c, b3c)

    return out.reshape(B, 1)


def init_params(key, obs_dim, act_dim, hidden=256):
    """Deterministic synthetic init, PyTorch nn.Linear layout and scaling:
    w: (out_features, in_features), b: (out_features,), U(-1/sqrt(fan_in), ...)."""
    d_in = obs_dim + act_dim
    ks = jax.random.split(key, 6)

    def lin(kw, kb, fan_in, fan_out):
        bound = 1.0 / jnp.sqrt(fan_in)
        w = jax.random.uniform(kw, (fan_out, fan_in), jnp.float32, -bound, bound)
        b = jax.random.uniform(kb, (fan_out,), jnp.float32, -bound, bound)
        return w, b

    w1, b1 = lin(ks[0], ks[1], d_in, hidden)
    w2, b2 = lin(ks[2], ks[3], hidden, hidden)
    w3, b3 = lin(ks[4], ks[5], hidden, 1)
    return (w1, b1, w2, b2, w3, b3)


def reference_forward(x, a, params):
    w1, b1, w2, b2, w3, b3 = params
    xa = jnp.concatenate([x, a], axis=1)
    h1 = jax.nn.relu(xa @ w1.T + b1)
    h2 = jax.nn.relu(h1 @ w2.T + b2)
    return h2 @ w3.T + b3


if __name__ == "__main__":
    key = jax.random.PRNGKey(0)
    k_x, k_a, k_p = jax.random.split(key, 3)

    # Non-multiple batch exercises the partial-boundary-block path; B=600
    # gives a 2-step "parallel" grid (block_b capped to 512) so both v7x
    # TensorCores get a tile.
    B, OBS, ACT, HID = 600, 16, 8, 256
    x = jax.random.normal(k_x, (B, OBS), jnp.float32)
    a = jax.random.normal(k_a, (B, ACT), jnp.float32)
    params = init_params(k_p, OBS, ACT, HID)

    ref = reference_forward(x, a, params)

    # f32 MXU-operand path: tight tolerance.
    out_f32 = jax.block_until_ready(
        qnetwork_forward(x, a, params, dot_dtype=jnp.float32))
    assert out_f32.shape == (B, 1)
    assert jnp.allclose(out_f32, ref, atol=2e-3, rtol=2e-3)

    # Default bf16-operand path (f32 accumulation): looser tolerance.
    out_bf16 = jax.block_until_ready(qnetwork_forward(x, a, params))
    assert out_bf16.shape == (B, 1)
    assert jnp.allclose(out_bf16, ref, atol=5e-2, rtol=5e-2)

    print("KERNEL_OK")
</pallas_src>

<mosaic_0001>
module attributes {stable_mosaic.version = 11 : i64} {
  func.func @qnetwork_kernel(%arg0: i32, %arg1: memref<512x16xf32, #tpu.memory_space<vmem>>, %arg2: memref<512x8xf32, #tpu.memory_space<vmem>>, %arg3: memref<256x16xf32, #tpu.memory_space<vmem>>, %arg4: memref<256x8xf32, #tpu.memory_space<vmem>>, %arg5: memref<256x1xf32, #tpu.memory_space<vmem>>, %arg6: memref<256x256xf32, #tpu.memory_space<vmem>>, %arg7: memref<256x1xf32, #tpu.memory_space<vmem>>, %arg8: memref<256x1xf32, #tpu.memory_space<vmem>>, %arg9: memref<1xf32, #tpu.memory_space<smem>>, %arg10: memref<1x512xf32, #tpu.memory_space<vmem>>) attributes {dimension_semantics = [#tpu.dimension_semantics<parallel>], iteration_bounds = array<i64: 2>, scalar_prefetch = 0 : i64, scratch_operands = 0 : i64, tpu.core_type = #tpu.core_type<tc>, window_params = [{transform_indices = @transform_0, window_bounds = array<i64: 512, 16>}, {transform_indices = @transform_1, window_bounds = array<i64: 512, 8>}, {pipeline_mode = #tpu.pipeline_mode<synchronous>, transform_indices = @transform_2, window_bounds = array<i64: 256, 16>}, {pipeline_mode = #tpu.pipeline_mode<synchronous>, transform_indices = @transform_3, window_bounds = array<i64: 256, 8>}, {pipeline_mode = #tpu.pipeline_mode<synchronous>, transform_indices = @transform_4, window_bounds = array<i64: 256, 1>}, {pipeline_mode = #tpu.pipeline_mode<synchronous>, transform_indices = @transform_5, window_bounds = array<i64: 256, 256>}, {pipeline_mode = #tpu.pipeline_mode<synchronous>, transform_indices = @transform_6, window_bounds = array<i64: 256, 1>}, {pipeline_mode = #tpu.pipeline_mode<synchronous>, transform_indices = @transform_7, window_bounds = array<i64: 256, 1>}, {transform_indices = @transform_8, window_bounds = array<i64: 1>}, {transform_indices = @transform_9, window_bounds = array<i64: 1, 512>}]} {
    %c0 = arith.constant 0 : index
    %c0_0 = arith.constant 0 : index
    %0 = vector.load %arg3[%c0, %c0_0] : memref<256x16xf32, #tpu.memory_space<vmem>>, vector<256x16xf32>
    %c0_1 = arith.constant 0 : index
    %c0_2 = arith.constant 0 : index
    %1 = vector.load %arg1[%c0_1, %c0_2] : memref<512x16xf32, #tpu.memory_space<vmem>>, vector<512x16xf32>
    %cst = arith.constant dense<0.000000e+00> : vector<256x512xf32>
    %2 = tpu.matmul %0, %1, %cst {dimension_numbers = #tpu.dot_dimension_numbers<[1], [1], [0], [0], [0, 0, 1, 0], [], []>} : vector<256x16xf32>, vector<512x16xf32>, vector<256x512xf32> -> vector<256x512xf32>
    %c0_3 = arith.constant 0 : index
    %c0_4 = arith.constant 0 : index
    %3 = vector.load %arg4[%c0_3, %c0_4] : memref<256x8xf32, #tpu.memory_space<vmem>>, vector<256x8xf32>
    %c0_5 = arith.constant 0 : index
    %c0_6 = arith.constant 0 : index
    %4 = vector.load %arg2[%c0_5, %c0_6] : memref<512x8xf32, #tpu.memory_space<vmem>>, vector<512x8xf32>
    %cst_7 = arith.constant dense<0.000000e+00> : vector<256x512xf32>
    %5 = tpu.matmul %3, %4, %cst_7 {dimension_numbers = #tpu.dot_dimension_numbers<[1], [1], [0], [0], [0, 0, 1, 0], [], []>} : vector<256x8xf32>, vector<512x8xf32>, vector<256x512xf32> -> vector<256x512xf32>
    %6 = arith.addf %2, %5 : vector<256x512xf32>
    %c0_8 = arith.constant 0 : index
    %c0_9 = arith.constant 0 : index
    %7 = vector.load %arg5[%c0_8, %c0_9] : memref<256x1xf32, #tpu.memory_space<vmem>>, vector<256x1xf32>
    %8 = vector.broadcast %7 : vector<256x1xf32> to vector<256x512xf32>
    %9 = arith.addf %6, %8 : vector<256x512xf32>
    %cst_10 = arith.constant 0.000000e+00 : f32
    %10 = vector.broadcast %cst_10 : f32 to vector<256x512xf32>
    %11 = arith.maximumf %9, %10 : vector<256x512xf32>
    %c0_11 = arith.constant 0 : index
    %c0_12 = arith.constant 0 : index
    %12 = vector.load %arg6[%c0_11, %c0_12] : memref<256x256xf32, #tpu.memory_space<vmem>>, vector<256x256xf32>
    %cst_13 = arith.constant dense<0.000000e+00> : vector<256x512xf32>
    %13 = tpu.matmul %12, %11, %cst_13 {dimension_numbers = #tpu.dot_dimension_numbers<[1], [0], [0], [1], [0, 0, 1, 1], [], []>} : vector<256x256xf32>, vector<256x512xf32>, vector<256x512xf32> -> vector<256x512xf32>
    %c0_14 = arith.constant 0 : index
    %c0_15 = arith.constant 0 : index
    %14 = vector.load %arg7[%c0_14, %c0_15] : memref<256x1xf32, #tpu.memory_space<vmem>>, vector<256x1xf32>
    %15 = vector.broadcast %14 : vector<256x1xf32> to vector<256x512xf32>
    %16 = arith.addf %13, %15 : vector<256x512xf32>
    %cst_16 = arith.constant 0.000000e+00 : f32
    %17 = vector.broadcast %cst_16 : f32 to vector<256x512xf32>
    %18 = arith.maximumf %16, %17 : vector<256x512xf32>
    %c0_17 = arith.constant 0 : index
    %c0_18 = arith.constant 0 : index
    %19 = vector.load %arg8[%c0_17, %c0_18] : memref<256x1xf32, #tpu.memory_space<vmem>>, vector<256x1xf32>
    %20 = vector.broadcast %19 : vector<256x1xf32> to vector<256x512xf32>
    %21 = arith.mulf %18, %20 : vector<256x512xf32>
    %cst_19 = arith.constant dense<0.000000e+00> : vector<512xf32>
    %22 = vector.multi_reduction <add>, %21, %cst_19 [0] : vector<256x512xf32> to vector<512xf32>
    %23 = vector.shape_cast %22 : vector<512xf32> to vector<1x512xf32>
    %c0_20 = arith.constant 0 : index
    %24 = memref.load %arg9[%c0_20] : memref<1xf32, #tpu.memory_space<smem>>
    %25 = vector.broadcast %24 : f32 to vector<1x512xf32>
    %26 = arith.addf %23, %25 : vector<1x512xf32>
    %c0_21 = arith.constant 0 : index
    %c0_22 = arith.constant 0 : index
    %27 = vector.load %arg10[%c0_21, %c0_22] : memref<1x512xf32, #tpu.memory_space<vmem>>, vector<1x512xf32>
    tpu.vector_store %arg10[%c0_21, %c0_22], %26 {strides = array<i32>} : memref<1x512xf32, #tpu.memory_space<vmem>>, vector<1x512xf32>,
    return
  }
  func.func @transform_0(%arg0: i32) -> (i32, i32) {
    %c0_i32 = arith.constant 0 : i32
    %c0_i32_0 = arith.constant 0 : i32
    return %arg0, %c0_i32 : i32, i32
  }
  func.func @transform_1(%arg0: i32) -> (i32, i32) {
    %c0_i32 = arith.constant 0 : i32
    %c0_i32_0 = arith.constant 0 : i32
    return %arg0, %c0_i32 : i32, i32
  }
  func.func @transform_2(%arg0: i32) -> (i32, i32) {
    %c0_i32 = arith.constant 0 : i32
    %c0_i32_0 = arith.constant 0 : i32
    %c0_i32_1 = arith.constant 0 : i32
    return %c0_i32, %c0_i32_0 : i32, i32
  }
  func.func @transform_3(%arg0: i32) -> (i32, i32) {
    %c0_i32 = arith.constant 0 : i32
    %c0_i32_0 = arith.constant 0 : i32
    %c0_i32_1 = arith.constant 0 : i32
    return %c0_i32, %c0_i32_0 : i32, i32
  }
  func.func @transform_4(%arg0: i32) -> (i32, i32) {
    %c0_i32 = arith.constant 0 : i32
    %c0_i32_0 = arith.constant 0 : i32
    %c0_i32_1 = arith.constant 0 : i32
    return %c0_i32, %c0_i32_0 : i32, i32
  }
  func.func @transform_5(%arg0: i32) -> (i32, i32) {
    %c0_i32 = arith.constant 0 : i32
    %c0_i32_0 = arith.constant 0 : i32
    %c0_i32_1 = arith.constant 0 : i32
    return %c0_i32, %c0_i32_0 : i32, i32
  }
  func.func @transform_6(%arg0: i32) -> (i32, i32) {
    %c0_i32 = arith.constant 0 : i32
    %c0_i32_0 = arith.constant 0 : i32
    %c0_i32_1 = arith.constant 0 : i32
    return %c0_i32, %c0_i32_0 : i32, i32
  }
  func.func @transform_7(%arg0: i32) -> (i32, i32) {
    %c0_i32 = arith.constant 0 : i32
    %c0_i32_0 = arith.constant 0 : i32
    %c0_i32_1 = arith.constant 0 : i32
    return %c0_i32, %c0_i32_0 : i32, i32
  }
  func.func @transform_8(%arg0: i32) -> i32 {
    %c0_i32 = arith.constant 0 : i32
    %c0_i32_0 = arith.constant 0 : i32
    return %c0_i32 : i32
  }
  func.func @transform_9(%arg0: i32) -> (i32, i32) {
    %c0_i32 = arith.constant 0 : i32
    %c0_i32_0 = arith.constant 0 : i32
    return %c0_i32, %arg0 : i32, i32
  }
}

</mosaic_0001>

<llo_original>
// kernel: tpu_custom_call.1
$region0: #{tpu_custom_call.1}
  #allocation0 [shape = 'u32[]', space=smem, size = 0x4, offset = 0x4, fixed_abs, tag = 'smem constant byte address 0x4 - core index']
  #allocation1 [shape = 'u32[144,128]{1,0:T(1,128)}', space=vmem, size = 0x12000, scoped, tag = 'internal scratch']
  #allocation2 [shape = 'f32[1]{0:T(128)S(6)}', space=smem, size = 0x200, scoped, tag = 'scoped memory for tpu_custom_call.1']
  %s0 = inlined_call_operand.vmem [shape: f32[600,16], index: 0, kind: input, shape index: {}]
  %s1 = inlined_call_operand.vmem [shape: f32[600,8], index: 1, kind: input, shape index: {}]
  %s2 = inlined_call_operand.vmem [shape: f32[256,16], index: 2, kind: input, shape index: {}]
  %s3 = inlined_call_operand.vmem [shape: f32[256,8], index: 3, kind: input, shape index: {}]
  %s4 = inlined_call_operand.vmem [shape: f32[256,1], index: 4, kind: input, shape index: {}]
  %s5 = inlined_call_operand.vmem [shape: f32[256,256], index: 5, kind: input, shape index: {}]
  %s6 = inlined_call_operand.vmem [shape: f32[256,1], index: 6, kind: input, shape index: {}]
  %s7 = inlined_call_operand.vmem [shape: f32[256,1], index: 7, kind: input, shape index: {}]
  %s8 = inlined_call_operand.<no memory space> [shape: f32[1], index: 8, kind: input, shape index: {}]
  %s9 = inlined_call_operand.hbm [shape: f32[1,600], index: 9, kind: output, shape index: {}]
  %s10 = sld [smem:[#allocation0]]
  $region69: #{tpu_custom_call.1} parent=0
    _
  %s12 = ssub.s32 1, %s10
  %s13 = scalar_select 0, %s12, %s10
  %14 = sst [smem:[#allocation2]] %s8
  $region1: #{tpu_custom_call.1} parent=0
    #allocation3 [shape = 'u8[4096]{0}', space=vmem, size = 0x1000, scoped, tag = 'output window, operand 0']
    #allocation4 [shape = 's32[2]{0}', space=sflag, size = 0x8, scoped, tag = 'scoped memory for tpu_custom_call.1']
    %15 = vsyncpa [#allocation4], 0
    %s16 = scalar_lea.sflag [#allocation4], 1
    %17 = vsyncpa %s16, 0
    loop: start=0, step=1, limit=4
    $region2: #{tpu_custom_call.1} parent=1 // loop_pre_header
      _
    $region3: #{tpu_custom_call.1} parent=1 // loop_header
      %s19 = sphi 0, %s23
      %p20 = scmp.ge.s32.totalorder %s19, 4
      %s29 = sphi 0, %s31
      %s32 = sphi 0, %s29
      %s33 = sphi 0, %s32
      %s49 = sphi 0, %s33
      %s55 = sphi 0, %s57
      %s58 = sphi 0, %s55
      %s59 = sphi 0, %s58
      %s75 = sphi 0, %s59
      %s79 = sphi 0, %s79
      %s81 = sphi 0, %s79
      %s82 = sphi 0, %s81
      %s96 = sphi 0, %s82
      %s100 = sphi 0, %s100
      %s102 = sphi 0, %s100
      %s103 = sphi 0, %s102
      %s117 = sphi 0, %s103
      %s121 = sphi 0, %s121
      %s123 = sphi 0, %s121
      %s124 = sphi 0, %s123
      %s138 = sphi 0, %s124
      %s142 = sphi 0, %s142
      %s144 = sphi 0, %s142
      %s145 = sphi 0, %s144
      %s159 = sphi 0, %s145
      %s163 = sphi 0, %s163
      %s165 = sphi 0, %s163
      %s166 = sphi 0, %s165
      %s180 = sphi 0, %s166
      %s184 = sphi 0, %s184
      %s186 = sphi 0, %s184
      %s187 = sphi 0, %s186
      %s201 = sphi 0, %s187
      %s205 = sphi 0, %s205
      %s207 = sphi 0, %s205
      %s208 = sphi 0, %s207
      %s222 = sphi 0, %s208
      %s228 = sphi 0, %s230
      %s231 = sphi 0, %s228
      %s232 = sphi 0, %s231
      %s248 = sphi 0, %s232
    $region4: #{tpu_custom_call.1} parent=1 // loop_header_branch
      %22 = sbr.rel (%p20) target = $region8
    $region5: #{tpu_custom_call.1} parent=1 // loop_body
      %s24 = ssub.s32 %s19, 1
      %s25 = ssub.s32 %s19, 2
      %s26 = sadd.s32 %s19, 1
      %s27 = ssub.s32 %s19, %s26
      %p28 = scmp.eq.s32.totalorder %s27, 0
      %s30 = sadd.s32 %s29, 1
      %s31 = scalar_select %p28, %s29, %s30
      %p34 = pneg %p28
      %p35 = scmp.eq.s32.totalorder %s19, 1
      %p36 = por %p34, %p35
      %p37 = scmp.ne.s32.totalorder %s29, %s32
      %p38 = scmp.eq.s32.totalorder %s19, 0
      %p39 = por %p37, %p38
      %p40 = scmp.ne.s32.totalorder %s29, %s32
      %p41 = scmp.eq.s32.totalorder %s24, 1
      %p42 = por %p40, %p41
      %p43 = scmp.ne.s32.totalorder %s32, %s33
      %p44 = scmp.eq.s32.totalorder %s24, 0
      %p45 = por %p43, %p44
      %p46 = scmp.ne.s32.totalorder %s32, %s33
      %p47 = scmp.eq.s32.totalorder %s25, 1
      %p48 = por %p46, %p47
      %p50 = scmp.ne.s32.totalorder %s33, %s49
      %p51 = scmp.eq.s32.totalorder %s25, 0
      %p52 = por %p50, %p51
      %s53 = ssub.s32 %s19, %s26
      %p54 = scmp.eq.s32.totalorder %s53, 0
      %s56 = sadd.s32 %s55, 1
      %s57 = scalar_select %p54, %s55, %s56
      %p60 = pneg %p54
      %p61 = scmp.eq.s32.totalorder %s19, 1
      %p62 = por %p60, %p61
      %p63 = scmp.ne.s32.totalorder %s55, %s58
      %p64 = scmp.eq.s32.totalorder %s19, 0
      %p65 = por %p63, %p64
      %p66 = scmp.ne.s32.totalorder %s55, %s58
      %p67 = scmp.eq.s32.totalorder %s24, 1
      %p68 = por %p66, %p67
      %p69 = scmp.ne.s32.totalorder %s58, %s59
      %p70 = scmp.eq.s32.totalorder %s24, 0
      %p71 = por %p69, %p70
      %p72 = scmp.ne.s32.totalorder %s58, %s59
      %p73 = scmp.eq.s32.totalorder %s25, 1
      %p74 = por %p72, %p73
      %p76 = scmp.ne.s32.totalorder %s59, %s75
      %p77 = scmp.eq.s32.totalorder %s25, 0
      %p78 = por %p76, %p77
      %s80 = sadd.s32 %s79, 1
      %p83 = scmp.eq.s32.totalorder %s19, 1
      %p84 = scmp.ne.s32.totalorder %s79, %s81
      %p85 = scmp.eq.s32.totalorder %s19, 0
      %p86 = por %p84, %p85
      %p87 = scmp.ne.s32.totalorder %s79, %s81
      %p88 = scmp.eq.s32.totalorder %s24, 1
      %p89 = por %p87, %p88
      %p90 = scmp.ne.s32.totalorder %s81, %s82
      %p91 = scmp.eq.s32.totalorder %s24, 0
      %p92 = por %p90, %p91
      %p93 = scmp.ne.s32.totalorder %s81, %s82
      %p94 = scmp.eq.s32.totalorder %s25, 1
      %p95 = por %p93, %p94
      %p97 = scmp.ne.s32.totalorder %s82, %s96
      %p98 = scmp.eq.s32.totalorder %s25, 0
      %p99 = por %p97, %p98
      %s101 = sadd.s32 %s100, 1
      %p104 = scmp.eq.s32.totalorder %s19, 1
      %p105 = scmp.ne.s32.totalorder %s100, %s102
      %p106 = scmp.eq.s32.totalorder %s19, 0
      %p107 = por %p105, %p106
      %p108 = scmp.ne.s32.totalorder %s100, %s102
      %p109 = scmp.eq.s32.totalorder %s24, 1
      %p110 = por %p108, %p109
      %p111 = scmp.ne.s32.totalorder %s102, %s103
      %p112 = scmp.eq.s32.totalorder %s24, 0
      %p113 = por %p111, %p112
      %p114 = scmp.ne.s32.totalorder %s102, %s103
      %p115 = scmp.eq.s32.totalorder %s25, 1
      %p116 = por %p114, %p115
      %p118 = scmp.ne.s32.totalorder %s103, %s117
      %p119 = scmp.eq.s32.totalorder %s25, 0
      %p120 = por %p118, %p119
      %s122 = sadd.s32 %s121, 1
      %p125 = scmp.eq.s32.totalorder %s19, 1
      %p126 = scmp.ne.s32.totalorder %s121, %s123
      %p127 = scmp.eq.s32.totalorder %s19, 0
      %p128 = por %p126, %p127
      %p129 = scmp.ne.s32.totalorder %s121, %s123
      %p130 = scmp.eq.s32.totalorder %s24, 1
      %p131 = por %p129, %p130
      %p132 = scmp.ne.s32.totalorder %s123, %s124
      %p133 = scmp.eq.s32.totalorder %s24, 0
      %p134 = por %p132, %p133
      %p135 = scmp.ne.s32.totalorder %s123, %s124
      %p136 = scmp.eq.s32.totalorder %s25, 1
      %p137 = por %p135, %p136
      %p139 = scmp.ne.s32.totalorder %s124, %s138
      %p140 = scmp.eq.s32.totalorder %s25, 0
      %p141 = por %p139, %p140
      %s143 = sadd.s32 %s142, 1
      %p146 = scmp.eq.s32.totalorder %s19, 1
      %p147 = scmp.ne.s32.totalorder %s142, %s144
      %p148 = scmp.eq.s32.totalorder %s19, 0
      %p149 = por %p147, %p148
      %p150 = scmp.ne.s32.totalorder %s142, %s144
      %p151 = scmp.eq.s32.totalorder %s24, 1
      %p152 = por %p150, %p151
      %p153 = scmp.ne.s32.totalorder %s144, %s145
      %p154 = scmp.eq.s32.totalorder %s24, 0
      %p155 = por %p153, %p154
      %p156 = scmp.ne.s32.totalorder %s144, %s145
      %p157 = scmp.eq.s32.totalorder %s25, 1
      %p158 = por %p156, %p157
      %p160 = scmp.ne.s32.totalorder %s145, %s159
      %p161 = scmp.eq.s32.totalorder %s25, 0
      %p162 = por %p160, %p161
      %s164 = sadd.s32 %s163, 1
      %p167 = scmp.eq.s32.totalorder %s19, 1
      %p168 = scmp.ne.s32.totalorder %s163, %s165
      %p169 = scmp.eq.s32.totalorder %s19, 0
      %p170 = por %p168, %p169
      %p171 = scmp.ne.s32.totalorder %s163, %s165
      %p172 = scmp.eq.s32.totalorder %s24, 1
      %p173 = por %p171, %p172
      %p174 = scmp.ne.s32.totalorder %s165, %s166
      %p175 = scmp.eq.s32.totalorder %s24, 0
      %p176 = por %p174, %p175
      %p177 = scmp.ne.s32.totalorder %s165, %s166
      %p178 = scmp.eq.s32.totalorder %s25, 1
      %p179 = por %p177, %p178
      %p181 = scmp.ne.s32.totalorder %s166, %s180
      %p182 = scmp.eq.s32.totalorder %s25, 0
      %p183 = por %p181, %p182
      %s185 = sadd.s32 %s184, 1
      %p188 = scmp.eq.s32.totalorder %s19, 1
      %p189 = scmp.ne.s32.totalorder %s184, %s186
      %p190 = scmp.eq.s32.totalorder %s19, 0
      %p191 = por %p189, %p190
      %p192 = scmp.ne.s32.totalorder %s184, %s186
      %p193 = scmp.eq.s32.totalorder %s24, 1
      %p194 = por %p192, %p193
      %p195 = scmp.ne.s32.totalorder %s186, %s187
      %p196 = scmp.eq.s32.totalorder %s24, 0
      %p197 = por %p195, %p196
      %p198 = scmp.ne.s32.totalorder %s186, %s187
      %p199 = scmp.eq.s32.totalorder %s25, 1
      %p200 = por %p198, %p199
      %p202 = scmp.ne.s32.totalorder %s187, %s201
      %p203 = scmp.eq.s32.totalorder %s25, 0
      %p204 = por %p202, %p203
      %s206 = sadd.s32 %s205, 1
      %p209 = scmp.eq.s32.totalorder %s19, 1
      %p210 = scmp.ne.s32.totalorder %s205, %s207
      %p211 = scmp.eq.s32.totalorder %s19, 0
      %p212 = por %p210, %p211
      %p213 = scmp.ne.s32.totalorder %s205, %s207
      %p214 = scmp.eq.s32.totalorder %s24, 1
      %p215 = por %p213, %p214
      %p216 = scmp.ne.s32.totalorder %s207, %s208
      %p217 = scmp.eq.s32.totalorder %s24, 0
      %p218 = por %p216, %p217
      %p219 = scmp.ne.s32.totalorder %s207, %s208
      %p220 = scmp.eq.s32.totalorder %s25, 1
      %p221 = por %p219, %p220
      %p223 = scmp.ne.s32.totalorder %s208, %s222
      %p224 = scmp.eq.s32.totalorder %s25, 0
      %p225 = por %p223, %p224
      %s226 = ssub.s32 %s19, %s26
      %p227 = scmp.eq.s32.totalorder %s226, 0
      %s229 = sadd.s32 %s228, 1
      %s230 = scalar_select %p227, %s228, %s229
      %p233 = pneg %p227
      %p234 = scmp.eq.s32.totalorder %s19, 1
      %p235 = por %p233, %p234
      %p236 = scmp.ne.s32.totalorder %s228, %s231
      %p237 = scmp.eq.s32.totalorder %s19, 0
      %p238 = por %p236, %p237
      %p239 = scmp.ne.s32.totalorder %s228, %s231
      %p240 = scmp.eq.s32.totalorder %s24, 1
      %p241 = por %p239, %p240
      %p242 = scmp.ne.s32.totalorder %s231, %s232
      %p243 = scmp.eq.s32.totalorder %s24, 0
      %p244 = por %p242, %p243
      %p245 = scmp.ne.s32.totalorder %s231, %s232
      %p246 = scmp.eq.s32.totalorder %s25, 1
      %p247 = por %p245, %p246
      %p249 = scmp.ne.s32.totalorder %s232, %s248
      %p250 = scmp.eq.s32.totalorder %s25, 0
      %p251 = por %p249, %p250
      %p252 = scmp.le.s32.totalorder 1, %s19
      %p253 = scmp.lt.s32.totalorder %s19, 3
      %p254 = pnand %p252, %p253
      %p255 = pneg %p254
      // Predicated region
      $region9: #{tpu_custom_call.1} parent=5 // pred_check
        _
      $region10: #{tpu_custom_call.1} parent=5 // pred_check_branch
        %257 = sbr.rel (%p254) target = $region12
      $region11: #{tpu_custom_call.1} parent=5 // pred_region
        %s258 = ssub.s32 %s19, 1
        // Predicated region
        $region13: #{tpu_custom_call.1} parent=11 // pred_check
          %p259 = pneg %p92
        $region14: #{tpu_custom_call.1} parent=11 // pred_check_branch
          %261 = sbr.rel (%p259) target = $region16
        $region15: #{tpu_custom_call.1} parent=11 // pred_region
          _
        $region16: #{tpu_custom_call.1} parent=11 // pred_fallthru
          _
        // Predicated region
        $region17: #{tpu_custom_call.1} parent=11 // pred_check
          %p262 = pneg %p113
        $region18: #{tpu_custom_call.1} parent=11 // pred_check_branch
          %264 = sbr.rel (%p262) target = $region20
        $region19: #{tpu_custom_call.1} parent=11 // pred_region
          _
        $region20: #{tpu_custom_call.1} parent=11 // pred_fallthru
          _
        // Predicated region
        $region21: #{tpu_custom_call.1} parent=11 // pred_check
          %p265 = pneg %p134
        $region22: #{tpu_custom_call.1} parent=11 // pred_check_branch
          %267 = sbr.rel (%p265) target = $region24
        $region23: #{tpu_custom_call.1} parent=11 // pred_region
          _
        $region24: #{tpu_custom_call.1} parent=11 // pred_fallthru
          _
        // Predicated region
        $region25: #{tpu_custom_call.1} parent=11 // pred_check
          %p268 = pneg %p155
        $region26: #{tpu_custom_call.1} parent=11 // pred_check_branch
          %270 = sbr.rel (%p268) target = $region28
        $region27: #{tpu_custom_call.1} parent=11 // pred_region
          _
        $region28: #{tpu_custom_call.1} parent=11 // pred_fallthru
          _
        // Predicated region
        $region29: #{tpu_custom_call.1} parent=11 // pred_check
          %p271 = pneg %p176
        $region30: #{tpu_custom_call.1} parent=11 // pred_check_branch
          %273 = sbr.rel (%p271) target = $region32
        $region31: #{tpu_custom_call.1} parent=11 // pred_region
          _
        $region32: #{tpu_custom_call.1} parent=11 // pred_fallthru
          _
        // Predicated region
        $region33: #{tpu_custom_call.1} parent=11 // pred_check
          %p274 = pneg %p197
        $region34: #{tpu_custom_call.1} parent=11 // pred_check_branch
          %276 = sbr.rel (%p274) target = $region36
        $region35: #{tpu_custom_call.1} parent=11 // pred_region
          _
        $region36: #{tpu_custom_call.1} parent=11 // pred_fallthru
          _
        // Predicated region
        $region37: #{tpu_custom_call.1} parent=11 // pred_check
          %p277 = pneg %p218
        $region38: #{tpu_custom_call.1} parent=11 // pred_check_branch
          %279 = sbr.rel (%p277) target = $region40
        $region39: #{tpu_custom_call.1} parent=11 // pred_region
          _
        $region40: #{tpu_custom_call.1} parent=11 // pred_fallthru
          _
      $region12: #{tpu_custom_call.1} parent=5 // pred_fallthru
        _
      %p280 = scmp.lt.s32.totalorder %s19, 2
      // Predicated region
      $region41: #{tpu_custom_call.1} parent=5 // pred_check
        %p281 = pneg %p280
      $region42: #{tpu_custom_call.1} parent=5 // pred_check_branch
        %283 = sbr.rel (%p281) target = $region44
      $region43: #{tpu_custom_call.1} parent=5 // pred_region
        // Predicated region
        $region45: #{tpu_custom_call.1} parent=43 // pred_check
          %p284 = pneg %p39
        $region46: #{tpu_custom_call.1} parent=43 // pred_check_branch
          %286 = sbr.rel (%p284) target = $region48
        $region47: #{tpu_custom_call.1} parent=43 // pred_region
          %s287 = smul.u32 64, %s19
          %s288 = ssub.s32 75, %s287
          %p289 = scmp.lt.s32.totalorder %s288, 64
          %s290 = scalar_select %p289, %s288, 64
          %s291 = smul.u32 128, %s290
          %p292 = scmp.lt.s32.totalorder %s287, 74
          %s293 = scalar_select %p292, %s287, 74
          %s294 = smul.addr %s293, 8
          %s295 = scalar_lea.vmem %s0, %s294
          %s296 = smul.u32 64, %s19
          %s297 = ssub.s32 75, %s296
          %p298 = scmp.lt.s32.totalorder %s297, 64
          %s299 = scalar_select %p298, %s297, 64
          %s300 = smul.u32 128, %s299
        $region48: #{tpu_custom_call.1} parent=43 // pred_fallthru
          _
        // Predicated region
        $region49: #{tpu_custom_call.1} parent=43 // pred_check
          %p301 = pneg %p65
        $region50: #{tpu_custom_call.1} parent=43 // pred_check_branch
          %303 = sbr.rel (%p301) target = $region52
        $region51: #{tpu_custom_call.1} parent=43 // pred_region
          %s304 = smul.u32 64, %s19
          %s305 = ssub.s32 75, %s304
          %p306 = scmp.lt.s32.totalorder %s305, 64
          %s307 = scalar_select %p306, %s305, 64
          %s308 = smul.u32 128, %s307
          %p309 = scmp.lt.s32.totalorder %s304, 74
          %s310 = scalar_select %p309, %s304, 74
          %s311 = smul.addr %s310, 8
          %s312 = scalar_lea.vmem %s1, %s311
          %s313 = smul.u32 64, %s19
          %s314 = ssub.s32 75, %s313
          %p315 = scmp.lt.s32.totalorder %s314, 64
          %s316 = scalar_select %p315, %s314, 64
          %s317 = smul.u32 128, %s316
        $region52: #{tpu_custom_call.1} parent=43 // pred_fallthru
          _
      $region44: #{tpu_custom_call.1} parent=5 // pred_fallthru
        _
      %p318 = scmp.le.s32.totalorder 1, %s19
      %p319 = scmp.lt.s32.totalorder %s19, 3
      %p320 = pnand %p318, %p319
      %p321 = pneg %p320
      // Predicated region
      $region53: #{tpu_custom_call.1} parent=5 // pred_check
        _
      $region54: #{tpu_custom_call.1} parent=5 // pred_check_branch
        %323 = sbr.rel (%p320) target = $region56
      $region55: #{tpu_custom_call.1} parent=5 // pred_region
        %s324 = ssub.s32 %s19, 1
        %s325 = smul.u32 64, %s24
        %s326 = ssub.s32 75, %s325
        %p327 = scmp.lt.s32.totalorder %s326, 64
        %s328 = scalar_select %p327, %s326, 64
        %s329 = smul.u32 128, %s328
        %p330 = scmp.lt.s32.totalorder %s325, 74
        %s331 = scalar_select %p330, %s325, 74
        %s332 = smul.addr %s331, 8
        %s333 = scalar_lea.vmem %s0, %s332
        %p334 = pneg %p45
        %p335 = pneg %p42
        %s336 = smul.u32 64, %s24
        %s337 = ssub.s32 75, %s336
        %p338 = scmp.lt.s32.totalorder %s337, 64
        %s339 = scalar_select %p338, %s337, 64
        %s340 = smul.u32 128, %s339
        %p341 = scmp.lt.s32.totalorder %s336, 74
        %s342 = scalar_select %p341, %s336, 74
        %s343 = smul.addr %s342, 8
        %s344 = scalar_lea.vmem %s1, %s343
        %p345 = pneg %p71
        %p346 = pneg %p68
        %p347 = pneg %p92
        %p348 = pneg %p89
        %p349 = pneg %p113
        %p350 = pneg %p110
        %p351 = pneg %p134
        %p352 = pneg %p131
        %p353 = pneg %p155
        %p354 = pneg %p152
        %p355 = pneg %p176
        %p356 = pneg %p173
        %p357 = pneg %p197
        %p358 = pneg %p194
        %p359 = pneg %p218
        %p360 = pneg %p215
        %p361 = pneg %p244
        %p362 = pneg %p241
        %s363 = sand.u32 %s231, 1
        %s364 = scalar_lea.sflag [#allocation4], %s363
        %s365 = sand.u32 %s231, 1
        %s366 = smul.addr %s365, 4
        %s367 = scalar_lea.vmem [#allocation3], %s366
        %s368 = smul.u32 64, %s24
        %s369 = ssub.s32 75, %s368
        %p370 = scmp.lt.s32.totalorder %s369, 64
        %s371 = scalar_select %p370, %s369, 64
        %s372 = smul.u32 128, %s371
        %p373 = scmp.lt.s32.totalorder %s368, 74
        %s374 = scalar_select %p373, %s368, 74
        %s375 = smul.addr %s374, 8
        %s376 = scalar_lea.vmem %s0, %s375
        %s377 = smul.u32 64, %s24
        %s378 = ssub.s32 75, %s377
        %p379 = scmp.lt.s32.totalorder %s378, 64
        %s380 = scalar_select %p379, %s378, 64
        %s381 = smul.u32 128, %s380
        %s382 = smul.u32 64, %s24
        %s383 = ssub.s32 75, %s382
        %p384 = scmp.lt.s32.totalorder %s383, 64
        %s385 = scalar_select %p384, %s383, 64
        %s386 = smul.u32 128, %s385
        %p387 = scmp.lt.s32.totalorder %s382, 74
        %s388 = scalar_select %p387, %s382, 74
        %s389 = smul.addr %s388, 8
        %s390 = scalar_lea.vmem %s1, %s389
        %s391 = smul.u32 64, %s24
        %s392 = ssub.s32 75, %s391
        %p393 = scmp.lt.s32.totalorder %s392, 64
        %s394 = scalar_select %p393, %s392, 64
        %s395 = smul.u32 128, %s394
        %s396 = smul.u32 4, %s24
        %s397 = ssub.s32 5, %s396
        %p398 = scmp.lt.s32.totalorder %s397, 4
        %s399 = scalar_select %p398, %s397, 4
        %s400 = smul.u32 16, %s399
        %v401 = vld [vmem:[%s2] sm:$0xff]
        %v402 = vld [vmem:[%s2 + $0x8] sm:$0xff]
        %v403 = vld [vmem:[%s2 + $0x10] sm:$0xff]
        %v404 = vld [vmem:[%s2 + $0x18] sm:$0xff]
        %v405 = vld [vmem:[%s2 + $0x20] sm:$0xff]
        %v406 = vld [vmem:[%s2 + $0x28] sm:$0xff]
        %v407 = vld [vmem:[%s2 + $0x30] sm:$0xff]
        %v408 = vld [vmem:[%s2 + $0x38] sm:$0xff]
        %v409 = vld [vmem:[%s2 + $0x40] sm:$0xff]
        %v410 = vld [vmem:[%s2 + $0x48] sm:$0xff]
        %v411 = vld [vmem:[%s2 + $0x50] sm:$0xff]
        %v412 = vld [vmem:[%s2 + $0x58] sm:$0xff]
        %v413 = vld [vmem:[%s2 + $0x60] sm:$0xff]
        %v414 = vld [vmem:[%s2 + $0x68] sm:$0xff]
        %v415 = vld [vmem:[%s2 + $0x70] sm:$0xff]
        %v416 = vld [vmem:[%s2 + $0x78] sm:$0xff]
        %v417 = vld [vmem:[%s2 + $0x80] sm:$0xff]
        %v418 = vld [vmem:[%s2 + $0x88] sm:$0xff]
        %v419 = vld [vmem:[%s2 + $0x90] sm:$0xff]
        %v420 = vld [vmem:[%s2 + $0x98] sm:$0xff]
        %v421 = vld [vmem:[%s2 + $0xa0] sm:$0xff]
        %v422 = vld [vmem:[%s2 + $0xa8] sm:$0xff]
        %v423 = vld [vmem:[%s2 + $0xb0] sm:$0xff]
        %v424 = vld [vmem:[%s2 + $0xb8] sm:$0xff]
        %v425 = vld [vmem:[%s2 + $0xc0] sm:$0xff]
        %v426 = vld [vmem:[%s2 + $0xc8] sm:$0xff]
        %v427 = vld [vmem:[%s2 + $0xd0] sm:$0xff]
        %v428 = vld [vmem:[%s2 + $0xd8] sm:$0xff]
        %v429 = vld [vmem:[%s2 + $0xe0] sm:$0xff]
        %v430 = vld [vmem:[%s2 + $0xe8] sm:$0xff]
        %v431 = vld [vmem:[%s2 + $0xf0] sm:$0xff]
        %v432 = vld [vmem:[%s2 + $0xf8] sm:$0xff]
        %v433 = vld [vmem:[%s376] sm:$0xff]
        %v434 = vld [vmem:[%s376 + $0x8] sm:$0xff]
        %v435 = vld [vmem:[%s376 + $0x10] sm:$0xff]
        %v436 = vld [vmem:[%s376 + $0x18] sm:$0xff]
        %v437 = vld [vmem:[%s376 + $0x20] sm:$0xff]
        %v438 = vld [vmem:[%s376 + $0x28] sm:$0xff]
        %v439 = vld [vmem:[%s376 + $0x30] sm:$0xff]
        %v440 = vld [vmem:[%s376 + $0x38] sm:$0xff]
        %v441 = vld [vmem:[%s376 + $0x40] sm:$0xff]
        %v442 = vld [vmem:[%s376 + $0x48] sm:$0xff]
        %v443 = vld [vmem:[%s376 + $0x50] sm:$0xff]
        %v444 = vld [vmem:[%s376 + $0x58] sm:$0xff]
        %v445 = vld [vmem:[%s376 + $0x60] sm:$0xff]
        %v446 = vld [vmem:[%s376 + $0x68] sm:$0xff]
        %v447 = vld [vmem:[%s376 + $0x70] sm:$0xff]
        %v448 = vld [vmem:[%s376 + $0x78] sm:$0xff]
        %v449 = vld [vmem:[%s376 + $0x80] sm:$0xff]
        %v450 = vld [vmem:[%s376 + $0x88] sm:$0xff]
        %v451 = vld [vmem:[%s376 + $0x90] sm:$0xff]
        %v452 = vld [vmem:[%s376 + $0x98] sm:$0xff]
        %v453 = vld [vmem:[%s376 + $0xa0] sm:$0xff]
        %v454 = vld [vmem:[%s376 + $0xa8] sm:$0xff]
        %v455 = vld [vmem:[%s376 + $0xb0] sm:$0xff]
        %v456 = vld [vmem:[%s376 + $0xb8] sm:$0xff]
        %v457 = vld [vmem:[%s376 + $0xc0] sm:$0xff]
        %v458 = vld [vmem:[%s376 + $0xc8] sm:$0xff]
        %v459 = vld [vmem:[%s376 + $0xd0] sm:$0xff]
        %v460 = vld [vmem:[%s376 + $0xd8] sm:$0xff]
        %v461 = vld [vmem:[%s376 + $0xe0] sm:$0xff]
        %v462 = vld [vmem:[%s376 + $0xe8] sm:$0xff]
        %v463 = vld [vmem:[%s376 + $0xf0] sm:$0xff]
        %v464 = vld [vmem:[%s376 + $0xf8] sm:$0xff]
        %v465 = vld [vmem:[%s376 + $0x100] sm:$0xff]
        %v466 = vld [vmem:[%s376 + $0x108] sm:$0xff]
        %v467 = vld [vmem:[%s376 + $0x110] sm:$0xff]
        %v468 = vld [vmem:[%s376 + $0x118] sm:$0xff]
        %v469 = vld [vmem:[%s376 + $0x120] sm:$0xff]
        %v470 = vld [vmem:[%s376 + $0x128] sm:$0xff]
        %v471 = vld [vmem:[%s376 + $0x130] sm:$0xff]
        %v472 = vld [vmem:[%s376 + $0x138] sm:$0xff]
        %v473 = vld [vmem:[%s376 + $0x140] sm:$0xff]
        %v474 = vld [vmem:[%s376 + $0x148] sm:$0xff]
        %v475 = vld [vmem:[%s376 + $0x150] sm:$0xff]
        %v476 = vld [vmem:[%s376 + $0x158] sm:$0xff]
        %v477 = vld [vmem:[%s376 + $0x160] sm:$0xff]
        %v478 = vld [vmem:[%s376 + $0x168] sm:$0xff]
        %v479 = vld [vmem:[%s376 + $0x170] sm:$0xff]
        %v480 = vld [vmem:[%s376 + $0x178] sm:$0xff]
        %v481 = vld [vmem:[%s376 + $0x180] sm:$0xff]
        %v482 = vld [vmem:[%s376 + $0x188] sm:$0xff]
        %v483 = vld [vmem:[%s376 + $0x190] sm:$0xff]
        %v484 = vld [vmem:[%s376 + $0x198] sm:$0xff]
        %v485 = vld [vmem:[%s376 + $0x1a0] sm:$0xff]
        %v486 = vld [vmem:[%s376 + $0x1a8] sm:$0xff]
        %v487 = vld [vmem:[%s376 + $0x1b0] sm:$0xff]
        %v488 = vld [vmem:[%s376 + $0x1b8] sm:$0xff]
        %v489 = vld [vmem:[%s376 + $0x1c0] sm:$0xff]
        %v490 = vld [vmem:[%s376 + $0x1c8] sm:$0xff]
        %v491 = vld [vmem:[%s376 + $0x1d0] sm:$0xff]
        %v492 = vld [vmem:[%s376 + $0x1d8] sm:$0xff]
        %v493 = vld [vmem:[%s376 + $0x1e0] sm:$0xff]
        %v494 = vld [vmem:[%s376 + $0x1e8] sm:$0xff]
        %v495 = vld [vmem:[%s376 + $0x1f0] sm:$0xff]
        %v496 = vld [vmem:[%s376 + $0x1f8] sm:$0xff]
        %v497 = vld [vmem:[%s3] sm:$0xff]
        %v498 = vld [vmem:[%s3 + $0x8] sm:$0xff]
        %v499 = vld [vmem:[%s3 + $0x10] sm:$0xff]
        %v500 = vld [vmem:[%s3 + $0x18] sm:$0xff]
        %v501 = vld [vmem:[%s3 + $0x20] sm:$0xff]
        %v502 = vld [vmem:[%s3 + $0x28] sm:$0xff]
        %v503 = vld [vmem:[%s3 + $0x30] sm:$0xff]
        %v504 = vld [vmem:[%s3 + $0x38] sm:$0xff]
        %v505 = vld [vmem:[%s3 + $0x40] sm:$0xff]
        %v506 = vld [vmem:[%s3 + $0x48] sm:$0xff]
        %v507 = vld [vmem:[%s3 + $0x50] sm:$0xff]
        %v508 = vld [vmem:[%s3 + $0x58] sm:$0xff]
        %v509 = vld [vmem:[%s3 + $0x60] sm:$0xff]
        %v510 = vld [vmem:[%s3 + $0x68] sm:$0xff]
        %v511 = vld [vmem:[%s3 + $0x70] sm:$0xff]
        %v512 = vld [vmem:[%s3 + $0x78] sm:$0xff]
        %v513 = vld [vmem:[%s3 + $0x80] sm:$0xff]
        %v514 = vld [vmem:[%s3 + $0x88] sm:$0xff]
        %v515 = vld [vmem:[%s3 + $0x90] sm:$0xff]
        %v516 = vld [vmem:[%s3 + $0x98] sm:$0xff]
        %v517 = vld [vmem:[%s3 + $0xa0] sm:$0xff]
        %v518 = vld [vmem:[%s3 + $0xa8] sm:$0xff]
        %v519 = vld [vmem:[%s3 + $0xb0] sm:$0xff]
        %v520 = vld [vmem:[%s3 + $0xb8] sm:$0xff]
        %v521 = vld [vmem:[%s3 + $0xc0] sm:$0xff]
        %v522 = vld [vmem:[%s3 + $0xc8] sm:$0xff]
        %v523 = vld [vmem:[%s3 + $0xd0] sm:$0xff]
        %v524 = vld [vmem:[%s3 + $0xd8] sm:$0xff]
        %v525 = vld [vmem:[%s3 + $0xe0] sm:$0xff]
        %v526 = vld [vmem:[%s3 + $0xe8] sm:$0xff]
        %v527 = vld [vmem:[%s3 + $0xf0] sm:$0xff]
        %v528 = vld [vmem:[%s3 + $0xf8] sm:$0xff]
        %v529 = vld [vmem:[%s390] sm:$0xff]
        %v530 = vld [vmem:[%s390 + $0x8] sm:$0xff]
        %v531 = vld [vmem:[%s390 + $0x10] sm:$0xff]
        %v532 = vld [vmem:[%s390 + $0x18] sm:$0xff]
        %v533 = vld [vmem:[%s390 + $0x20] sm:$0xff]
        %v534 = vld [vmem:[%s390 + $0x28] sm:$0xff]
        %v535 = vld [vmem:[%s390 + $0x30] sm:$0xff]
        %v536 = vld [vmem:[%s390 + $0x38] sm:$0xff]
        %v537 = vld [vmem:[%s390 + $0x40] sm:$0xff]
        %v538 = vld [vmem:[%s390 + $0x48] sm:$0xff]
        %v539 = vld [vmem:[%s390 + $0x50] sm:$0xff]
        %v540 = vld [vmem:[%s390 + $0x58] sm:$0xff]
        %v541 = vld [vmem:[%s390 + $0x60] sm:$0xff]
        %v542 = vld [vmem:[%s390 + $0x68] sm:$0xff]
        %v543 = vld [vmem:[%s390 + $0x70] sm:$0xff]
        %v544 = vld [vmem:[%s390 + $0x78] sm:$0xff]
        %v545 = vld [vmem:[%s390 + $0x80] sm:$0xff]
        %v546 = vld [vmem:[%s390 + $0x88] sm:$0xff]
        %v547 = vld [vmem:[%s390 + $0x90] sm:$0xff]
        %v548 = vld [vmem:[%s390 + $0x98] sm:$0xff]
        %v549 = vld [vmem:[%s390 + $0xa0] sm:$0xff]
        %v550 = vld [vmem:[%s390 + $0xa8] sm:$0xff]
        %v551 = vld [vmem:[%s390 + $0xb0] sm:$0xff]
        %v552 = vld [vmem:[%s390 + $0xb8] sm:$0xff]
        %v553 = vld [vmem:[%s390 + $0xc0] sm:$0xff]
        %v554 = vld [vmem:[%s390 + $0xc8] sm:$0xff]
        %v555 = vld [vmem:[%s390 + $0xd0] sm:$0xff]
        %v556 = vld [vmem:[%s390 + $0xd8] sm:$0xff]
        %v557 = vld [vmem:[%s390 + $0xe0] sm:$0xff]
        %v558 = vld [vmem:[%s390 + $0xe8] sm:$0xff]
        %v559 = vld [vmem:[%s390 + $0xf0] sm:$0xff]
        %v560 = vld [vmem:[%s390 + $0xf8] sm:$0xff]
        %v561 = vld [vmem:[%s390 + $0x100] sm:$0xff]
        %v562 = vld [vmem:[%s390 + $0x108] sm:$0xff]
        %v563 = vld [vmem:[%s390 + $0x110] sm:$0xff]
        %v564 = vld [vmem:[%s390 + $0x118] sm:$0xff]
        %v565 = vld [vmem:[%s390 + $0x120] sm:$0xff]
        %v566 = vld [vmem:[%s390 + $0x128] sm:$0xff]
        %v567 = vld [vmem:[%s390 + $0x130] sm:$0xff]
        %v568 = vld [vmem:[%s390 + $0x138] sm:$0xff]
        %v569 = vld [vmem:[%s390 + $0x140] sm:$0xff]
        %v570 = vld [vmem:[%s390 + $0x148] sm:$0xff]
        %v571 = vld [vmem:[%s390 + $0x150] sm:$0xff]
        %v572 = vld [vmem:[%s390 + $0x158] sm:$0xff]
        %v573 = vld [vmem:[%s390 + $0x160] sm:$0xff]
        %v574 = vld [vmem:[%s390 + $0x168] sm:$0xff]
        %v575 = vld [vmem:[%s390 + $0x170] sm:$0xff]
        %v576 = vld [vmem:[%s390 + $0x178] sm:$0xff]
        %v577 = vld [vmem:[%s390 + $0x180] sm:$0xff]
        %v578 = vld [vmem:[%s390 + $0x188] sm:$0xff]
        %v579 = vld [vmem:[%s390 + $0x190] sm:$0xff]
        %v580 = vld [vmem:[%s390 + $0x198] sm:$0xff]
        %v581 = vld [vmem:[%s390 + $0x1a0] sm:$0xff]
        %v582 = vld [vmem:[%s390 + $0x1a8] sm:$0xff]
        %v583 = vld [vmem:[%s390 + $0x1b0] sm:$0xff]
        %v584 = vld [vmem:[%s390 + $0x1b8] sm:$0xff]
        %v585 = vld [vmem:[%s390 + $0x1c0] sm:$0xff]
        %v586 = vld [vmem:[%s390 + $0x1c8] sm:$0xff]
        %v587 = vld [vmem:[%s390 + $0x1d0] sm:$0xff]
        %v588 = vld [vmem:[%s390 + $0x1d8] sm:$0xff]
        %v589 = vld [vmem:[%s390 + $0x1e0] sm:$0xff]
        %v590 = vld [vmem:[%s390 + $0x1e8] sm:$0xff]
        %v591 = vld [vmem:[%s390 + $0x1f0] sm:$0xff]
        %v592 = vld [vmem:[%s390 + $0x1f8] sm:$0xff]
        %vm593 = vcmask 64512
        %v595 = vsel %vm593, %v497, 0
        %v598 = vsel %vm593, %v498, 0
        %v601 = vsel %vm593, %v499, 0
        %v604 = vsel %vm593, %v500, 0
        %v607 = vsel %vm593, %v501, 0
        %v610 = vsel %vm593, %v502, 0
        %v613 = vsel %vm593, %v503, 0
        %v616 = vsel %vm593, %v504, 0
        %v619 = vsel %vm593, %v505, 0
        %v622 = vsel %vm593, %v506, 0
        %v625 = vsel %vm593, %v507, 0
        %v628 = vsel %vm593, %v508, 0
        %v631 = vsel %vm593, %v509, 0
        %v634 = vsel %vm593, %v510, 0
        %v637 = vsel %vm593, %v511, 0
        %v640 = vsel %vm593, %v512, 0
        %v643 = vsel %vm593, %v513, 0
        %v646 = vsel %vm593, %v514, 0
        %v649 = vsel %vm593, %v515, 0
        %v652 = vsel %vm593, %v516, 0
        %v655 = vsel %vm593, %v517, 0
        %v658 = vsel %vm593, %v518, 0
        %v661 = vsel %vm593, %v519, 0
        %v664 = vsel %vm593, %v520, 0
        %v667 = vsel %vm593, %v521, 0
        %v670 = vsel %vm593, %v522, 0
        %v673 = vsel %vm593, %v523, 0
        %v676 = vsel %vm593, %v524, 0
        %v679 = vsel %vm593, %v525, 0
        %v682 = vsel %vm593, %v526, 0
        %v685 = vsel %vm593, %v527, 0
        %v688 = vsel %vm593, %v528, 0
        %v691 = vsel %vm593, %v529, 0
        %v694 = vsel %vm593, %v530, 0
        %v697 = vsel %vm593, %v531, 0
        %v700 = vsel %vm593, %v532, 0
        %v703 = vsel %vm593, %v533, 0
        %v706 = vsel %vm593, %v534, 0
        %v709 = vsel %vm593, %v535, 0
        %v712 = vsel %vm593, %v536, 0
        %v715 = vsel %vm593, %v537, 0
        %v718 = vsel %vm593, %v538, 0
        %v721 = vsel %vm593, %v539, 0
        %v724 = vsel %vm593, %v540, 0
        %v727 = vsel %vm593, %v541, 0
        %v730 = vsel %vm593, %v542, 0
        %v733 = vsel %vm593, %v543, 0
        %v736 = vsel %vm593, %v544, 0
        %v739 = vsel %vm593, %v545, 0
        %v742 = vsel %vm593, %v546, 0
        %v745 = vsel %vm593, %v547, 0
        %v748 = vsel %vm593, %v548, 0
        %v751 = vsel %vm593, %v549, 0
        %v754 = vsel %vm593, %v550, 0
        %v757 = vsel %vm593, %v551, 0
        %v760 = vsel %vm593, %v552, 0
        %v763 = vsel %vm593, %v553, 0
        %v766 = vsel %vm593, %v554, 0
        %v769 = vsel %vm593, %v555, 0
        %v772 = vsel %vm593, %v556, 0
        %v775 = vsel %vm593, %v557, 0
        %v778 = vsel %vm593, %v558, 0
        %v781 = vsel %vm593, %v559, 0
        %v784 = vsel %vm593, %v560, 0
        %v787 = vsel %vm593, %v561, 0
        %v790 = vsel %vm593, %v562, 0
        %v793 = vsel %vm593, %v563, 0
        %v796 = vsel %vm593, %v564, 0
        %v799 = vsel %vm593, %v565, 0
        %v802 = vsel %vm593, %v566, 0
        %v805 = vsel %vm593, %v567, 0
        %v808 = vsel %vm593, %v568, 0
        %v811 = vsel %vm593, %v569, 0
        %v814 = vsel %vm593, %v570, 0
        %v817 = vsel %vm593, %v571, 0
        %v820 = vsel %vm593, %v572, 0
        %v823 = vsel %vm593, %v573, 0
        %v826 = vsel %vm593, %v574, 0
        %v829 = vsel %vm593, %v575, 0
        %v832 = vsel %vm593, %v576, 0
        %v835 = vsel %vm593, %v577, 0
        %v838 = vsel %vm593, %v578, 0
        %v841 = vsel %vm593, %v579, 0
        %v844 = vsel %vm593, %v580, 0
        %v847 = vsel %vm593, %v581, 0
        %v850 = vsel %vm593, %v582, 0
        %v853 = vsel %vm593, %v583, 0
        %v856 = vsel %vm593, %v584, 0
        %v859 = vsel %vm593, %v585, 0
        %v862 = vsel %vm593, %v586, 0
        %v865 = vsel %vm593, %v587, 0
        %v868 = vsel %vm593, %v588, 0
        %v871 = vsel %vm593, %v589, 0
        %v874 = vsel %vm593, %v590, 0
        %v877 = vsel %vm593, %v591, 0
        %v880 = vsel %vm593, %v592, 0
        %882 = vmatprep.subr.mxu0 0.0
        %883 = vmatpush1.xpose.msra.mxu0 %v691
        %884 = vmatprep.subr.mxu0 0.0
        %885 = vmatpush1.xpose.msra.mxu0 %v694
        %886 = vmatprep.subr.mxu0 0.0
        %887 = vmatpush1.xpose.msra.mxu0 %v697
        %888 = vmatprep.subr.mxu0 0.0
        %889 = vmatpush1.xpose.msra.mxu0 %v700
        %890 = vmatprep.subr.mxu0 0.0
        %891 = vmatpush1.xpose.msra.mxu0 %v703
        %892 = vmatprep.subr.mxu0 0.0
        %893 = vmatpush1.xpose.msra.mxu0 %v706
        %894 = vmatprep.subr.mxu0 0.0
        %895 = vmatpush1.xpose.msra.mxu0 %v709
        %896 = vmatprep.subr.mxu0 0.0
        %897 = vmatpush1.xpose.msra.mxu0 %v712
        %898 = vmatprep.subr.mxu0 0.0
        %899 = vmatpush1.xpose.msra.mxu0 %v715
        %900 = vmatprep.subr.mxu0 0.0
        %901 = vmatpush1.xpose.msra.mxu0 %v718
        %902 = vmatprep.subr.mxu0 0.0
        %903 = vmatpush1.xpose.msra.mxu0 %v721
        %904 = vmatprep.subr.mxu0 0.0
        %905 = vmatpush1.xpose.msra.mxu0 %v724
        %906 = vmatprep.subr.mxu0 0.0
        %907 = vmatpush1.xpose.msra.mxu0 %v727
        %908 = vmatprep.subr.mxu0 0.0
        %909 = vmatpush1.xpose.msra.mxu0 %v730
        %910 = vmatprep.subr.mxu0 0.0
        %911 = vmatpush1.xpose.msra.mxu0 %v733
        %912 = vmatprep.subr.mxu0 0.0
        %913 = vmatpush1.xpose.msra.mxu0 %v736
        %914 = vmatprep.subr.mxu0 0.0
        %915 = vmatpush1.xpose.msra.mxu0 %v739
        %916 = vmatprep.subr.mxu0 0.0
        %917 = vmatpush1.xpose.msra.mxu0 %v742
        %918 = vmatprep.subr.mxu0 0.0
        %919 = vmatpush1.xpose.msra.mxu0 %v745
        %920 = vmatprep.subr.mxu0 0.0
        %921 = vmatpush1.xpose.msra.mxu0 %v748
        %922 = vmatprep.subr.mxu0 0.0
        %923 = vmatpush1.xpose.msra.mxu0 %v751
        %924 = vmatprep.subr.mxu0 0.0
        %925 = vmatpush1.xpose.msra.mxu0 %v754
        %926 = vmatprep.subr.mxu0 0.0
        %927 = vmatpush1.xpose.msra.mxu0 %v757
        %928 = vmatprep.subr.mxu0 0.0
        %929 = vmatpush1.xpose.msra.mxu0 %v760
        %930 = vmatprep.subr.mxu0 0.0
        %931 = vmatpush1.xpose.msra.mxu0 %v763
        %932 = vmatprep.subr.mxu0 0.0
        %933 = vmatpush1.xpose.msra.mxu0 %v766
        %934 = vmatprep.subr.mxu0 0.0
        %935 = vmatpush1.xpose.msra.mxu0 %v769
        %936 = vmatprep.subr.mxu0 0.0
        %937 = vmatpush1.xpose.msra.mxu0 %v772
        %938 = vmatprep.subr.mxu0 0.0
        %939 = vmatpush1.xpose.msra.mxu0 %v775
        %940 = vmatprep.subr.mxu0 0.0
        %941 = vmatpush1.xpose.msra.mxu0 %v778
        %942 = vmatprep.subr.mxu0 0.0
        %943 = vmatpush1.xpose.msra.mxu0 %v781
        %944 = vmatprep.subr.mxu0 0.0
        %945 = vmatpush1.xpose.msra.mxu0 %v784
        %946 = vmatprep.mubr.f32.mxu0 0.0
        %947 = vmatmul.mubr.f32.gmra.mrb[0].mxu0 %v595
        %v948 = vpop.f32.mrb[0].mxu0
        %v949 = vadd.f32 0.0, %v948
        %v950 = vpop.f32.mrb[0].mxu0
        %v951 = vadd.f32 0.0, %v950
        %952 = vmatprep.mubr.f32.mxu0 0.0
        %953 = vmatmul.mubr.f32.gmra.mrb[0].mxu0 %v598
        %v954 = vpop.f32.mrb[0].mxu0
        %v955 = vadd.f32 0.0, %v954
        %v956 = vpop.f32.mrb[0].mxu0
        %v957 = vadd.f32 0.0, %v956
        %958 = vmatprep.mubr.f32.mxu0 0.0
        %959 = vmatmul.mubr.f32.gmra.mrb[0].mxu0 %v601
        %v960 = vpop.f32.mrb[0].mxu0
        %v961 = vadd.f32 0.0, %v960
        %v962 = vpop.f32.mrb[0].mxu0
        %v963 = vadd.f32 0.0, %v962
        %964 = vmatprep.mubr.f32.mxu0 0.0
        %965 = vmatmul.mubr.f32.gmra.mrb[0].mxu0 %v604
        %v966 = vpop.f32.mrb[0].mxu0
        %v967 = vadd.f32 0.0, %v966
        %v968 = vpop.f32.mrb[0].mxu0
        %v969 = vadd.f32 0.0, %v968
        %970 = vmatprep.mubr.f32.mxu0 0.0
        %971 = vmatmul.mubr.f32.gmra.mrb[0].mxu0 %v607
        %v972 = vpop.f32.mrb[0].mxu0
        %v973 = vadd.f32 0.0, %v972
        %v974 = vpop.f32.mrb[0].mxu0
        %v975 = vadd.f32 0.0, %v974
        %976 = vmatprep.mubr.f32.mxu0 0.0
        %977 = vmatmul.mubr.f32.gmra.mrb[0].mxu0 %v610
        %v978 = vpop.f32.mrb[0].mxu0
        %v979 = vadd.f32 0.0, %v978
        %v980 = vpop.f32.mrb[0].mxu0
        %v981 = vadd.f32 0.0, %v980
        %982 = vmatprep.mubr.f32.mxu0 0.0
        %983 = vmatmul.mubr.f32.gmra.mrb[0].mxu0 %v613
        %v984 = vpop.f32.mrb[0].mxu0
        %v985 = vadd.f32 0.0, %v984
        %v986 = vpop.f32.mrb[0].mxu0
        %v987 = vadd.f32 0.0, %v986
        %988 = vmatprep.mubr.f32.mxu0 0.0
        %989 = vmatmul.mubr.f32.gmra.mrb[0].mxu0 %v616
        %v990 = vpop.f32.mrb[0].mxu0
        %v991 = vadd.f32 0.0, %v990
        %v992 = vpop.f32.mrb[0].mxu0
        %v993 = vadd.f32 0.0, %v992
        %994 = vmatprep.mubr.f32.mxu0 0.0
        %995 = vmatmul.mubr.f32.gmra.mrb[0].mxu0 %v619
        %v996 = vpop.f32.mrb[0].mxu0
        %v997 = vadd.f32 0.0, %v996
        %v998 = vpop.f32.mrb[0].mxu0
        %v999 = vadd.f32 0.0, %v998
        %1000 = vmatprep.mubr.f32.mxu0 0.0
        %1001 = vmatmul.mubr.f32.gmra.mrb[0].mxu0 %v622
        %v1002 = vpop.f32.mrb[0].mxu0
        %v1003 = vadd.f32 0.0, %v1002
        %v1004 = vpop.f32.mrb[0].mxu0
        %v1005 = vadd.f32 0.0, %v1004
        %1006 = vmatprep.mubr.f32.mxu0 0.0
        %1007 = vmatmul.mubr.f32.gmra.mrb[0].mxu0 %v625
        %v1008 = vpop.f32.mrb[0].mxu0
        %v1009 = vadd.f32 0.0, %v1008
        %v1010 = vpop.f32.mrb[0].mxu0
        %v1011 = vadd.f32 0.0, %v1010
        %1012 = vmatprep.mubr.f32.mxu0 0.0
        %1013 = vmatmul.mubr.f32.gmra.mrb[0].mxu0 %v628
        %v1014 = vpop.f32.mrb[0].mxu0
        %v1015 = vadd.f32 0.0, %v1014
        %v1016 = vpop.f32.mrb[0].mxu0
        %v1017 = vadd.f32 0.0, %v1016
        %1018 = vmatprep.mubr.f32.mxu0 0.0
        %1019 = vmatmul.mubr.f32.gmra.mrb[0].mxu0 %v631
        %v1020 = vpop.f32.mrb[0].mxu0
        %v1021 = vadd.f32 0.0, %v1020
        %v1022 = vpop.f32.mrb[0].mxu0
        %v1023 = vadd.f32 0.0, %v1022
        %1024 = vmatprep.mubr.f32.mxu0 0.0
        %1025 = vmatmul.mubr.f32.gmra.mrb[0].mxu0 %v634
        %v1026 = vpop.f32.mrb[0].mxu0
        %v1027 = vadd.f32 0.0, %v1026
        %v1028 = vpop.f32.mrb[0].mxu0
        %v1029 = vadd.f32 0.0, %v1028
        %1030 = vmatprep.mubr.f32.mxu0 0.0
        %1031 = vmatmul.mubr.f32.gmra.mrb[0].mxu0 %v637
        %v1032 = vpop.f32.mrb[0].mxu0
        %v1033 = vadd.f32 0.0, %v1032
        %v1034 = vpop.f32.mrb[0].mxu0
        %v1035 = vadd.f32 0.0, %v1034
        %1036 = vmatprep.mubr.f32.mxu0 0.0
        %1037 = vmatmul.mubr.f32.gmra.mrb[0].mxu0 %v640
        %v1038 = vpop.f32.mrb[0].mxu0
        %v1039 = vadd.f32 0.0, %v1038
        %v1040 = vpop.f32.mrb[0].mxu0
        %v1041 = vadd.f32 0.0, %v1040
        %1042 = vmatprep.mubr.f32.mxu0 0.0
        %1043 = vmatmul.mubr.f32.gmra.mrb[0].mxu0 %v643
        %v1044 = vpop.f32.mrb[0].mxu0
        %v1045 = vadd.f32 0.0, %v1044
        %v1046 = vpop.f32.mrb[0].mxu0
        %v1047 = vadd.f32 0.0, %v1046
        %1048 = vmatprep.mubr.f32.mxu0 0.0
        %1049 = vmatmul.mubr.f32.gmra.mrb[0].mxu0 %v646
        %v1050 = vpop.f32.mrb[0].mxu0
        %v1051 = vadd.f32 0.0, %v1050
        %v1052 = vpop.f32.mrb[0].mxu0
        %v1053 = vadd.f32 0.0, %v1052
        %1054 = vmatprep.mubr.f32.mxu0 0.0
        %1055 = vmatmul.mubr.f32.gmra.mrb[0].mxu0 %v649
        %v1056 = vpop.f32.mrb[0].mxu0
        %v1057 = vadd.f32 0.0, %v1056
        %v1058 = vpop.f32.mrb[0].mxu0
        %v1059 = vadd.f32 0.0, %v1058
        %1060 = vmatprep.mubr.f32.mxu0 0.0
        %1061 = vmatmul.mubr.f32.gmra.mrb[0].mxu0 %v652
        %v1062 = vpop.f32.mrb[0].mxu0
        %v1063 = vadd.f32 0.0, %v1062
        %v1064 = vpop.f32.mrb[0].mxu0
        %v1065 = vadd.f32 0.0, %v1064
        %1066 = vmatprep.mubr.f32.mxu0 0.0
        %1067 = vmatmul.mubr.f32.gmra.mrb[0].mxu0 %v655
        %v1068 = vpop.f32.mrb[0].mxu0
        %v1069 = vadd.f32 0.0, %v1068
        %v1070 = vpop.f32.mrb[0].mxu0
        %v1071 = vadd.f32 0.0, %v1070
        %1072 = vmatprep.mubr.f32.mxu0 0.0
        %1073 = vmatmul.mubr.f32.gmra.mrb[0].mxu0 %v658
        %v1074 = vpop.f32.mrb[0].mxu0
        %v1075 = vadd.f32 0.0, %v1074
        %v1076 = vpop.f32.mrb[0].mxu0
        %v1077 = vadd.f32 0.0, %v1076
        %1078 = vmatprep.mubr.f32.mxu0 0.0
        %1079 = vmatmul.mubr.f32.gmra.mrb[0].mxu0 %v661
        %v1080 = vpop.f32.mrb[0].mxu0
        %v1081 = vadd.f32 0.0, %v1080
        %v1082 = vpop.f32.mrb[0].mxu0
        %v1083 = vadd.f32 0.0, %v1082
        %1084 = vmatprep.mubr.f32.mxu0 0.0
        %1085 = vmatmul.mubr.f32.gmra.mrb[0].mxu0 %v664
        %v1086 = vpop.f32.mrb[0].mxu0
        %v1087 = vadd.f32 0.0, %v1086
        %v1088 = vpop.f32.mrb[0].mxu0
        %v1089 = vadd.f32 0.0, %v1088
        %1090 = vmatprep.mubr.f32.mxu0 0.0
        %1091 = vmatmul.mubr.f32.gmra.mrb[0].mxu0 %v667
        %v1092 = vpop.f32.mrb[0].mxu0
        %v1093 = vadd.f32 0.0, %v1092
        %v1094 = vpop.f32.mrb[0].mxu0
        %v1095 = vadd.f32 0.0, %v1094
        %1096 = vmatprep.mubr.f32.mxu0 0.0
        %1097 = vmatmul.mubr.f32.gmra.mrb[0].mxu0 %v670
        %v1098 = vpop.f32.mrb[0].mxu0
        %v1099 = vadd.f32 0.0, %v1098
        %v1100 = vpop.f32.mrb[0].mxu0
        %v1101 = vadd.f32 0.0, %v1100
        %1102 = vmatprep.mubr.f32.mxu0 0.0
        %1103 = vmatmul.mubr.f32.gmra.mrb[0].mxu0 %v673
        %v1104 = vpop.f32.mrb[0].mxu0
        %v1105 = vadd.f32 0.0, %v1104
        %v1106 = vpop.f32.mrb[0].mxu0
        %v1107 = vadd.f32 0.0, %v1106
        %1108 = vmatprep.mubr.f32.mxu0 0.0
        %1109 = vmatmul.mubr.f32.gmra.mrb[0].mxu0 %v676
        %v1110 = vpop.f32.mrb[0].mxu0
        %v1111 = vadd.f32 0.0, %v1110
        %v1112 = vpop.f32.mrb[0].mxu0
        %v1113 = vadd.f32 0.0, %v1112
        %1114 = vmatprep.mubr.f32.mxu0 0.0
        %1115 = vmatmul.mubr.f32.gmra.mrb[0].mxu0 %v679
        %v1116 = vpop.f32.mrb[0].mxu0
        %v1117 = vadd.f32 0.0, %v1116
        %v1118 = vpop.f32.mrb[0].mxu0
        %v1119 = vadd.f32 0.0, %v1118
        %1120 = vmatprep.mubr.f32.mxu0 0.0
        %1121 = vmatmul.mubr.f32.gmra.mrb[0].mxu0 %v682
        %v1122 = vpop.f32.mrb[0].mxu0
        %v1123 = vadd.f32 0.0, %v1122
        %v1124 = vpop.f32.mrb[0].mxu0
        %v1125 = vadd.f32 0.0, %v1124
        %1126 = vmatprep.mubr.f32.mxu0 0.0
        %1127 = vmatmul.mubr.f32.gmra.mrb[0].mxu0 %v685
        %v1128 = vpop.f32.mrb[0].mxu0
        %v1129 = vadd.f32 0.0, %v1128
        %v1130 = vpop.f32.mrb[0].mxu0
        %v1131 = vadd.f32 0.0, %v1130
        %1132 = vmatprep.mubr.f32.mxu0 0.0
        %1133 = vmatmul.mubr.f32.gmra.mrb[0].mxu0 %v688
        %v1134 = vpop.f32.mrb[0].mxu0
        %v1135 = vadd.f32 0.0, %v1134
        %v1136 = vpop.f32.mrb[0].mxu0
        %v1137 = vadd.f32 0.0, %v1136
        %1138 = vdwg.mxu0
        %1139 = vmatprep.subr.mxu0 0.0
        %1140 = vmatpush1.xpose.msra.mxu0 %v787
        %1141 = vmatprep.subr.mxu0 0.0
        %1142 = vmatpush1.xpose.msra.mxu0 %v790
        %1143 = vmatprep.subr.mxu0 0.0
        %1144 = vmatpush1.xpose.msra.mxu0 %v793
        %1145 = vmatprep.subr.mxu0 0.0
        %1146 = vmatpush1.xpose.msra.mxu0 %v796
        %1147 = vmatprep.subr.mxu0 0.0
        %1148 = vmatpush1.xpose.msra.mxu0 %v799
        %1149 = vmatprep.subr.mxu0 0.0
        %1150 = vmatpush1.xpose.msra.mxu0 %v802
        %1151 = vmatprep.subr.mxu0 0.0
        %1152 = vmatpush1.xpose.msra.mxu0 %v805
        %1153 = vmatprep.subr.mxu0 0.0
        %1154 = vmatpush1.xpose.msra.mxu0 %v808
        %1155 = vmatprep.subr.mxu0 0.0
        %1156 = vmatpush1.xpose.msra.mxu0 %v811
        %1157 = vmatprep.subr.mxu0 0.0
        %1158 = vmatpush1.xpose.msra.mxu0 %v814
        %1159 = vmatprep.subr.mxu0 0.0
        %1160 = vmatpush1.xpose.msra.mxu0 %v817
        %1161 = vmatprep.subr.mxu0 0.0
        %1162 = vmatpush1.xpose.msra.mxu0 %v820
        %1163 = vmatprep.subr.mxu0 0.0
        %1164 = vmatpush1.xpose.msra.mxu0 %v823
        %1165 = vmatprep.subr.mxu0 0.0
        %1166 = vmatpush1.xpose.msra.mxu0 %v826
        %1167 = vmatprep.subr.mxu0 0.0
        %1168 = vmatpush1.xpose.msra.mxu0 %v829
        %1169 = vmatprep.subr.mxu0 0.0
        %1170 = vmatpush1.xpose.msra.mxu0 %v832
        %1171 = vmatprep.subr.mxu0 0.0
        %1172 = vmatpush1.xpose.msra.mxu0 %v835
        %1173 = vmatprep.subr.mxu0 0.0
        %1174 = vmatpush1.xpose.msra.mxu0 %v838
        %1175 = vmatprep.subr.mxu0 0.0
        %1176 = vmatpush1.xpose.msra.mxu0 %v841
        %1177 = vmatprep.subr.mxu0 0.0
        %1178 = vmatpush1.xpose.msra.mxu0 %v844
        %1179 = vmatprep.subr.mxu0 0.0
        %1180 = vmatpush1.xpose.msra.mxu0 %v847
        %1181 = vmatprep.subr.mxu0 0.0
        %1182 = vmatpush1.xpose.msra.mxu0 %v850
        %1183 = vmatprep.subr.mxu0 0.0
        %1184 = vmatpush1.xpose.msra.mxu0 %v853
        %1185 = vmatprep.subr.mxu0 0.0
        %1186 = vmatpush1.xpose.msra.mxu0 %v856
        %1187 = vmatprep.subr.mxu0 0.0
        %1188 = vmatpush1.xpose.msra.mxu0 %v859
        %1189 = vmatprep.subr.mxu0 0.0
        %1190 = vmatpush1.xpose.msra.mxu0 %v862
        %1191 = vmatprep.subr.mxu0 0.0
        %1192 = vmatpush1.xpose.msra.mxu0 %v865
        %1193 = vmatprep.subr.mxu0 0.0
        %1194 = vmatpush1.xpose.msra.mxu0 %v868
        %1195 = vmatprep.subr.mxu0 0.0
        %1196 = vmatpush1.xpose.msra.mxu0 %v871
        %1197 = vmatprep.subr.mxu0 0.0
        %1198 = vmatpush1.xpose.msra.mxu0 %v874
        %1199 = vmatprep.subr.mxu0 0.0
        %1200 = vmatpush1.xpose.msra.mxu0 %v877
        %1201 = vmatprep.subr.mxu0 0.0
        %1202 = vmatpush1.xpose.msra.mxu0 %v880
        %1203 = vmatprep.mubr.f32.mxu0 0.0
        %1204 = vmatmul.mubr.f32.gmra.mrb[0].mxu0 %v595
        %v1205 = vpop.f32.mrb[0].mxu0
        %v1206 = vadd.f32 0.0, %v1205
        %v1207 = vpop.f32.mrb[0].mxu0
        %v1208 = vadd.f32 0.0, %v1207
        %1209 = vmatprep.mubr.f32.mxu0 0.0
        %1210 = vmatmul.mubr.f32.gmra.mrb[0].mxu0 %v598
        %v1211 = vpop.f32.mrb[0].mxu0
        %v1212 = vadd.f32 0.0, %v1211
        %v1213 = vpop.f32.mrb[0].mxu0
        %v1214 = vadd.f32 0.0, %v1213
        %1215 = vmatprep.mubr.f32.mxu0 0.0
        %1216 = vmatmul.mubr.f32.gmra.mrb[0].mxu0 %v601
        %v1217 = vpop.f32.mrb[0].mxu0
        %v1218 = vadd.f32 0.0, %v1217
        %v1219 = vpop.f32.mrb[0].mxu0
        %v1220 = vadd.f32 0.0, %v1219
        %1221 = vmatprep.mubr.f32.mxu0 0.0
        %1222 = vmatmul.mubr.f32.gmra.mrb[0].mxu0 %v604
        %v1223 = vpop.f32.mrb[0].mxu0
        %v1224 = vadd.f32 0.0, %v1223
        %v1225 = vpop.f32.mrb[0].mxu0
        %v1226 = vadd.f32 0.0, %v1225
        %1227 = vmatprep.mubr.f32.mxu0 0.0
        %1228 = vmatmul.mubr.f32.gmra.mrb[0].mxu0 %v607
        %v1229 = vpop.f32.mrb[0].mxu0
        %v1230 = vadd.f32 0.0, %v1229
        %v1231 = vpop.f32.mrb[0].mxu0
        %v1232 = vadd.f32 0.0, %v1231
        %1233 = vmatprep.mubr.f32.mxu0 0.0
        %1234 = vmatmul.mubr.f32.gmra.mrb[0].mxu0 %v610
        %v1235 = vpop.f32.mrb[0].mxu0
        %v1236 = vadd.f32 0.0, %v1235
        %v1237 = vpop.f32.mrb[0].mxu0
        %v1238 = vadd.f32 0.0, %v1237
        %1239 = vmatprep.mubr.f32.mxu0 0.0
        %1240 = vmatmul.mubr.f32.gmra.mrb[0].mxu0 %v613
        %v1241 = vpop.f32.mrb[0].mxu0
        %v1242 = vadd.f32 0.0, %v1241
        %v1243 = vpop.f32.mrb[0].mxu0
        %v1244 = vadd.f32 0.0, %v1243
        %1245 = vmatprep.mubr.f32.mxu0 0.0
        %1246 = vmatmul.mubr.f32.gmra.mrb[0].mxu0 %v616
        %v1247 = vpop.f32.mrb[0].mxu0
        %v1248 = vadd.f32 0.0, %v1247
        %v1249 = vpop.f32.mrb[0].mxu0
        %v1250 = vadd.f32 0.0, %v1249
        %1251 = vmatprep.mubr.f32.mxu0 0.0
        %1252 = vmatmul.mubr.f32.gmra.mrb[0].mxu0 %v619
        %v1253 = vpop.f32.mrb[0].mxu0
        %v1254 = vadd.f32 0.0, %v1253
        %v1255 = vpop.f32.mrb[0].mxu0
        %v1256 = vadd.f32 0.0, %v1255
        %1257 = vmatprep.mubr.f32.mxu0 0.0
        %1258 = vmatmul.mubr.f32.gmra.mrb[0].mxu0 %v622
        %v1259 = vpop.f32.mrb[0].mxu0
        %v1260 = vadd.f32 0.0, %v1259
        %v1261 = vpop.f32.mrb[0].mxu0
        %v1262 = vadd.f32 0.0, %v1261
        %1263 = vmatprep.mubr.f32.mxu0 0.0
        %1264 = vmatmul.mubr.f32.gmra.mrb[0].mxu0 %v625
        %v1265 = vpop.f32.mrb[0].mxu0
        %v1266 = vadd.f32 0.0, %v1265
        %v1267 = vpop.f32.mrb[0].mxu0
        %v1268 = vadd.f32 0.0, %v1267
        %1269 = vmatprep.mubr.f32.mxu0 0.0
        %1270 = vmatmul.mubr.f32.gmra.mrb[0].mxu0 %v628
        %v1271 = vpop.f32.mrb[0].mxu0
        %v1272 = vadd.f32 0.0, %v1271
        %v1273 = vpop.f32.mrb[0].mxu0
        %v1274 = vadd.f32 0.0, %v1273
        %1275 = vmatprep.mubr.f32.mxu0 0.0
        %1276 = vmatmul.mubr.f32.gmra.mrb[0].mxu0 %v631
        %v1277 = vpop.f32.mrb[0].mxu0
        %v1278 = vadd.f32 0.0, %v1277
        %v1279 = vpop.f32.mrb[0].mxu0
        %v1280 = vadd.f32 0.0, %v1279
        %1281 = vmatprep.mubr.f32.mxu0 0.0
        %1282 = vmatmul.mubr.f32.gmra.mrb[0].mxu0 %v634
        %v1283 = vpop.f32.mrb[0].mxu0
        %v1284 = vadd.f32 0.0, %v1283
        %v1285 = vpop.f32.mrb[0].mxu0
        %v1286 = vadd.f32 0.0, %v1285
        %1287 = vmatprep.mubr.f32.mxu0 0.0
        %1288 = vmatmul.mubr.f32.gmra.mrb[0].mxu0 %v637
        %v1289 = vpop.f32.mrb[0].mxu0
        %v1290 = vadd.f32 0.0, %v1289
        %v1291 = vpop.f32.mrb[0].mxu0
        %v1292 = vadd.f32 0.0, %v1291
        %1293 = vmatprep.mubr.f32.mxu0 0.0
        %1294 = vmatmul.mubr.f32.gmra.mrb[0].mxu0 %v640
        %v1295 = vpop.f32.mrb[0].mxu0
        %v1296 = vadd.f32 0.0, %v1295
        %v1297 = vpop.f32.mrb[0].mxu0
        %v1298 = vadd.f32 0.0, %v1297
        %1299 = vmatprep.mubr.f32.mxu0 0.0
        %1300 = vmatmul.mubr.f32.gmra.mrb[0].mxu0 %v643
        %v1301 = vpop.f32.mrb[0].mxu0
        %v1302 = vadd.f32 0.0, %v1301
        %v1303 = vpop.f32.mrb[0].mxu0
        %v1304 = vadd.f32 0.0, %v1303
        %1305 = vmatprep.mubr.f32.mxu0 0.0
        %1306 = vmatmul.mubr.f32.gmra.mrb[0].mxu0 %v646
        %v1307 = vpop.f32.mrb[0].mxu0
        %v1308 = vadd.f32 0.0, %v1307
        %v1309 = vpop.f32.mrb[0].mxu0
        %v1310 = vadd.f32 0.0, %v1309
        %1311 = vmatprep.mubr.f32.mxu0 0.0
        %1312 = vmatmul.mubr.f32.gmra.mrb[0].mxu0 %v649
        %v1313 = vpop.f32.mrb[0].mxu0
        %v1314 = vadd.f32 0.0, %v1313
        %v1315 = vpop.f32.mrb[0].mxu0
        %v1316 = vadd.f32 0.0, %v1315
        %1317 = vmatprep.mubr.f32.mxu0 0.0
        %1318 = vmatmul.mubr.f32.gmra.mrb[0].mxu0 %v652
        %v1319 = vpop.f32.mrb[0].mxu0
        %v1320 = vadd.f32 0.0, %v1319
        %v1321 = vpop.f32.mrb[0].mxu0
        %v1322 = vadd.f32 0.0, %v1321
        %1323 = vmatprep.mubr.f32.mxu0 0.0
        %1324 = vmatmul.mubr.f32.gmra.mrb[0].mxu0 %v655
        %v1325 = vpop.f32.mrb[0].mxu0
        %v1326 = vadd.f32 0.0, %v1325
        %v1327 = vpop.f32.mrb[0].mxu0
        %v1328 = vadd.f32 0.0, %v1327
        %1329 = vmatprep.mubr.f32.mxu0 0.0
        %1330 = vmatmul.mubr.f32.gmra.mrb[0].mxu0 %v658
        %v1331 = vpop.f32.mrb[0].mxu0
        %v1332 = vadd.f32 0.0, %v1331
        %v1333 = vpop.f32.mrb[0].mxu0
        %v1334 = vadd.f32 0.0, %v1333
        %1335 = vmatprep.mubr.f32.mxu0 0.0
        %1336 = vmatmul.mubr.f32.gmra.mrb[0].mxu0 %v661
        %v1337 = vpop.f32.mrb[0].mxu0
        %v1338 = vadd.f32 0.0, %v1337
        %v1339 = vpop.f32.mrb[0].mxu0
        %v1340 = vadd.f32 0.0, %v1339
        %1341 = vmatprep.mubr.f32.mxu0 0.0
        %1342 = vmatmul.mubr.f32.gmra.mrb[0].mxu0 %v664
        %v1343 = vpop.f32.mrb[0].mxu0
        %v1344 = vadd.f32 0.0, %v1343
        %v1345 = vpop.f32.mrb[0].mxu0
        %v1346 = vadd.f32 0.0, %v1345
        %1347 = vmatprep.mubr.f32.mxu0 0.0
        %1348 = vmatmul.mubr.f32.gmra.mrb[0].mxu0 %v667
        %v1349 = vpop.f32.mrb[0].mxu0
        %v1350 = vadd.f32 0.0, %v1349
        %v1351 = vpop.f32.mrb[0].mxu0
        %v1352 = vadd.f32 0.0, %v1351
        %1353 = vmatprep.mubr.f32.mxu0 0.0
        %1354 = vmatmul.mubr.f32.gmra.mrb[0].mxu0 %v670
        %v1355 = vpop.f32.mrb[0].mxu0
        %v1356 = vadd.f32 0.0, %v1355
        %v1357 = vpop.f32.mrb[0].mxu0
        %v1358 = vadd.f32 0.0, %v1357
        %1359 = vmatprep.mubr.f32.mxu0 0.0
        %1360 = vmatmul.mubr.f32.gmra.mrb[0].mxu0 %v673
        %v1361 = vpop.f32.mrb[0].mxu0
        %v1362 = vadd.f32 0.0, %v1361
        %v1363 = vpop.f32.mrb[0].mxu0
        %v1364 = vadd.f32 0.0, %v1363
        %1365 = vmatprep.mubr.f32.mxu0 0.0
        %1366 = vmatmul.mubr.f32.gmra.mrb[0].mxu0 %v676
        %v1367 = vpop.f32.mrb[0].mxu0
        %v1368 = vadd.f32 0.0, %v1367
        %v1369 = vpop.f32.mrb[0].mxu0
        %v1370 = vadd.f32 0.0, %v1369
        %1371 = vmatprep.mubr.f32.mxu0 0.0
        %1372 = vmatmul.mubr.f32.gmra.mrb[0].mxu0 %v679
        %v1373 = vpop.f32.mrb[0].mxu0
        %v1374 = vadd.f32 0.0, %v1373
        %v1375 = vpop.f32.mrb[0].mxu0
        %v1376 = vadd.f32 0.0, %v1375
        %1377 = vmatprep.mubr.f32.mxu0 0.0
        %1378 = vmatmul.mubr.f32.gmra.mrb[0].mxu0 %v682
        %v1379 = vpop.f32.mrb[0].mxu0
        %v1380 = vadd.f32 0.0, %v1379
        %v1381 = vpop.f32.mrb[0].mxu0
        %v1382 = vadd.f32 0.0, %v1381
        %1383 = vmatprep.mubr.f32.mxu0 0.0
        %1384 = vmatmul.mubr.f32.gmra.mrb[0].mxu0 %v685
        %v1385 = vpop.f32.mrb[0].mxu0
        %v1386 = vadd.f32 0.0, %v1385
        %v1387 = vpop.f32.mrb[0].mxu0
        %v1388 = vadd.f32 0.0, %v1387
        %1389 = vmatprep.mubr.f32.mxu0 0.0
        %1390 = vmatmul.mubr.f32.gmra.mrb[0].mxu0 %v688
        %v1391 = vpop.f32.mrb[0].mxu0
        %v1392 = vadd.f32 0.0, %v1391
        %v1393 = vpop.f32.mrb[0].mxu0
        %v1394 = vadd.f32 0.0, %v1393
        %1395 = vdwg.mxu0
        %vm1396 = vcmask 130048
        %v1398 = vsel %vm1396, %v401, 0
        %v1401 = vsel %vm1396, %v402, 0
        %v1404 = vsel %vm1396, %v403, 0
        %v1407 = vsel %vm1396, %v404, 0
        %v1410 = vsel %vm1396, %v405, 0
        %v1413 = vsel %vm1396, %v406, 0
        %v1416 = vsel %vm1396, %v407, 0
        %v1419 = vsel %vm1396, %v408, 0
        %v1422 = vsel %vm1396, %v409, 0
        %v1425 = vsel %vm1396, %v410, 0
        %v1428 = vsel %vm1396, %v411, 0
        %v1431 = vsel %vm1396, %v412, 0
        %v1434 = vsel %vm1396, %v413, 0
        %v1437 = vsel %vm1396, %v414, 0
        %v1440 = vsel %vm1396, %v415, 0
        %v1443 = vsel %vm1396, %v416, 0
        %v1446 = vsel %vm1396, %v417, 0
        %v1449 = vsel %vm1396, %v418, 0
        %v1452 = vsel %vm1396, %v419, 0
        %v1455 = vsel %vm1396, %v420, 0
        %v1458 = vsel %vm1396, %v421, 0
        %v1461 = vsel %vm1396, %v422, 0
        %v1464 = vsel %vm1396, %v423, 0
        %v1467 = vsel %vm1396, %v424, 0
        %v1470 = vsel %vm1396, %v425, 0
        %v1473 = vsel %vm1396, %v426, 0
        %v1476 = vsel %vm1396, %v427, 0
        %v1479 = vsel %vm1396, %v428, 0
        %v1482 = vsel %vm1396, %v429, 0
        %v1485 = vsel %vm1396, %v430, 0
        %v1488 = vsel %vm1396, %v431, 0
        %v1491 = vsel %vm1396, %v432, 0
        %v1494 = vsel %vm1396, %v433, 0
        %v1497 = vsel %vm1396, %v434, 0
        %v1500 = vsel %vm1396, %v435, 0
        %v1503 = vsel %vm1396, %v436, 0
        %v1506 = vsel %vm1396, %v437, 0
        %v1509 = vsel %vm1396, %v438, 0
        %v1512 = vsel %vm1396, %v439, 0
        %v1515 = vsel %vm1396, %v440, 0
        %v1518 = vsel %vm1396, %v441, 0
        %v1521 = vsel %vm1396, %v442, 0
        %v1524 = vsel %vm1396, %v443, 0
        %v1527 = vsel %vm1396, %v444, 0
        %v1530 = vsel %vm1396, %v445, 0
        %v1533 = vsel %vm1396, %v446, 0
        %v1536 = vsel %vm1396, %v447, 0
        %v1539 = vsel %vm1396, %v448, 0
        %v1542 = vsel %vm1396, %v449, 0
        %v1545 = vsel %vm1396, %v450, 0
        %v1548 = vsel %vm1396, %v451, 0
        %v1551 = vsel %vm1396, %v452, 0
        %v1554 = vsel %vm1396, %v453, 0
        %v1557 = vsel %vm1396, %v454, 0
        %v1560 = vsel %vm1396, %v455, 0
        %v1563 = vsel %vm1396, %v456, 0
        %v1566 = vsel %vm1396, %v457, 0
        %v1569 = vsel %vm1396, %v458, 0
        %v1572 = vsel %vm1396, %v459, 0
        %v1575 = vsel %vm1396, %v460, 0
        %v1578 = vsel %vm1396, %v461, 0
        %v1581 = vsel %vm1396, %v462, 0
        %v1584 = vsel %vm1396, %v463, 0
        %v1587 = vsel %vm1396, %v464, 0
        %v1590 = vsel %vm1396, %v465, 0
        %v1593 = vsel %vm1396, %v466, 0
        %v1596 = vsel %vm1396, %v467, 0
        %v1599 = vsel %vm1396, %v468, 0
        %v1602 = vsel %vm1396, %v469, 0
        %v1605 = vsel %vm1396, %v470, 0
        %v1608 = vsel %vm1396, %v471, 0
        %v1611 = vsel %vm1396, %v472, 0
        %v1614 = vsel %vm1396, %v473, 0
        %v1617 = vsel %vm1396, %v474, 0
        %v1620 = vsel %vm1396, %v475, 0
        %v1623 = vsel %vm1396, %v476, 0
        %v1626 = vsel %vm1396, %v477, 0
        %v1629 = vsel %vm1396, %v478, 0
        %v1632 = vsel %vm1396, %v479, 0
        %v1635 = vsel %vm1396, %v480, 0
        %v1638 = vsel %vm1396, %v481, 0
        %v1641 = vsel %vm1396, %v482, 0
        %v1644 = vsel %vm1396, %v483, 0
        %v1647 = vsel %vm1396, %v484, 0
        %v1650 = vsel %vm1396, %v485, 0
        %v1653 = vsel %vm1396, %v486, 0
        %v1656 = vsel %vm1396, %v487, 0
        %v1659 = vsel %vm1396, %v488, 0
        %v1662 = vsel %vm1396, %v489, 0
        %v1665 = vsel %vm1396, %v490, 0
        %v1668 = vsel %vm1396, %v491, 0
        %v1671 = vsel %vm1396, %v492, 0
        %v1674 = vsel %vm1396, %v493, 0
        %v1677 = vsel %vm1396, %v494, 0
        %v1680 = vsel %vm1396, %v495, 0
        %v1683 = vsel %vm1396, %v496, 0
        %1685 = vmatprep.subr.mxu0 0.0
        %1686 = vmatpush1.xpose.msra.mxu0 %v1494
        %1687 = vmatprep.subr.mxu0 0.0
        %1688 = vmatpush1.xpose.msra.mxu0 %v1497
        %1689 = vmatprep.subr.mxu0 0.0
        %1690 = vmatpush1.xpose.msra.mxu0 %v1500
        %1691 = vmatprep.subr.mxu0 0.0
        %1692 = vmatpush1.xpose.msra.mxu0 %v1503
        %1693 = vmatprep.subr.mxu0 0.0
        %1694 = vmatpush1.xpose.msra.mxu0 %v1506
        %1695 = vmatprep.subr.mxu0 0.0
        %1696 = vmatpush1.xpose.msra.mxu0 %v1509
        %1697 = vmatprep.subr.mxu0 0.0
        %1698 = vmatpush1.xpose.msra.mxu0 %v1512
        %1699 = vmatprep.subr.mxu0 0.0
        %1700 = vmatpush1.xpose.msra.mxu0 %v1515
        %1701 = vmatprep.subr.mxu0 0.0
        %1702 = vmatpush1.xpose.msra.mxu0 %v1518
        %1703 = vmatprep.subr.mxu0 0.0
        %1704 = vmatpush1.xpose.msra.mxu0 %v1521
        %1705 = vmatprep.subr.mxu0 0.0
        %1706 = vmatpush1.xpose.msra.mxu0 %v1524
        %1707 = vmatprep.subr.mxu0 0.0
        %1708 = vmatpush1.xpose.msra.mxu0 %v1527
        %1709 = vmatprep.subr.mxu0 0.0
        %1710 = vmatpush1.xpose.msra.mxu0 %v1530
        %1711 = vmatprep.subr.mxu0 0.0
        %1712 = vmatpush1.xpose.msra.mxu0 %v1533
        %1713 = vmatprep.subr.mxu0 0.0
        %1714 = vmatpush1.xpose.msra.mxu0 %v1536
        %1715 = vmatprep.subr.mxu0 0.0
        %1716 = vmatpush1.xpose.msra.mxu0 %v1539
        %1717 = vmatprep.subr.mxu0 0.0
        %1718 = vmatpush1.xpose.msra.mxu0 %v1542
        %1719 = vmatprep.subr.mxu0 0.0
        %1720 = vmatpush1.xpose.msra.mxu0 %v1545
        %1721 = vmatprep.subr.mxu0 0.0
        %1722 = vmatpush1.xpose.msra.mxu0 %v1548
        %1723 = vmatprep.subr.mxu0 0.0
        %1724 = vmatpush1.xpose.msra.mxu0 %v1551
        %1725 = vmatprep.subr.mxu0 0.0
        %1726 = vmatpush1.xpose.msra.mxu0 %v1554
        %1727 = vmatprep.subr.mxu0 0.0
        %1728 = vmatpush1.xpose.msra.mxu0 %v1557
        %1729 = vmatprep.subr.mxu0 0.0
        %1730 = vmatpush1.xpose.msra.mxu0 %v1560
        %1731 = vmatprep.subr.mxu0 0.0
        %1732 = vmatpush1.xpose.msra.mxu0 %v1563
        %1733 = vmatprep.subr.mxu0 0.0
        %1734 = vmatpush1.xpose.msra.mxu0 %v1566
        %1735 = vmatprep.subr.mxu0 0.0
        %1736 = vmatpush1.xpose.msra.mxu0 %v1569
        %1737 = vmatprep.subr.mxu0 0.0
        %1738 = vmatpush1.xpose.msra.mxu0 %v1572
        %1739 = vmatprep.subr.mxu0 0.0
        %1740 = vmatpush1.xpose.msra.mxu0 %v1575
        %1741 = vmatprep.subr.mxu0 0.0
        %1742 = vmatpush1.xpose.msra.mxu0 %v1578
        %1743 = vmatprep.subr.mxu0 0.0
        %1744 = vmatpush1.xpose.msra.mxu0 %v1581
        %1745 = vmatprep.subr.mxu0 0.0
        %1746 = vmatpush1.xpose.msra.mxu0 %v1584
        %1747 = vmatprep.subr.mxu0 0.0
        %1748 = vmatpush1.xpose.msra.mxu0 %v1587
        %1749 = vmatprep.mubr.f32.mxu0 0.0
        %1750 = vmatmul.mubr.f32.gmra.mrb[0].mxu0 %v1398
        %v1751 = vpop.f32.mrb[0].mxu0
        %v1752 = vadd.f32 %v949, %v1751
        %v1753 = vpop.f32.mrb[0].mxu0
        %v1754 = vadd.f32 %v951, %v1753
        %1755 = vmatprep.mubr.f32.mxu0 0.0
        %1756 = vmatmul.mubr.f32.gmra.mrb[0].mxu0 %v1401
        %v1757 = vpop.f32.mrb[0].mxu0
        %v1758 = vadd.f32 %v955, %v1757
        %v1759 = vpop.f32.mrb[0].mxu0
        %v1760 = vadd.f32 %v957, %v1759
        %1761 = vmatprep.mubr.f32.mxu0 0.0
        %1762 = vmatmul.mubr.f32.gmra.mrb[0].mxu0 %v1404
        %v1763 = vpop.f32.mrb[0].mxu0
        %v1764 = vadd.f32 %v961, %v1763
        %v1765 = vpop.f32.mrb[0].mxu0
        %v1766 = vadd.f32 %v963, %v1765
        %1767 = vmatprep.mubr.f32.mxu0 0.0
        %1768 = vmatmul.mubr.f32.gmra.mrb[0].mxu0 %v1407
        %v1769 = vpop.f32.mrb[0].mxu0
        %v1770 = vadd.f32 %v967, %v1769
        %v1771 = vpop.f32.mrb[0].mxu0
        %v1772 = vadd.f32 %v969, %v1771
        %1773 = vmatprep.mubr.f32.mxu0 0.0
        %1774 = vmatmul.mubr.f32.gmra.mrb[0].mxu0 %v1410
        %v1775 = vpop.f32.mrb[0].mxu0
        %v1776 = vadd.f32 %v973, %v1775
        %v1777 = vpop.f32.mrb[0].mxu0
        %v1778 = vadd.f32 %v975, %v1777
        %1779 = vmatprep.mubr.f32.mxu0 0.0
        %1780 = vmatmul.mubr.f32.gmra.mrb[0].mxu0 %v1413
        %v1781 = vpop.f32.mrb[0].mxu0
        %v1782 = vadd.f32 %v979, %v1781
        %v1783 = vpop.f32.mrb[0].mxu0
        %v1784 = vadd.f32 %v981, %v1783
        %1785 = vmatprep.mubr.f32.mxu0 0.0
        %1786 = vmatmul.mubr.f32.gmra.mrb[0].mxu0 %v1416
        %v1787 = vpop.f32.mrb[0].mxu0
        %v1788 = vadd.f32 %v985, %v1787
        %v1789 = vpop.f32.mrb[0].mxu0
        %v1790 = vadd.f32 %v987, %v1789
        %1791 = vmatprep.mubr.f32.mxu0 0.0
        %1792 = vmatmul.mubr.f32.gmra.mrb[0].mxu0 %v1419
        %v1793 = vpop.f32.mrb[0].mxu0
        %v1794 = vadd.f32 %v991, %v1793
        %v1795 = vpop.f32.mrb[0].mxu0
        %v1796 = vadd.f32 %v993, %v1795
        %1797 = vmatprep.mubr.f32.mxu0 0.0
        %1798 = vmatmul.mubr.f32.gmra.mrb[0].mxu0 %v1422
        %v1799 = vpop.f32.mrb[0].mxu0
        %v1800 = vadd.f32 %v997, %v1799
        %v1801 = vpop.f32.mrb[0].mxu0
        %v1802 = vadd.f32 %v999, %v1801
        %1803 = vmatprep.mubr.f32.mxu0 0.0
        %1804 = vmatmul.mubr.f32.gmra.mrb[0].mxu0 %v1425
        %v1805 = vpop.f32.mrb[0].mxu0
        %v1806 = vadd.f32 %v1003, %v1805
        %v1807 = vpop.f32.mrb[0].mxu0
        %v1808 = vadd.f32 %v1005, %v1807
        %1809 = vmatprep.mubr.f32.mxu0 0.0
        %1810 = vmatmul.mubr.f32.gmra.mrb[0].mxu0 %v1428
        %v1811 = vpop.f32.mrb[0].mxu0
        %v1812 = vadd.f32 %v1009, %v1811
        %v1813 = vpop.f32.mrb[0].mxu0
        %v1814 = vadd.f32 %v1011, %v1813
        %1815 = vmatprep.mubr.f32.mxu0 0.0
        %1816 = vmatmul.mubr.f32.gmra.mrb[0].mxu0 %v1431
        %v1817 = vpop.f32.mrb[0].mxu0
        %v1818 = vadd.f32 %v1015, %v1817
        %v1819 = vpop.f32.mrb[0].mxu0
        %v1820 = vadd.f32 %v1017, %v1819
        %1821 = vmatprep.mubr.f32.mxu0 0.0
        %1822 = vmatmul.mubr.f32.gmra.mrb[0].mxu0 %v1434
        %v1823 = vpop.f32.mrb[0].mxu0
        %v1824 = vadd.f32 %v1021, %v1823
        %v1825 = vpop.f32.mrb[0].mxu0
        %v1826 = vadd.f32 %v1023, %v1825
        %1827 = vmatprep.mubr.f32.mxu0 0.0
        %1828 = vmatmul.mubr.f32.gmra.mrb[0].mxu0 %v1437
        %v1829 = vpop.f32.mrb[0].mxu0
        %v1830 = vadd.f32 %v1027, %v1829
        %v1831 = vpop.f32.mrb[0].mxu0
        %v1832 = vadd.f32 %v1029, %v1831
        %1833 = vmatprep.mubr.f32.mxu0 0.0
        %1834 = vmatmul.mubr.f32.gmra.mrb[0].mxu0 %v1440
        %v1835 = vpop.f32.mrb[0].mxu0
        %v1836 = vadd.f32 %v1033, %v1835
        %v1837 = vpop.f32.mrb[0].mxu0
        %v1838 = vadd.f32 %v1035, %v1837
        %1839 = vmatprep.mubr.f32.mxu0 0.0
        %1840 = vmatmul.mubr.f32.gmra.mrb[0].mxu0 %v1443
        %v1841 = vpop.f32.mrb[0].mxu0
        %v1842 = vadd.f32 %v1039, %v1841
        %v1843 = vpop.f32.mrb[0].mxu0
        %v1844 = vadd.f32 %v1041, %v1843
        %1845 = vmatprep.mubr.f32.mxu0 0.0
        %1846 = vmatmul.mubr.f32.gmra.mrb[0].mxu0 %v1446
        %v1847 = vpop.f32.mrb[0].mxu0
        %v1848 = vadd.f32 %v1045, %v1847
        %v1849 = vpop.f32.mrb[0].mxu0
        %v1850 = vadd.f32 %v1047, %v1849
        %1851 = vmatprep.mubr.f32.mxu0 0.0
        %1852 = vmatmul.mubr.f32.gmra.mrb[0].mxu0 %v1449
        %v1853 = vpop.f32.mrb[0].mxu0
        %v1854 = vadd.f32 %v1051, %v1853
        %v1855 = vpop.f32.mrb[0].mxu0
        %v1856 = vadd.f32 %v1053, %v1855
        %1857 = vmatprep.mubr.f32.mxu0 0.0
        %1858 = vmatmul.mubr.f32.gmra.mrb[0].mxu0 %v1452
        %v1859 = vpop.f32.mrb[0].mxu0
        %v1860 = vadd.f32 %v1057, %v1859
        %v1861 = vpop.f32.mrb[0].mxu0
        %v1862 = vadd.f32 %v1059, %v1861
        %1863 = vmatprep.mubr.f32.mxu0 0.0
        %1864 = vmatmul.mubr.f32.gmra.mrb[0].mxu0 %v1455
        %v1865 = vpop.f32.mrb[0].mxu0
        %v1866 = vadd.f32 %v1063, %v1865
        %v1867 = vpop.f32.mrb[0].mxu0
        %v1868 = vadd.f32 %v1065, %v1867
        %1869 = vmatprep.mubr.f32.mxu0 0.0
        %1870 = vmatmul.mubr.f32.gmra.mrb[0].mxu0 %v1458
        %v1871 = vpop.f32.mrb[0].mxu0
        %v1872 = vadd.f32 %v1069, %v1871
        %v1873 = vpop.f32.mrb[0].mxu0
        %v1874 = vadd.f32 %v1071, %v1873
        %1875 = vmatprep.mubr.f32.mxu0 0.0
        %1876 = vmatmul.mubr.f32.gmra.mrb[0].mxu0 %v1461
        %v1877 = vpop.f32.mrb[0].mxu0
        %v1878 = vadd.f32 %v1075, %v1877
        %v1879 = vpop.f32.mrb[0].mxu0
        %v1880 = vadd.f32 %v1077, %v1879
        %1881 = vmatprep.mubr.f32.mxu0 0.0
        %1882 = vmatmul.mubr.f32.gmra.mrb[0].mxu0 %v1464
        %v1883 = vpop.f32.mrb[0].mxu0
        %v1884 = vadd.f32 %v1081, %v1883
        %v1885 = vpop.f32.mrb[0].mxu0
        %v1886 = vadd.f32 %v1083, %v1885
        %1887 = vmatprep.mubr.f32.mxu0 0.0
        %1888 = vmatmul.mubr.f32.gmra.mrb[0].mxu0 %v1467
        %v1889 = vpop.f32.mrb[0].mxu0
        %v1890 = vadd.f32 %v1087, %v1889
        %v1891 = vpop.f32.mrb[0].mxu0
        %v1892 = vadd.f32 %v1089, %v1891
        %1893 = vmatprep.mubr.f32.mxu0 0.0
        %1894 = vmatmul.mubr.f32.gmra.mrb[0].mxu0 %v1470
        %v1895 = vpop.f32.mrb[0].mxu0
        %v1896 = vadd.f32 %v1093, %v1895
        %v1897 = vpop.f32.mrb[0].mxu0
        %v1898 = vadd.f32 %v1095, %v1897
        %1899 = vmatprep.mubr.f32.mxu0 0.0
        %1900 = vmatmul.mubr.f32.gmra.mrb[0].mxu0 %v1473
        %v1901 = vpop.f32.mrb[0].mxu0
        %v1902 = vadd.f32 %v1099, %v1901
        %v1903 = vpop.f32.mrb[0].mxu0
        %v1904 = vadd.f32 %v1101, %v1903
        %1905 = vmatprep.mubr.f32.mxu0 0.0
        %1906 = vmatmul.mubr.f32.gmra.mrb[0].mxu0 %v1476
        %v1907 = vpop.f32.mrb[0].mxu0
        %v1908 = vadd.f32 %v1105, %v1907
        %v1909 = vpop.f32.mrb[0].mxu0
        %v1910 = vadd.f32 %v1107, %v1909
        %1911 = vmatprep.mubr.f32.mxu0 0.0
        %1912 = vmatmul.mubr.f32.gmra.mrb[0].mxu0 %v1479
        %v1913 = vpop.f32.mrb[0].mxu0
        %v1914 = vadd.f32 %v1111, %v1913
        %v1915 = vpop.f32.mrb[0].mxu0
        %v1916 = vadd.f32 %v1113, %v1915
        %1917 = vmatprep.mubr.f32.mxu0 0.0
        %1918 = vmatmul.mubr.f32.gmra.mrb[0].mxu0 %v1482
        %v1919 = vpop.f32.mrb[0].mxu0
        %v1920 = vadd.f32 %v1117, %v1919
        %v1921 = vpop.f32.mrb[0].mxu0
        %v1922 = vadd.f32 %v1119, %v1921
        %1923 = vmatprep.mubr.f32.mxu0 0.0
        %1924 = vmatmul.mubr.f32.gmra.mrb[0].mxu0 %v1485
        %v1925 = vpop.f32.mrb[0].mxu0
        %v1926 = vadd.f32 %v1123, %v1925
        %v1927 = vpop.f32.mrb[0].mxu0
        %v1928 = vadd.f32 %v1125, %v1927
        %1929 = vmatprep.mubr.f32.mxu0 0.0
        %1930 = vmatmul.mubr.f32.gmra.mrb[0].mxu0 %v1488
        %v1931 = vpop.f32.mrb[0].mxu0
        %v1932 = vadd.f32 %v1129, %v1931
        %v1933 = vpop.f32.mrb[0].mxu0
        %v1934 = vadd.f32 %v1131, %v1933
        %1935 = vmatprep.mubr.f32.mxu0 0.0
        %1936 = vmatmul.mubr.f32.gmra.mrb[0].mxu0 %v1491
        %v1937 = vpop.f32.mrb[0].mxu0
        %v1938 = vadd.f32 %v1135, %v1937
        %v1939 = vpop.f32.mrb[0].mxu0
        %v1940 = vadd.f32 %v1137, %v1939
        %1941 = vdwg.mxu0
        %1942 = vmatprep.subr.mxu0 0.0
        %1943 = vmatpush1.xpose.msra.mxu0 %v1590
        %1944 = vmatprep.subr.mxu0 0.0
        %1945 = vmatpush1.xpose.msra.mxu0 %v1593
        %1946 = vmatprep.subr.mxu0 0.0
        %1947 = vmatpush1.xpose.msra.mxu0 %v1596
        %1948 = vmatprep.subr.mxu0 0.0
        %1949 = vmatpush1.xpose.msra.mxu0 %v1599
        %1950 = vmatprep.subr.mxu0 0.0
        %1951 = vmatpush1.xpose.msra.mxu0 %v1602
        %1952 = vmatprep.subr.mxu0 0.0
        %1953 = vmatpush1.xpose.msra.mxu0 %v1605
        %1954 = vmatprep.subr.mxu0 0.0
        %1955 = vmatpush1.xpose.msra.mxu0 %v1608
        %1956 = vmatprep.subr.mxu0 0.0
        %1957 = vmatpush1.xpose.msra.mxu0 %v1611
        %1958 = vmatprep.subr.mxu0 0.0
        %1959 = vmatpush1.xpose.msra.mxu0 %v1614
        %1960 = vmatprep.subr.mxu0 0.0
        %1961 = vmatpush1.xpose.msra.mxu0 %v1617
        %1962 = vmatprep.subr.mxu0 0.0
        %1963 = vmatpush1.xpose.msra.mxu0 %v1620
        %1964 = vmatprep.subr.mxu0 0.0
        %1965 = vmatpush1.xpose.msra.mxu0 %v1623
        %1966 = vmatprep.subr.mxu0 0.0
        %1967 = vmatpush1.xpose.msra.mxu0 %v1626
        %1968 = vmatprep.subr.mxu0 0.0
        %1969 = vmatpush1.xpose.msra.mxu0 %v1629
        %1970 = vmatprep.subr.mxu0 0.0
        %1971 = vmatpush1.xpose.msra.mxu0 %v1632
        %1972 = vmatprep.subr.mxu0 0.0
        %1973 = vmatpush1.xpose.msra.mxu0 %v1635
        %1974 = vmatprep.subr.mxu0 0.0
        %1975 = vmatpush1.xpose.msra.mxu0 %v1638
        %1976 = vmatprep.subr.mxu0 0.0
        %1977 = vmatpush1.xpose.msra.mxu0 %v1641
        %1978 = vmatprep.subr.mxu0 0.0
        %1979 = vmatpush1.xpose.msra.mxu0 %v1644
        %1980 = vmatprep.subr.mxu0 0.0
        %1981 = vmatpush1.xpose.msra.mxu0 %v1647
        %1982 = vmatprep.subr.mxu0 0.0
        %1983 = vmatpush1.xpose.msra.mxu0 %v1650
        %1984 = vmatprep.subr.mxu0 0.0
        %1985 = vmatpush1.xpose.msra.mxu0 %v1653
        %1986 = vmatprep.subr.mxu0 0.0
        %1987 = vmatpush1.xpose.msra.mxu0 %v1656
        %1988 = vmatprep.subr.mxu0 0.0
        %1989 = vmatpush1.xpose.msra.mxu0 %v1659
        %1990 = vmatprep.subr.mxu0 0.0
        %1991 = vmatpush1.xpose.msra.mxu0 %v1662
        %1992 = vmatprep.subr.mxu0 0.0
        %1993 = vmatpush1.xpose.msra.mxu0 %v1665
        %1994 = vmatprep.subr.mxu0 0.0
        %1995 = vmatpush1.xpose.msra.mxu0 %v1668
        %1996 = vmatprep.subr.mxu0 0.0
        %1997 = vmatpush1.xpose.msra.mxu0 %v1671
        %1998 = vmatprep.subr.mxu0 0.0
        %1999 = vmatpush1.xpose.msra.mxu0 %v1674
        %2000 = vmatprep.subr.mxu0 0.0
        %2001 = vmatpush1.xpose.msra.mxu0 %v1677
        %2002 = vmatprep.subr.mxu0 0.0
        %2003 = vmatpush1.xpose.msra.mxu0 %v1680
        %2004 = vmatprep.subr.mxu0 0.0
        %2005 = vmatpush1.xpose.msra.mxu0 %v1683
        %2006 = vmatprep.mubr.f32.mxu0 0.0
        %2007 = vmatmul.mubr.f32.gmra.mrb[0].mxu0 %v1398
        %v2008 = vpop.f32.mrb[0].mxu0
        %v2009 = vadd.f32 %v1206, %v2008
        %v2010 = vpop.f32.mrb[0].mxu0
        %v2011 = vadd.f32 %v1208, %v2010
        %2012 = vmatprep.mubr.f32.mxu0 0.0
        %2013 = vmatmul.mubr.f32.gmra.mrb[0].mxu0 %v1401
        %v2014 = vpop.f32.mrb[0].mxu0
        %v2015 = vadd.f32 %v1212, %v2014
        %v2016 = vpop.f32.mrb[0].mxu0
        %v2017 = vadd.f32 %v1214, %v2016
        %2018 = vmatprep.mubr.f32.mxu0 0.0
        %2019 = vmatmul.mubr.f32.gmra.mrb[0].mxu0 %v1404
        %v2020 = vpop.f32.mrb[0].mxu0
        %v2021 = vadd.f32 %v1218, %v2020
        %v2022 = vpop.f32.mrb[0].mxu0
        %v2023 = vadd.f32 %v1220, %v2022
        %2024 = vmatprep.mubr.f32.mxu0 0.0
        %2025 = vmatmul.mubr.f32.gmra.mrb[0].mxu0 %v1407
        %v2026 = vpop.f32.mrb[0].mxu0
        %v2027 = vadd.f32 %v1224, %v2026
        %v2028 = vpop.f32.mrb[0].mxu0
        %v2029 = vadd.f32 %v1226, %v2028
        %2030 = vmatprep.mubr.f32.mxu0 0.0
        %2031 = vmatmul.mubr.f32.gmra.mrb[0].mxu0 %v1410
        %v2032 = vpop.f32.mrb[0].mxu0
        %v2033 = vadd.f32 %v1230, %v2032
        %v2034 = vpop.f32.mrb[0].mxu0
        %v2035 = vadd.f32 %v1232, %v2034
        %2036 = vmatprep.mubr.f32.mxu0 0.0
        %2037 = vmatmul.mubr.f32.gmra.mrb[0].mxu0 %v1413
        %v2038 = vpop.f32.mrb[0].mxu0
        %v2039 = vadd.f32 %v1236, %v2038
        %v2040 = vpop.f32.mrb[0].mxu0
        %v2041 = vadd.f32 %v1238, %v2040
        %2042 = vmatprep.mubr.f32.mxu0 0.0
        %2043 = vmatmul.mubr.f32.gmra.mrb[0].mxu0 %v1416
        %v2044 = vpop.f32.mrb[0].mxu0
        %v2045 = vadd.f32 %v1242, %v2044
        %v2046 = vpop.f32.mrb[0].mxu0
        %v2047 = vadd.f32 %v1244, %v2046
        %2048 = vmatprep.mubr.f32.mxu0 0.0
        %2049 = vmatmul.mubr.f32.gmra.mrb[0].mxu0 %v1419
        %v2050 = vpop.f32.mrb[0].mxu0
        %v2051 = vadd.f32 %v1248, %v2050
        %v2052 = vpop.f32.mrb[0].mxu0
        %v2053 = vadd.f32 %v1250, %v2052
        %2054 = vmatprep.mubr.f32.mxu0 0.0
        %2055 = vmatmul.mubr.f32.gmra.mrb[0].mxu0 %v1422
        %v2056 = vpop.f32.mrb[0].mxu0
        %v2057 = vadd.f32 %v1254, %v2056
        %v2058 = vpop.f32.mrb[0].mxu0
        %v2059 = vadd.f32 %v1256, %v2058
        %2060 = vmatprep.mubr.f32.mxu0 0.0
        %2061 = vmatmul.mubr.f32.gmra.mrb[0].mxu0 %v1425
        %v2062 = vpop.f32.mrb[0].mxu0
        %v2063 = vadd.f32 %v1260, %v2062
        %v2064 = vpop.f32.mrb[0].mxu0
        %v2065 = vadd.f32 %v1262, %v2064
        %2066 = vmatprep.mubr.f32.mxu0 0.0
        %2067 = vmatmul.mubr.f32.gmra.mrb[0].mxu0 %v1428
        %v2068 = vpop.f32.mrb[0].mxu0
        %v2069 = vadd.f32 %v1266, %v2068
        %v2070 = vpop.f32.mrb[0].mxu0
        %v2071 = vadd.f32 %v1268, %v2070
        %2072 = vmatprep.mubr.f32.mxu0 0.0
        %2073 = vmatmul.mubr.f32.gmra.mrb[0].mxu0 %v1431
        %v2074 = vpop.f32.mrb[0].mxu0
        %v2075 = vadd.f32 %v1272, %v2074
        %v2076 = vpop.f32.mrb[0].mxu0
        %v2077 = vadd.f32 %v1274, %v2076
        %2078 = vmatprep.mubr.f32.mxu0 0.0
        %2079 = vmatmul.mubr.f32.gmra.mrb[0].mxu0 %v1434
        %v2080 = vpop.f32.mrb[0].mxu0
        %v2081 = vadd.f32 %v1278, %v2080
        %v2082 = vpop.f32.mrb[0].mxu0
        %v2083 = vadd.f32 %v1280, %v2082
        %2084 = vmatprep.mubr.f32.mxu0 0.0
        %2085 = vmatmul.mubr.f32.gmra.mrb[0].mxu0 %v1437
        %v2086 = vpop.f32.mrb[0].mxu0
        %v2087 = vadd.f32 %v1284, %v2086
        %v2088 = vpop.f32.mrb[0].mxu0
        %v2089 = vadd.f32 %v1286, %v2088
        %2090 = vmatprep.mubr.f32.mxu0 0.0
        %2091 = vmatmul.mubr.f32.gmra.mrb[0].mxu0 %v1440
        %v2092 = vpop.f32.mrb[0].mxu0
        %v2093 = vadd.f32 %v1290, %v2092
        %v2094 = vpop.f32.mrb[0].mxu0
        %v2095 = vadd.f32 %v1292, %v2094
        %2096 = vmatprep.mubr.f32.mxu0 0.0
        %2097 = vmatmul.mubr.f32.gmra.mrb[0].mxu0 %v1443
        %v2098 = vpop.f32.mrb[0].mxu0
        %v2099 = vadd.f32 %v1296, %v2098
        %v2100 = vpop.f32.mrb[0].mxu0
        %v2101 = vadd.f32 %v1298, %v2100
        %2102 = vmatprep.mubr.f32.mxu0 0.0
        %2103 = vmatmul.mubr.f32.gmra.mrb[0].mxu0 %v1446
        %v2104 = vpop.f32.mrb[0].mxu0
        %v2105 = vadd.f32 %v1302, %v2104
        %v2106 = vpop.f32.mrb[0].mxu0
        %v2107 = vadd.f32 %v1304, %v2106
        %2108 = vmatprep.mubr.f32.mxu0 0.0
        %2109 = vmatmul.mubr.f32.gmra.mrb[0].mxu0 %v1449
        %v2110 = vpop.f32.mrb[0].mxu0
        %v2111 = vadd.f32 %v1308, %v2110
        %v2112 = vpop.f32.mrb[0].mxu0
        %v2113 = vadd.f32 %v1310, %v2112
        %2114 = vmatprep.mubr.f32.mxu0 0.0
        %2115 = vmatmul.mubr.f32.gmra.mrb[0].mxu0 %v1452
        %v2116 = vpop.f32.mrb[0].mxu0
        %v2117 = vadd.f32 %v1314, %v2116
        %v2118 = vpop.f32.mrb[0].mxu0
        %v2119 = vadd.f32 %v1316, %v2118
        %2120 = vmatprep.mubr.f32.mxu0 0.0
        %2121 = vmatmul.mubr.f32.gmra.mrb[0].mxu0 %v1455
        %v2122 = vpop.f32.mrb[0].mxu0
        %v2123 = vadd.f32 %v1320, %v2122
        %v2124 = vpop.f32.mrb[0].mxu0
        %v2125 = vadd.f32 %v1322, %v2124
        %2126 = vmatprep.mubr.f32.mxu0 0.0
        %2127 = vmatmul.mubr.f32.gmra.mrb[0].mxu0 %v1458
        %v2128 = vpop.f32.mrb[0].mxu0
        %v2129 = vadd.f32 %v1326, %v2128
        %v2130 = vpop.f32.mrb[0].mxu0
        %v2131 = vadd.f32 %v1328, %v2130
        %2132 = vmatprep.mubr.f32.mxu0 0.0
        %2133 = vmatmul.mubr.f32.gmra.mrb[0].mxu0 %v1461
        %v2134 = vpop.f32.mrb[0].mxu0
        %v2135 = vadd.f32 %v1332, %v2134
        %v2136 = vpop.f32.mrb[0].mxu0
        %v2137 = vadd.f32 %v1334, %v2136
        %2138 = vmatprep.mubr.f32.mxu0 0.0
        %2139 = vmatmul.mubr.f32.gmra.mrb[0].mxu0 %v1464
        %v2140 = vpop.f32.mrb[0].mxu0
        %v2141 = vadd.f32 %v1338, %v2140
        %v2142 = vpop.f32.mrb[0].mxu0
        %v2143 = vadd.f32 %v1340, %v2142
        %2144 = vmatprep.mubr.f32.mxu0 0.0
        %2145 = vmatmul.mubr.f32.gmra.mrb[0].mxu0 %v1467
        %v2146 = vpop.f32.mrb[0].mxu0
        %v2147 = vadd.f32 %v1344, %v2146
        %v2148 = vpop.f32.mrb[0].mxu0
        %v2149 = vadd.f32 %v1346, %v2148
        %2150 = vmatprep.mubr.f32.mxu0 0.0
        %2151 = vmatmul.mubr.f32.gmra.mrb[0].mxu0 %v1470
        %v2152 = vpop.f32.mrb[0].mxu0
        %v2153 = vadd.f32 %v1350, %v2152
        %v2154 = vpop.f32.mrb[0].mxu0
        %v2155 = vadd.f32 %v1352, %v2154
        %2156 = vmatprep.mubr.f32.mxu0 0.0
        %2157 = vmatmul.mubr.f32.gmra.mrb[0].mxu0 %v1473
        %v2158 = vpop.f32.mrb[0].mxu0
        %v2159 = vadd.f32 %v1356, %v2158
        %v2160 = vpop.f32.mrb[0].mxu0
        %v2161 = vadd.f32 %v1358, %v2160
        %2162 = vmatprep.mubr.f32.mxu0 0.0
        %2163 = vmatmul.mubr.f32.gmra.mrb[0].mxu0 %v1476
        %v2164 = vpop.f32.mrb[0].mxu0
        %v2165 = vadd.f32 %v1362, %v2164
        %v2166 = vpop.f32.mrb[0].mxu0
        %v2167 = vadd.f32 %v1364, %v2166
        %2168 = vmatprep.mubr.f32.mxu0 0.0
        %2169 = vmatmul.mubr.f32.gmra.mrb[0].mxu0 %v1479
        %v2170 = vpop.f32.mrb[0].mxu0
        %v2171 = vadd.f32 %v1368, %v2170
        %v2172 = vpop.f32.mrb[0].mxu0
        %v2173 = vadd.f32 %v1370, %v2172
        %2174 = vmatprep.mubr.f32.mxu0 0.0
        %2175 = vmatmul.mubr.f32.gmra.mrb[0].mxu0 %v1482
        %v2176 = vpop.f32.mrb[0].mxu0
        %v2177 = vadd.f32 %v1374, %v2176
        %v2178 = vpop.f32.mrb[0].mxu0
        %v2179 = vadd.f32 %v1376, %v2178
        %2180 = vmatprep.mubr.f32.mxu0 0.0
        %2181 = vmatmul.mubr.f32.gmra.mrb[0].mxu0 %v1485
        %v2182 = vpop.f32.mrb[0].mxu0
        %v2183 = vadd.f32 %v1380, %v2182
        %v2184 = vpop.f32.mrb[0].mxu0
        %v2185 = vadd.f32 %v1382, %v2184
        %2186 = vmatprep.mubr.f32.mxu0 0.0
        %2187 = vmatmul.mubr.f32.gmra.mrb[0].mxu0 %v1488
        %v2188 = vpop.f32.mrb[0].mxu0
        %v2189 = vadd.f32 %v1386, %v2188
        %v2190 = vpop.f32.mrb[0].mxu0
        %v2191 = vadd.f32 %v1388, %v2190
        %2192 = vmatprep.mubr.f32.mxu0 0.0
        %2193 = vmatmul.mubr.f32.gmra.mrb[0].mxu0 %v1491
        %v2194 = vpop.f32.mrb[0].mxu0
        %v2195 = vadd.f32 %v1392, %v2194
        %v2196 = vpop.f32.mrb[0].mxu0
        %v2197 = vadd.f32 %v1394, %v2196
        %2198 = vdwg.mxu0
        %v2199 = vld [vmem:[%s4] sm:$0xff]
        %v2200 = vld [vmem:[%s4 + $0x8] sm:$0xff]
        %v2201 = vld [vmem:[%s4 + $0x10] sm:$0xff]
        %v2202 = vld [vmem:[%s4 + $0x18] sm:$0xff]
        %v2203 = vld [vmem:[%s4 + $0x20] sm:$0xff]
        %v2204 = vld [vmem:[%s4 + $0x28] sm:$0xff]
        %v2205 = vld [vmem:[%s4 + $0x30] sm:$0xff]
        %v2206 = vld [vmem:[%s4 + $0x38] sm:$0xff]
        %v2207 = vld [vmem:[%s4 + $0x40] sm:$0xff]
        %v2208 = vld [vmem:[%s4 + $0x48] sm:$0xff]
        %v2209 = vld [vmem:[%s4 + $0x50] sm:$0xff]
        %v2210 = vld [vmem:[%s4 + $0x58] sm:$0xff]
        %v2211 = vld [vmem:[%s4 + $0x60] sm:$0xff]
        %v2212 = vld [vmem:[%s4 + $0x68] sm:$0xff]
        %v2213 = vld [vmem:[%s4 + $0x70] sm:$0xff]
        %v2214 = vld [vmem:[%s4 + $0x78] sm:$0xff]
        %v2215 = vld [vmem:[%s4 + $0x80] sm:$0xff]
        %v2216 = vld [vmem:[%s4 + $0x88] sm:$0xff]
        %v2217 = vld [vmem:[%s4 + $0x90] sm:$0xff]
        %v2218 = vld [vmem:[%s4 + $0x98] sm:$0xff]
        %v2219 = vld [vmem:[%s4 + $0xa0] sm:$0xff]
        %v2220 = vld [vmem:[%s4 + $0xa8] sm:$0xff]
        %v2221 = vld [vmem:[%s4 + $0xb0] sm:$0xff]
        %v2222 = vld [vmem:[%s4 + $0xb8] sm:$0xff]
        %v2223 = vld [vmem:[%s4 + $0xc0] sm:$0xff]
        %v2224 = vld [vmem:[%s4 + $0xc8] sm:$0xff]
        %v2225 = vld [vmem:[%s4 + $0xd0] sm:$0xff]
        %v2226 = vld [vmem:[%s4 + $0xd8] sm:$0xff]
        %v2227 = vld [vmem:[%s4 + $0xe0] sm:$0xff]
        %v2228 = vld [vmem:[%s4 + $0xe8] sm:$0xff]
        %v2229 = vld [vmem:[%s4 + $0xf0] sm:$0xff]
        %v2230 = vld [vmem:[%s4 + $0xf8] sm:$0xff]
        %2232 = vset.pattern.permute.xlu0 0
        %2233 = vperm.xlu0 %2232, %v2199
        %v2234 = vpop.permute.xlu0 %2233
        %2237 = vset.pattern.permute.xlu0 0
        %2238 = vperm.xlu0 %2237, %v2200
        %v2239 = vpop.permute.xlu0 %2238
        %2242 = vset.pattern.permute.xlu0 0
        %2243 = vperm.xlu0 %2242, %v2201
        %v2244 = vpop.permute.xlu0 %2243
        %2247 = vset.pattern.permute.xlu0 0
        %2248 = vperm.xlu0 %2247, %v2202
        %v2249 = vpop.permute.xlu0 %2248
        %2252 = vset.pattern.permute.xlu0 0
        %2253 = vperm.xlu0 %2252, %v2203
        %v2254 = vpop.permute.xlu0 %2253
        %2257 = vset.pattern.permute.xlu0 0
        %2258 = vperm.xlu0 %2257, %v2204
        %v2259 = vpop.permute.xlu0 %2258
        %2262 = vset.pattern.permute.xlu0 0
        %2263 = vperm.xlu0 %2262, %v2205
        %v2264 = vpop.permute.xlu0 %2263
        %2267 = vset.pattern.permute.xlu0 0
        %2268 = vperm.xlu0 %2267, %v2206
        %v2269 = vpop.permute.xlu0 %2268
        %2272 = vset.pattern.permute.xlu0 0
        %2273 = vperm.xlu0 %2272, %v2207
        %v2274 = vpop.permute.xlu0 %2273
        %2277 = vset.pattern.permute.xlu0 0
        %2278 = vperm.xlu0 %2277, %v2208
        %v2279 = vpop.permute.xlu0 %2278
        %2282 = vset.pattern.permute.xlu0 0
        %2283 = vperm.xlu0 %2282, %v2209
        %v2284 = vpop.permute.xlu0 %2283
        %2287 = vset.pattern.permute.xlu0 0
        %2288 = vperm.xlu0 %2287, %v2210
        %v2289 = vpop.permute.xlu0 %2288
        %2292 = vset.pattern.permute.xlu0 0
        %2293 = vperm.xlu0 %2292, %v2211
        %v2294 = vpop.permute.xlu0 %2293
        %2297 = vset.pattern.permute.xlu0 0
        %2298 = vperm.xlu0 %2297, %v2212
        %v2299 = vpop.permute.xlu0 %2298
        %2302 = vset.pattern.permute.xlu0 0
        %2303 = vperm.xlu0 %2302, %v2213
        %v2304 = vpop.permute.xlu0 %2303
        %2307 = vset.pattern.permute.xlu0 0
        %2308 = vperm.xlu0 %2307, %v2214
        %v2309 = vpop.permute.xlu0 %2308
        %2312 = vset.pattern.permute.xlu0 0
        %2313 = vperm.xlu0 %2312, %v2215
        %v2314 = vpop.permute.xlu0 %2313
        %2317 = vset.pattern.permute.xlu0 0
        %2318 = vperm.xlu0 %2317, %v2216
        %v2319 = vpop.permute.xlu0 %2318
        %2322 = vset.pattern.permute.xlu0 0
        %2323 = vperm.xlu0 %2322, %v2217
        %v2324 = vpop.permute.xlu0 %2323
        %2327 = vset.pattern.permute.xlu0 0
        %2328 = vperm.xlu0 %2327, %v2218
        %v2329 = vpop.permute.xlu0 %2328
        %2332 = vset.pattern.permute.xlu0 0
        %2333 = vperm.xlu0 %2332, %v2219
        %v2334 = vpop.permute.xlu0 %2333
        %2337 = vset.pattern.permute.xlu0 0
        %2338 = vperm.xlu0 %2337, %v2220
        %v2339 = vpop.permute.xlu0 %2338
        %2342 = vset.pattern.permute.xlu0 0
        %2343 = vperm.xlu0 %2342, %v2221
        %v2344 = vpop.permute.xlu0 %2343
        %2347 = vset.pattern.permute.xlu0 0
        %2348 = vperm.xlu0 %2347, %v2222
        %v2349 = vpop.permute.xlu0 %2348
        %2352 = vset.pattern.permute.xlu0 0
        %2353 = vperm.xlu0 %2352, %v2223
        %v2354 = vpop.permute.xlu0 %2353
        %2357 = vset.pattern.permute.xlu0 0
        %2358 = vperm.xlu0 %2357, %v2224
        %v2359 = vpop.permute.xlu0 %2358
        %2362 = vset.pattern.permute.xlu0 0
        %2363 = vperm.xlu0 %2362, %v2225
        %v2364 = vpop.permute.xlu0 %2363
        %2367 = vset.pattern.permute.xlu0 0
        %2368 = vperm.xlu0 %2367, %v2226
        %v2369 = vpop.permute.xlu0 %2368
        %2372 = vset.pattern.permute.xlu0 0
        %2373 = vperm.xlu0 %2372, %v2227
        %v2374 = vpop.permute.xlu0 %2373
        %2377 = vset.pattern.permute.xlu0 0
        %2378 = vperm.xlu0 %2377, %v2228
        %v2379 = vpop.permute.xlu0 %2378
        %2382 = vset.pattern.permute.xlu0 0
        %2383 = vperm.xlu0 %2382, %v2229
        %v2384 = vpop.permute.xlu0 %2383
        %2387 = vset.pattern.permute.xlu0 0
        %2388 = vperm.xlu0 %2387, %v2230
        %v2389 = vpop.permute.xlu0 %2388
        %v2391 = vadd.f32 %v1752, %v2234
        %v2392 = vadd.f32 %v1754, %v2234
        %v2393 = vadd.f32 %v2009, %v2234
        %v2394 = vadd.f32 %v2011, %v2234
        %v2395 = vadd.f32 %v1758, %v2239
        %v2396 = vadd.f32 %v1760, %v2239
        %v2397 = vadd.f32 %v2015, %v2239
        %v2398 = vadd.f32 %v2017, %v2239
        %v2399 = vadd.f32 %v1764, %v2244
        %v2400 = vadd.f32 %v1766, %v2244
        %v2401 = vadd.f32 %v2021, %v2244
        %v2402 = vadd.f32 %v2023, %v2244
        %v2403 = vadd.f32 %v1770, %v2249
        %v2404 = vadd.f32 %v1772, %v2249
        %v2405 = vadd.f32 %v2027, %v2249
        %v2406 = vadd.f32 %v2029, %v2249
        %v2407 = vadd.f32 %v1776, %v2254
        %v2408 = vadd.f32 %v1778, %v2254
        %v2409 = vadd.f32 %v2033, %v2254
        %v2410 = vadd.f32 %v2035, %v2254
        %v2411 = vadd.f32 %v1782, %v2259
        %v2412 = vadd.f32 %v1784, %v2259
        %v2413 = vadd.f32 %v2039, %v2259
        %v2414 = vadd.f32 %v2041, %v2259
        %v2415 = vadd.f32 %v1788, %v2264
        %v2416 = vadd.f32 %v1790, %v2264
        %v2417 = vadd.f32 %v2045, %v2264
        %v2418 = vadd.f32 %v2047, %v2264
        %v2419 = vadd.f32 %v1794, %v2269
        %v2420 = vadd.f32 %v1796, %v2269
        %v2421 = vadd.f32 %v2051, %v2269
        %v2422 = vadd.f32 %v2053, %v2269
        %v2423 = vadd.f32 %v1800, %v2274
        %v2424 = vadd.f32 %v1802, %v2274
        %v2425 = vadd.f32 %v2057, %v2274
        %v2426 = vadd.f32 %v2059, %v2274
        %v2427 = vadd.f32 %v1806, %v2279
        %v2428 = vadd.f32 %v1808, %v2279
        %v2429 = vadd.f32 %v2063, %v2279
        %v2430 = vadd.f32 %v2065, %v2279
        %v2431 = vadd.f32 %v1812, %v2284
        %v2432 = vadd.f32 %v1814, %v2284
        %v2433 = vadd.f32 %v2069, %v2284
        %v2434 = vadd.f32 %v2071, %v2284
        %v2435 = vadd.f32 %v1818, %v2289
        %v2436 = vadd.f32 %v1820, %v2289
        %v2437 = vadd.f32 %v2075, %v2289
        %v2438 = vadd.f32 %v2077, %v2289
        %v2439 = vadd.f32 %v1824, %v2294
        %v2440 = vadd.f32 %v1826, %v2294
        %v2441 = vadd.f32 %v2081, %v2294
        %v2442 = vadd.f32 %v2083, %v2294
        %v2443 = vadd.f32 %v1830, %v2299
        %v2444 = vadd.f32 %v1832, %v2299
        %v2445 = vadd.f32 %v2087, %v2299
        %v2446 = vadd.f32 %v2089, %v2299
        %v2447 = vadd.f32 %v1836, %v2304
        %v2448 = vadd.f32 %v1838, %v2304
        %v2449 = vadd.f32 %v2093, %v2304
        %v2450 = vadd.f32 %v2095, %v2304
        %v2451 = vadd.f32 %v1842, %v2309
        %v2452 = vadd.f32 %v1844, %v2309
        %v2453 = vadd.f32 %v2099, %v2309
        %v2454 = vadd.f32 %v2101, %v2309
        %v2455 = vadd.f32 %v1848, %v2314
        %v2456 = vadd.f32 %v1850, %v2314
        %v2457 = vadd.f32 %v2105, %v2314
        %v2458 = vadd.f32 %v2107, %v2314
        %v2459 = vadd.f32 %v1854, %v2319
        %v2460 = vadd.f32 %v1856, %v2319
        %v2461 = vadd.f32 %v2111, %v2319
        %v2462 = vadd.f32 %v2113, %v2319
        %v2463 = vadd.f32 %v1860, %v2324
        %v2464 = vadd.f32 %v1862, %v2324
        %v2465 = vadd.f32 %v2117, %v2324
        %v2466 = vadd.f32 %v2119, %v2324
        %v2467 = vadd.f32 %v1866, %v2329
        %v2468 = vadd.f32 %v1868, %v2329
        %v2469 = vadd.f32 %v2123, %v2329
        %v2470 = vadd.f32 %v2125, %v2329
        %v2471 = vadd.f32 %v1872, %v2334
        %v2472 = vadd.f32 %v1874, %v2334
        %v2473 = vadd.f32 %v2129, %v2334
        %v2474 = vadd.f32 %v2131, %v2334
        %v2475 = vadd.f32 %v1878, %v2339
        %v2476 = vadd.f32 %v1880, %v2339
        %v2477 = vadd.f32 %v2135, %v2339
        %v2478 = vadd.f32 %v2137, %v2339
        %v2479 = vadd.f32 %v1884, %v2344
        %v2480 = vadd.f32 %v1886, %v2344
        %v2481 = vadd.f32 %v2141, %v2344
        %v2482 = vadd.f32 %v2143, %v2344
        %v2483 = vadd.f32 %v1890, %v2349
        %v2484 = vadd.f32 %v1892, %v2349
        %v2485 = vadd.f32 %v2147, %v2349
        %v2486 = vadd.f32 %v2149, %v2349
        %v2487 = vadd.f32 %v1896, %v2354
        %v2488 = vadd.f32 %v1898, %v2354
        %v2489 = vadd.f32 %v2153, %v2354
        %v2490 = vadd.f32 %v2155, %v2354
        %v2491 = vadd.f32 %v1902, %v2359
        %v2492 = vadd.f32 %v1904, %v2359
        %v2493 = vadd.f32 %v2159, %v2359
        %v2494 = vadd.f32 %v2161, %v2359
        %v2495 = vadd.f32 %v1908, %v2364
        %v2496 = vadd.f32 %v1910, %v2364
        %v2497 = vadd.f32 %v2165, %v2364
        %v2498 = vadd.f32 %v2167, %v2364
        %v2499 = vadd.f32 %v1914, %v2369
        %v2500 = vadd.f32 %v1916, %v2369
        %v2501 = vadd.f32 %v2171, %v2369
        %v2502 = vadd.f32 %v2173, %v2369
        %v2503 = vadd.f32 %v1920, %v2374
        %v2504 = vadd.f32 %v1922, %v2374
        %v2505 = vadd.f32 %v2177, %v2374
        %v2506 = vadd.f32 %v2179, %v2374
        %v2507 = vadd.f32 %v1926, %v2379
        %v2508 = vadd.f32 %v1928, %v2379
        %v2509 = vadd.f32 %v2183, %v2379
        %v2510 = vadd.f32 %v2185, %v2379
        %v2511 = vadd.f32 %v1932, %v2384
        %v2512 = vadd.f32 %v1934, %v2384
        %v2513 = vadd.f32 %v2189, %v2384
        %v2514 = vadd.f32 %v2191, %v2384
        %v2515 = vadd.f32 %v1938, %v2389
        %v2516 = vadd.f32 %v1940, %v2389
        %v2517 = vadd.f32 %v2195, %v2389
        %v2518 = vadd.f32 %v2197, %v2389
        %v2519 = vmax.f32 %v2391, 0.0
        %v2520 = vmax.f32 %v2392, 0.0
        %v2521 = vmax.f32 %v2393, 0.0
        %v2522 = vmax.f32 %v2394, 0.0
        %v2523 = vmax.f32 %v2395, 0.0
        %v2524 = vmax.f32 %v2396, 0.0
        %v2525 = vmax.f32 %v2397, 0.0
        %v2526 = vmax.f32 %v2398, 0.0
        %v2527 = vmax.f32 %v2399, 0.0
        %v2528 = vmax.f32 %v2400, 0.0
        %v2529 = vmax.f32 %v2401, 0.0
        %v2530 = vmax.f32 %v2402, 0.0
        %v2531 = vmax.f32 %v2403, 0.0
        %v2532 = vmax.f32 %v2404, 0.0
        %v2533 = vmax.f32 %v2405, 0.0
        %v2534 = vmax.f32 %v2406, 0.0
        %v2535 = vmax.f32 %v2407, 0.0
        %v2536 = vmax.f32 %v2408, 0.0
        %v2537 = vmax.f32 %v2409, 0.0
        %v2538 = vmax.f32 %v2410, 0.0
        %v2539 = vmax.f32 %v2411, 0.0
        %v2540 = vmax.f32 %v2412, 0.0
        %v2541 = vmax.f32 %v2413, 0.0
        %v2542 = vmax.f32 %v2414, 0.0
        %v2543 = vmax.f32 %v2415, 0.0
        %v2544 = vmax.f32 %v2416, 0.0
        %v2545 = vmax.f32 %v2417, 0.0
        %v2546 = vmax.f32 %v2418, 0.0
        %v2547 = vmax.f32 %v2419, 0.0
        %v2548 = vmax.f32 %v2420, 0.0
        %v2549 = vmax.f32 %v2421, 0.0
        %v2550 = vmax.f32 %v2422, 0.0
        %v2551 = vmax.f32 %v2423, 0.0
        %v2552 = vmax.f32 %v2424, 0.0
        %v2553 = vmax.f32 %v2425, 0.0
        %v2554 = vmax.f32 %v2426, 0.0
        %v2555 = vmax.f32 %v2427, 0.0
        %v2556 = vmax.f32 %v2428, 0.0
        %v2557 = vmax.f32 %v2429, 0.0
        %v2558 = vmax.f32 %v2430, 0.0
        %v2559 = vmax.f32 %v2431, 0.0
        %v2560 = vmax.f32 %v2432, 0.0
        %v2561 = vmax.f32 %v2433, 0.0
        %v2562 = vmax.f32 %v2434, 0.0
        %v2563 = vmax.f32 %v2435, 0.0
        %v2564 = vmax.f32 %v2436, 0.0
        %v2565 = vmax.f32 %v2437, 0.0
        %v2566 = vmax.f32 %v2438, 0.0
        %v2567 = vmax.f32 %v2439, 0.0
        %v2568 = vmax.f32 %v2440, 0.0
        %v2569 = vmax.f32 %v2441, 0.0
        %v2570 = vmax.f32 %v2442, 0.0
        %v2571 = vmax.f32 %v2443, 0.0
        %v2572 = vmax.f32 %v2444, 0.0
        %v2573 = vmax.f32 %v2445, 0.0
        %v2574 = vmax.f32 %v2446, 0.0
        %v2575 = vmax.f32 %v2447, 0.0
        %v2576 = vmax.f32 %v2448, 0.0
        %v2577 = vmax.f32 %v2449, 0.0
        %v2578 = vmax.f32 %v2450, 0.0
        %v2579 = vmax.f32 %v2451, 0.0
        %v2580 = vmax.f32 %v2452, 0.0
        %v2581 = vmax.f32 %v2453, 0.0
        %v2582 = vmax.f32 %v2454, 0.0
        %v2583 = vmax.f32 %v2455, 0.0
        %v2584 = vmax.f32 %v2456, 0.0
        %v2585 = vmax.f32 %v2457, 0.0
        %v2586 = vmax.f32 %v2458, 0.0
        %v2587 = vmax.f32 %v2459, 0.0
        %v2588 = vmax.f32 %v2460, 0.0
        %v2589 = vmax.f32 %v2461, 0.0
        %v2590 = vmax.f32 %v2462, 0.0
        %v2591 = vmax.f32 %v2463, 0.0
        %v2592 = vmax.f32 %v2464, 0.0
        %v2593 = vmax.f32 %v2465, 0.0
        %v2594 = vmax.f32 %v2466, 0.0
        %v2595 = vmax.f32 %v2467, 0.0
        %v2596 = vmax.f32 %v2468, 0.0
        %v2597 = vmax.f32 %v2469, 0.0
        %v2598 = vmax.f32 %v2470, 0.0
        %v2599 = vmax.f32 %v2471, 0.0
        %v2600 = vmax.f32 %v2472, 0.0
        %v2601 = vmax.f32 %v2473, 0.0
        %v2602 = vmax.f32 %v2474, 0.0
        %v2603 = vmax.f32 %v2475, 0.0
        %v2604 = vmax.f32 %v2476, 0.0
        %v2605 = vmax.f32 %v2477, 0.0
        %v2606 = vmax.f32 %v2478, 0.0
        %v2607 = vmax.f32 %v2479, 0.0
        %v2608 = vmax.f32 %v2480, 0.0
        %v2609 = vmax.f32 %v2481, 0.0
        %v2610 = vmax.f32 %v2482, 0.0
        %v2611 = vmax.f32 %v2483, 0.0
        %v2612 = vmax.f32 %v2484, 0.0
        %v2613 = vmax.f32 %v2485, 0.0
        %v2614 = vmax.f32 %v2486, 0.0
        %v2615 = vmax.f32 %v2487, 0.0
        %v2616 = vmax.f32 %v2488, 0.0
        %v2617 = vmax.f32 %v2489, 0.0
        %v2618 = vmax.f32 %v2490, 0.0
        %v2619 = vmax.f32 %v2491, 0.0
        %v2620 = vmax.f32 %v2492, 0.0
        %v2621 = vmax.f32 %v2493, 0.0
        %v2622 = vmax.f32 %v2494, 0.0
        %v2623 = vmax.f32 %v2495, 0.0
        %v2624 = vmax.f32 %v2496, 0.0
        %v2625 = vmax.f32 %v2497, 0.0
        %v2626 = vmax.f32 %v2498, 0.0
        %v2627 = vmax.f32 %v2499, 0.0
        %v2628 = vmax.f32 %v2500, 0.0
        %v2629 = vmax.f32 %v2501, 0.0
        %v2630 = vmax.f32 %v2502, 0.0
        %v2631 = vmax.f32 %v2503, 0.0
        %v2632 = vmax.f32 %v2504, 0.0
        %v2633 = vmax.f32 %v2505, 0.0
        %v2634 = vmax.f32 %v2506, 0.0
        %v2635 = vmax.f32 %v2507, 0.0
        %v2636 = vmax.f32 %v2508, 0.0
        %v2637 = vmax.f32 %v2509, 0.0
        %v2638 = vmax.f32 %v2510, 0.0
        %v2639 = vmax.f32 %v2511, 0.0
        %v2640 = vmax.f32 %v2512, 0.0
        %v2641 = vmax.f32 %v2513, 0.0
        %v2642 = vmax.f32 %v2514, 0.0
        %v2643 = vmax.f32 %v2515, 0.0
        %v2644 = vmax.f32 %v2516, 0.0
        %v2645 = vmax.f32 %v2517, 0.0
        %v2646 = vmax.f32 %v2518, 0.0
        %v2647 = vld [vmem:[%s5] sm:$0xff]
        %v2648 = vld [vmem:[%s5 + $0x8] sm:$0xff]
        %v2649 = vld [vmem:[%s5 + $0x10] sm:$0xff]
        %v2650 = vld [vmem:[%s5 + $0x18] sm:$0xff]
        %v2651 = vld [vmem:[%s5 + $0x20] sm:$0xff]
        %v2652 = vld [vmem:[%s5 + $0x28] sm:$0xff]
        %v2653 = vld [vmem:[%s5 + $0x30] sm:$0xff]
        %v2654 = vld [vmem:[%s5 + $0x38] sm:$0xff]
        %v2655 = vld [vmem:[%s5 + $0x40] sm:$0xff]
        %v2656 = vld [vmem:[%s5 + $0x48] sm:$0xff]
        %v2657 = vld [vmem:[%s5 + $0x50] sm:$0xff]
        %v2658 = vld [vmem:[%s5 + $0x58] sm:$0xff]
        %v2659 = vld [vmem:[%s5 + $0x60] sm:$0xff]
        %v2660 = vld [vmem:[%s5 + $0x68] sm:$0xff]
        %v2661 = vld [vmem:[%s5 + $0x70] sm:$0xff]
        %v2662 = vld [vmem:[%s5 + $0x78] sm:$0xff]
        %v2663 = vld [vmem:[%s5 + $0x80] sm:$0xff]
        %v2664 = vld [vmem:[%s5 + $0x88] sm:$0xff]
        %v2665 = vld [vmem:[%s5 + $0x90] sm:$0xff]
        %v2666 = vld [vmem:[%s5 + $0x98] sm:$0xff]
        %v2667 = vld [vmem:[%s5 + $0xa0] sm:$0xff]
        %v2668 = vld [vmem:[%s5 + $0xa8] sm:$0xff]
        %v2669 = vld [vmem:[%s5 + $0xb0] sm:$0xff]
        %v2670 = vld [vmem:[%s5 + $0xb8] sm:$0xff]
        %v2671 = vld [vmem:[%s5 + $0xc0] sm:$0xff]
        %v2672 = vld [vmem:[%s5 + $0xc8] sm:$0xff]
        %v2673 = vld [vmem:[%s5 + $0xd0] sm:$0xff]
        %v2674 = vld [vmem:[%s5 + $0xd8] sm:$0xff]
        %v2675 = vld [vmem:[%s5 + $0xe0] sm:$0xff]
        %v2676 = vld [vmem:[%s5 + $0xe8] sm:$0xff]
        %v2677 = vld [vmem:[%s5 + $0xf0] sm:$0xff]
        %v2678 = vld [vmem:[%s5 + $0xf8] sm:$0xff]
        %v2679 = vld [vmem:[%s5 + $0x100] sm:$0xff]
        %v2680 = vld [vmem:[%s5 + $0x108] sm:$0xff]
        %v2681 = vld [vmem:[%s5 + $0x110] sm:$0xff]
        %v2682 = vld [vmem:[%s5 + $0x118] sm:$0xff]
        %v2683 = vld [vmem:[%s5 + $0x120] sm:$0xff]
        %v2684 = vld [vmem:[%s5 + $0x128] sm:$0xff]
        %v2685 = vld [vmem:[%s5 + $0x130] sm:$0xff]
        %v2686 = vld [vmem:[%s5 + $0x138] sm:$0xff]
        %v2687 = vld [vmem:[%s5 + $0x140] sm:$0xff]
        %v2688 = vld [vmem:[%s5 + $0x148] sm:$0xff]
        %v2689 = vld [vmem:[%s5 + $0x150] sm:$0xff]
        %v2690 = vld [vmem:[%s5 + $0x158] sm:$0xff]
        %v2691 = vld [vmem:[%s5 + $0x160] sm:$0xff]
        %v2692 = vld [vmem:[%s5 + $0x168] sm:$0xff]
        %v2693 = vld [vmem:[%s5 + $0x170] sm:$0xff]
        %v2694 = vld [vmem:[%s5 + $0x178] sm:$0xff]
        %v2695 = vld [vmem:[%s5 + $0x180] sm:$0xff]
        %v2696 = vld [vmem:[%s5 + $0x188] sm:$0xff]
        %v2697 = vld [vmem:[%s5 + $0x190] sm:$0xff]
        %v2698 = vld [vmem:[%s5 + $0x198] sm:$0xff]
        %v2699 = vld [vmem:[%s5 + $0x1a0] sm:$0xff]
        %v2700 = vld [vmem:[%s5 + $0x1a8] sm:$0xff]
        %v2701 = vld [vmem:[%s5 + $0x1b0] sm:$0xff]
        %v2702 = vld [vmem:[%s5 + $0x1b8] sm:$0xff]
        %v2703 = vld [vmem:[%s5 + $0x1c0] sm:$0xff]
        %v2704 = vld [vmem:[%s5 + $0x1c8] sm:$0xff]
        %v2705 = vld [vmem:[%s5 + $0x1d0] sm:$0xff]
        %v2706 = vld [vmem:[%s5 + $0x1d8] sm:$0xff]
        %v2707 = vld [vmem:[%s5 + $0x1e0] sm:$0xff]
        %v2708 = vld [vmem:[%s5 + $0x1e8] sm:$0xff]
        %v2709 = vld [vmem:[%s5 + $0x1f0] sm:$0xff]
        %v2710 = vld [vmem:[%s5 + $0x1f8] sm:$0xff]
        %v2711 = vld [vmem:[%s6] sm:$0xff]
        %v2712 = vld [vmem:[%s6 + $0x8] sm:$0xff]
        %v2713 = vld [vmem:[%s6 + $0x10] sm:$0xff]
        %v2714 = vld [vmem:[%s6 + $0x18] sm:$0xff]
        %v2715 = vld [vmem:[%s6 + $0x20] sm:$0xff]
        %v2716 = vld [vmem:[%s6 + $0x28] sm:$0xff]
        %v2717 = vld [vmem:[%s6 + $0x30] sm:$0xff]
        %v2718 = vld [vmem:[%s6 + $0x38] sm:$0xff]
        %v2719 = vld [vmem:[%s6 + $0x40] sm:$0xff]
        %v2720 = vld [vmem:[%s6 + $0x48] sm:$0xff]
        %v2721 = vld [vmem:[%s6 + $0x50] sm:$0xff]
        %v2722 = vld [vmem:[%s6 + $0x58] sm:$0xff]
        %v2723 = vld [vmem:[%s6 + $0x60] sm:$0xff]
        %v2724 = vld [vmem:[%s6 + $0x68] sm:$0xff]
        %v2725 = vld [vmem:[%s6 + $0x70] sm:$0xff]
        %v2726 = vld [vmem:[%s6 + $0x78] sm:$0xff]
        %v2727 = vld [vmem:[%s6 + $0x80] sm:$0xff]
        %v2728 = vld [vmem:[%s6 + $0x88] sm:$0xff]
        %v2729 = vld [vmem:[%s6 + $0x90] sm:$0xff]
        %v2730 = vld [vmem:[%s6 + $0x98] sm:$0xff]
        %v2731 = vld [vmem:[%s6 + $0xa0] sm:$0xff]
        %v2732 = vld [vmem:[%s6 + $0xa8] sm:$0xff]
        %v2733 = vld [vmem:[%s6 + $0xb0] sm:$0xff]
        %v2734 = vld [vmem:[%s6 + $0xb8] sm:$0xff]
        %v2735 = vld [vmem:[%s6 + $0xc0] sm:$0xff]
        %v2736 = vld [vmem:[%s6 + $0xc8] sm:$0xff]
        %v2737 = vld [vmem:[%s6 + $0xd0] sm:$0xff]
        %v2738 = vld [vmem:[%s6 + $0xd8] sm:$0xff]
        %v2739 = vld [vmem:[%s6 + $0xe0] sm:$0xff]
        %v2740 = vld [vmem:[%s6 + $0xe8] sm:$0xff]
        %v2741 = vld [vmem:[%s6 + $0xf0] sm:$0xff]
        %v2742 = vld [vmem:[%s6 + $0xf8] sm:$0xff]
        %2744 = vset.pattern.permute.xlu0 0
        %2745 = vperm.xlu0 %2744, %v2711
        %v2746 = vpop.permute.xlu0 %2745
        %2749 = vset.pattern.permute.xlu0 0
        %2750 = vperm.xlu0 %2749, %v2712
        %v2751 = vpop.permute.xlu0 %2750
        %2754 = vset.pattern.permute.xlu0 0
        %2755 = vperm.xlu0 %2754, %v2713
        %v2756 = vpop.permute.xlu0 %2755
        %2759 = vset.pattern.permute.xlu0 0
        %2760 = vperm.xlu0 %2759, %v2714
        %v2761 = vpop.permute.xlu0 %2760
        %2764 = vset.pattern.permute.xlu0 0
        %2765 = vperm.xlu0 %2764, %v2715
        %v2766 = vpop.permute.xlu0 %2765
        %2769 = vset.pattern.permute.xlu0 0
        %2770 = vperm.xlu0 %2769, %v2716
        %v2771 = vpop.permute.xlu0 %2770
        %2774 = vset.pattern.permute.xlu0 0
        %2775 = vperm.xlu0 %2774, %v2717
        %v2776 = vpop.permute.xlu0 %2775
        %2779 = vset.pattern.permute.xlu0 0
        %2780 = vperm.xlu0 %2779, %v2718
        %v2781 = vpop.permute.xlu0 %2780
        %2784 = vset.pattern.permute.xlu0 0
        %2785 = vperm.xlu0 %2784, %v2719
        %v2786 = vpop.permute.xlu0 %2785
        %2789 = vset.pattern.permute.xlu0 0
        %2790 = vperm.xlu0 %2789, %v2720
        %v2791 = vpop.permute.xlu0 %2790
        %2794 = vset.pattern.permute.xlu0 0
        %2795 = vperm.xlu0 %2794, %v2721
        %v2796 = vpop.permute.xlu0 %2795
        %2799 = vset.pattern.permute.xlu0 0
        %2800 = vperm.xlu0 %2799, %v2722
        %v2801 = vpop.permute.xlu0 %2800
        %2804 = vset.pattern.permute.xlu0 0
        %2805 = vperm.xlu0 %2804, %v2723
        %v2806 = vpop.permute.xlu0 %2805
        %2809 = vset.pattern.permute.xlu0 0
        %2810 = vperm.xlu0 %2809, %v2724
        %v2811 = vpop.permute.xlu0 %2810
        %2814 = vset.pattern.permute.xlu0 0
        %2815 = vperm.xlu0 %2814, %v2725
        %v2816 = vpop.permute.xlu0 %2815
        %2819 = vset.pattern.permute.xlu0 0
        %2820 = vperm.xlu0 %2819, %v2726
        %v2821 = vpop.permute.xlu0 %2820
        %2824 = vset.pattern.permute.xlu0 0
        %2825 = vperm.xlu0 %2824, %v2727
        %v2826 = vpop.permute.xlu0 %2825
        %2829 = vset.pattern.permute.xlu0 0
        %2830 = vperm.xlu0 %2829, %v2728
        %v2831 = vpop.permute.xlu0 %2830
        %2834 = vset.pattern.permute.xlu0 0
        %2835 = vperm.xlu0 %2834, %v2729
        %v2836 = vpop.permute.xlu0 %2835
        %2839 = vset.pattern.permute.xlu0 0
        %2840 = vperm.xlu0 %2839, %v2730
        %v2841 = vpop.permute.xlu0 %2840
        %2844 = vset.pattern.permute.xlu0 0
        %2845 = vperm.xlu0 %2844, %v2731
        %v2846 = vpop.permute.xlu0 %2845
        %2849 = vset.pattern.permute.xlu0 0
        %2850 = vperm.xlu0 %2849, %v2732
        %v2851 = vpop.permute.xlu0 %2850
        %2854 = vset.pattern.permute.xlu0 0
        %2855 = vperm.xlu0 %2854, %v2733
        %v2856 = vpop.permute.xlu0 %2855
        %2859 = vset.pattern.permute.xlu0 0
        %2860 = vperm.xlu0 %2859, %v2734
        %v2861 = vpop.permute.xlu0 %2860
        %2864 = vset.pattern.permute.xlu0 0
        %2865 = vperm.xlu0 %2864, %v2735
        %v2866 = vpop.permute.xlu0 %2865
        %2869 = vset.pattern.permute.xlu0 0
        %2870 = vperm.xlu0 %2869, %v2736
        %v2871 = vpop.permute.xlu0 %2870
        %2874 = vset.pattern.permute.xlu0 0
        %2875 = vperm.xlu0 %2874, %v2737
        %v2876 = vpop.permute.xlu0 %2875
        %2879 = vset.pattern.permute.xlu0 0
        %2880 = vperm.xlu0 %2879, %v2738
        %v2881 = vpop.permute.xlu0 %2880
        %2884 = vset.pattern.permute.xlu0 0
        %2885 = vperm.xlu0 %2884, %v2739
        %v2886 = vpop.permute.xlu0 %2885
        %2889 = vset.pattern.permute.xlu0 0
        %2890 = vperm.xlu0 %2889, %v2740
        %v2891 = vpop.permute.xlu0 %2890
        %2894 = vset.pattern.permute.xlu0 0
        %2895 = vperm.xlu0 %2894, %v2741
        %v2896 = vpop.permute.xlu0 %2895
        %2899 = vset.pattern.permute.xlu0 0
        %2900 = vperm.xlu0 %2899, %v2742
        %v2901 = vpop.permute.xlu0 %2900
        %2903 = vmatprep.subr.mxu0 %v2520
        %2904 = vmatpush1.msra.mxu0 %v2519
        %2905 = vmatprep.subr.mxu0 %v2524
        %2906 = vmatpush1.msra.mxu0 %v2523
        %2907 = vmatprep.subr.mxu0 %v2528
        %2908 = vmatpush1.msra.mxu0 %v2527
        %2909 = vmatprep.subr.mxu0 %v2532
        %2910 = vmatpush1.msra.mxu0 %v2531
        %2911 = vmatprep.subr.mxu0 %v2536
        %2912 = vmatpush1.msra.mxu0 %v2535
        %2913 = vmatprep.subr.mxu0 %v2540
        %2914 = vmatpush1.msra.mxu0 %v2539
        %2915 = vmatprep.subr.mxu0 %v2544
        %2916 = vmatpush1.msra.mxu0 %v2543
        %2917 = vmatprep.subr.mxu0 %v2548
        %2918 = vmatpush1.msra.mxu0 %v2547
        %2919 = vmatprep.subr.mxu0 %v2552
        %2920 = vmatpush1.msra.mxu0 %v2551
        %2921 = vmatprep.subr.mxu0 %v2556
        %2922 = vmatpush1.msra.mxu0 %v2555
        %2923 = vmatprep.subr.mxu0 %v2560
        %2924 = vmatpush1.msra.mxu0 %v2559
        %2925 = vmatprep.subr.mxu0 %v2564
        %2926 = vmatpush1.msra.mxu0 %v2563
        %2927 = vmatprep.subr.mxu0 %v2568
        %2928 = vmatpush1.msra.mxu0 %v2567
        %2929 = vmatprep.subr.mxu0 %v2572
        %2930 = vmatpush1.msra.mxu0 %v2571
        %2931 = vmatprep.subr.mxu0 %v2576
        %2932 = vmatpush1.msra.mxu0 %v2575
        %2933 = vmatprep.subr.mxu0 %v2580
        %2934 = vmatpush1.msra.mxu0 %v2579
        %2935 = vmatprep.subr.mxu0 %v2584
        %2936 = vmatpush1.msra.mxu0 %v2583
        %2937 = vmatprep.subr.mxu0 %v2588
        %2938 = vmatpush1.msra.mxu0 %v2587
        %2939 = vmatprep.subr.mxu0 %v2592
        %2940 = vmatpush1.msra.mxu0 %v2591
        %2941 = vmatprep.subr.mxu0 %v2596
        %2942 = vmatpush1.msra.mxu0 %v2595
        %2943 = vmatprep.subr.mxu0 %v2600
        %2944 = vmatpush1.msra.mxu0 %v2599
        %2945 = vmatprep.subr.mxu0 %v2604
        %2946 = vmatpush1.msra.mxu0 %v2603
        %2947 = vmatprep.subr.mxu0 %v2608
        %2948 = vmatpush1.msra.mxu0 %v2607
        %2949 = vmatprep.subr.mxu0 %v2612
        %2950 = vmatpush1.msra.mxu0 %v2611
        %2951 = vmatprep.subr.mxu0 %v2616
        %2952 = vmatpush1.msra.mxu0 %v2615
        %2953 = vmatprep.subr.mxu0 %v2620
        %2954 = vmatpush1.msra.mxu0 %v2619
        %2955 = vmatprep.subr.mxu0 %v2624
        %2956 = vmatpush1.msra.mxu0 %v2623
        %2957 = vmatprep.subr.mxu0 %v2628
        %2958 = vmatpush1.msra.mxu0 %v2627
        %2959 = vmatprep.subr.mxu0 %v2632
        %2960 = vmatpush1.msra.mxu0 %v2631
        %2961 = vmatprep.subr.mxu0 %v2636
        %2962 = vmatpush1.msra.mxu0 %v2635
        %2963 = vmatprep.subr.mxu0 %v2640
        %2964 = vmatpush1.msra.mxu0 %v2639
        %2965 = vmatprep.subr.mxu0 %v2644
        %2966 = vmatpush1.msra.mxu0 %v2643
        %2967 = vmatprep.mubr.f32.mxu0 %v2648
        %2968 = vmatmul.mubr.f32.gmra.mrb[0].mxu0 %v2647
        %v2969 = vpop.f32.mrb[0].mxu0
        %v2970 = vadd.f32 %v2746, %v2969
        %v2971 = vpop.f32.mrb[0].mxu0
        %v2972 = vadd.f32 %v2746, %v2971
        %2973 = vmatprep.mubr.f32.mxu0 %v2650
        %2974 = vmatmul.mubr.f32.gmra.mrb[0].mxu0 %v2649
        %v2975 = vpop.f32.mrb[0].mxu0
        %v2976 = vadd.f32 %v2751, %v2975
        %v2977 = vpop.f32.mrb[0].mxu0
        %v2978 = vadd.f32 %v2751, %v2977
        %2979 = vmatprep.mubr.f32.mxu0 %v2652
        %2980 = vmatmul.mubr.f32.gmra.mrb[0].mxu0 %v2651
        %v2981 = vpop.f32.mrb[0].mxu0
        %v2982 = vadd.f32 %v2756, %v2981
        %v2983 = vpop.f32.mrb[0].mxu0
        %v2984 = vadd.f32 %v2756, %v2983
        %2985 = vmatprep.mubr.f32.mxu0 %v2654
        %2986 = vmatmul.mubr.f32.gmra.mrb[0].mxu0 %v2653
        %v2987 = vpop.f32.mrb[0].mxu0
        %v2988 = vadd.f32 %v2761, %v2987
        %v2989 = vpop.f32.mrb[0].mxu0
        %v2990 = vadd.f32 %v2761, %v2989
        %2991 = vmatprep.mubr.f32.mxu0 %v2656
        %2992 = vmatmul.mubr.f32.gmra.mrb[0].mxu0 %v2655
        %v2993 = vpop.f32.mrb[0].mxu0
        %v2994 = vadd.f32 %v2766, %v2993
        %v2995 = vpop.f32.mrb[0].mxu0
        %v2996 = vadd.f32 %v2766, %v2995
        %2997 = vmatprep.mubr.f32.mxu0 %v2658
        %2998 = vmatmul.mubr.f32.gmra.mrb[0].mxu0 %v2657
        %v2999 = vpop.f32.mrb[0].mxu0
        %v3000 = vadd.f32 %v2771, %v2999
        %v3001 = vpop.f32.mrb[0].mxu0
        %v3002 = vadd.f32 %v2771, %v3001
        %3003 = vmatprep.mubr.f32.mxu0 %v2660
        %3004 = vmatmul.mubr.f32.gmra.mrb[0].mxu0 %v2659
        %v3005 = vpop.f32.mrb[0].mxu0
        %v3006 = vadd.f32 %v2776, %v3005
        %v3007 = vpop.f32.mrb[0].mxu0
        %v3008 = vadd.f32 %v2776, %v3007
        %3009 = vmatprep.mubr.f32.mxu0 %v2662
        %3010 = vmatmul.mubr.f32.gmra.mrb[0].mxu0 %v2661
        %v3011 = vpop.f32.mrb[0].mxu0
        %v3012 = vadd.f32 %v2781, %v3011
        %v3013 = vpop.f32.mrb[0].mxu0
        %v3014 = vadd.f32 %v2781, %v3013
        %3015 = vmatprep.mubr.f32.mxu0 %v2664
        %3016 = vmatmul.mubr.f32.gmra.mrb[0].mxu0 %v2663
        %v3017 = vpop.f32.mrb[0].mxu0
        %v3018 = vadd.f32 %v2786, %v3017
        %v3019 = vpop.f32.mrb[0].mxu0
        %v3020 = vadd.f32 %v2786, %v3019
        %3021 = vmatprep.mubr.f32.mxu0 %v2666
        %3022 = vmatmul.mubr.f32.gmra.mrb[0].mxu0 %v2665
        %v3023 = vpop.f32.mrb[0].mxu0
        %v3024 = vadd.f32 %v2791, %v3023
        %v3025 = vpop.f32.mrb[0].mxu0
        %v3026 = vadd.f32 %v2791, %v3025
        %3027 = vmatprep.mubr.f32.mxu0 %v2668
        %3028 = vmatmul.mubr.f32.gmra.mrb[0].mxu0 %v2667
        %v3029 = vpop.f32.mrb[0].mxu0
        %v3030 = vadd.f32 %v2796, %v3029
        %v3031 = vpop.f32.mrb[0].mxu0
        %v3032 = vadd.f32 %v2796, %v3031
        %3033 = vmatprep.mubr.f32.mxu0 %v2670
        %3034 = vmatmul.mubr.f32.gmra.mrb[0].mxu0 %v2669
        %v3035 = vpop.f32.mrb[0].mxu0
        %v3036 = vadd.f32 %v2801, %v3035
        %v3037 = vpop.f32.mrb[0].mxu0
        %v3038 = vadd.f32 %v2801, %v3037
        %3039 = vmatprep.mubr.f32.mxu0 %v2672
        %3040 = vmatmul.mubr.f32.gmra.mrb[0].mxu0 %v2671
        %v3041 = vpop.f32.mrb[0].mxu0
        %v3042 = vadd.f32 %v2806, %v3041
        %v3043 = vpop.f32.mrb[0].mxu0
        %v3044 = vadd.f32 %v2806, %v3043
        %3045 = vmatprep.mubr.f32.mxu0 %v2674
        %3046 = vmatmul.mubr.f32.gmra.mrb[0].mxu0 %v2673
        %v3047 = vpop.f32.mrb[0].mxu0
        %v3048 = vadd.f32 %v2811, %v3047
        %v3049 = vpop.f32.mrb[0].mxu0
        %v3050 = vadd.f32 %v2811, %v3049
        %3051 = vmatprep.mubr.f32.mxu0 %v2676
        %3052 = vmatmul.mubr.f32.gmra.mrb[0].mxu0 %v2675
        %v3053 = vpop.f32.mrb[0].mxu0
        %v3054 = vadd.f32 %v2816, %v3053
        %v3055 = vpop.f32.mrb[0].mxu0
        %v3056 = vadd.f32 %v2816, %v3055
        %3057 = vmatprep.mubr.f32.mxu0 %v2678
        %3058 = vmatmul.mubr.f32.gmra.mrb[0].mxu0 %v2677
        %v3059 = vpop.f32.mrb[0].mxu0
        %v3060 = vadd.f32 %v2821, %v3059
        %v3061 = vpop.f32.mrb[0].mxu0
        %v3062 = vadd.f32 %v2821, %v3061
        %3063 = vmatprep.mubr.f32.mxu0 %v2680
        %3064 = vmatmul.mubr.f32.gmra.mrb[0].mxu0 %v2679
        %v3065 = vpop.f32.mrb[0].mxu0
        %v3066 = vadd.f32 %v2826, %v3065
        %v3067 = vpop.f32.mrb[0].mxu0
        %v3068 = vadd.f32 %v2826, %v3067
        %3069 = vmatprep.mubr.f32.mxu0 %v2682
        %3070 = vmatmul.mubr.f32.gmra.mrb[0].mxu0 %v2681
        %v3071 = vpop.f32.mrb[0].mxu0
        %v3072 = vadd.f32 %v2831, %v3071
        %v3073 = vpop.f32.mrb[0].mxu0
        %v3074 = vadd.f32 %v2831, %v3073
        %3075 = vmatprep.mubr.f32.mxu0 %v2684
        %3076 = vmatmul.mubr.f32.gmra.mrb[0].mxu0 %v2683
        %v3077 = vpop.f32.mrb[0].mxu0
        %v3078 = vadd.f32 %v2836, %v3077
        %v3079 = vpop.f32.mrb[0].mxu0
        %v3080 = vadd.f32 %v2836, %v3079
        %3081 = vmatprep.mubr.f32.mxu0 %v2686
        %3082 = vmatmul.mubr.f32.gmra.mrb[0].mxu0 %v2685
        %v3083 = vpop.f32.mrb[0].mxu0
        %v3084 = vadd.f32 %v2841, %v3083
        %v3085 = vpop.f32.mrb[0].mxu0
        %v3086 = vadd.f32 %v2841, %v3085
        %3087 = vmatprep.mubr.f32.mxu0 %v2688
        %3088 = vmatmul.mubr.f32.gmra.mrb[0].mxu0 %v2687
        %v3089 = vpop.f32.mrb[0].mxu0
        %v3090 = vadd.f32 %v2846, %v3089
        %v3091 = vpop.f32.mrb[0].mxu0
        %v3092 = vadd.f32 %v2846, %v3091
        %3093 = vmatprep.mubr.f32.mxu0 %v2690
        %3094 = vmatmul.mubr.f32.gmra.mrb[0].mxu0 %v2689
        %v3095 = vpop.f32.mrb[0].mxu0
        %v3096 = vadd.f32 %v2851, %v3095
        %v3097 = vpop.f32.mrb[0].mxu0
        %v3098 = vadd.f32 %v2851, %v3097
        %3099 = vmatprep.mubr.f32.mxu0 %v2692
        %3100 = vmatmul.mubr.f32.gmra.mrb[0].mxu0 %v2691
        %v3101 = vpop.f32.mrb[0].mxu0
        %v3102 = vadd.f32 %v2856, %v3101
        %v3103 = vpop.f32.mrb[0].mxu0
        %v3104 = vadd.f32 %v2856, %v3103
        %3105 = vmatprep.mubr.f32.mxu0 %v2694
        %3106 = vmatmul.mubr.f32.gmra.mrb[0].mxu0 %v2693
        %v3107 = vpop.f32.mrb[0].mxu0
        %v3108 = vadd.f32 %v2861, %v3107
        %v3109 = vpop.f32.mrb[0].mxu0
        %v3110 = vadd.f32 %v2861, %v3109
        %3111 = vmatprep.mubr.f32.mxu0 %v2696
        %3112 = vmatmul.mubr.f32.gmra.mrb[0].mxu0 %v2695
        %v3113 = vpop.f32.mrb[0].mxu0
        %v3114 = vadd.f32 %v2866, %v3113
        %v3115 = vpop.f32.mrb[0].mxu0
        %v3116 = vadd.f32 %v2866, %v3115
        %3117 = vmatprep.mubr.f32.mxu0 %v2698
        %3118 = vmatmul.mubr.f32.gmra.mrb[0].mxu0 %v2697
        %v3119 = vpop.f32.mrb[0].mxu0
        %v3120 = vadd.f32 %v2871, %v3119
        %v3121 = vpop.f32.mrb[0].mxu0
        %v3122 = vadd.f32 %v2871, %v3121
        %3123 = vmatprep.mubr.f32.mxu0 %v2700
        %3124 = vmatmul.mubr.f32.gmra.mrb[0].mxu0 %v2699
        %v3125 = vpop.f32.mrb[0].mxu0
        %v3126 = vadd.f32 %v2876, %v3125
        %v3127 = vpop.f32.mrb[0].mxu0
        %v3128 = vadd.f32 %v2876, %v3127
        %3129 = vmatprep.mubr.f32.mxu0 %v2702
        %3130 = vmatmul.mubr.f32.gmra.mrb[0].mxu0 %v2701
        %v3131 = vpop.f32.mrb[0].mxu0
        %v3132 = vadd.f32 %v2881, %v3131
        %v3133 = vpop.f32.mrb[0].mxu0
        %v3134 = vadd.f32 %v2881, %v3133
        %3135 = vmatprep.mubr.f32.mxu0 %v2704
        %3136 = vmatmul.mubr.f32.gmra.mrb[0].mxu0 %v2703
        %v3137 = vpop.f32.mrb[0].mxu0
        %v3138 = vadd.f32 %v2886, %v3137
        %v3139 = vpop.f32.mrb[0].mxu0
        %v3140 = vadd.f32 %v2886, %v3139
        %3141 = vmatprep.mubr.f32.mxu0 %v2706
        %3142 = vmatmul.mubr.f32.gmra.mrb[0].mxu0 %v2705
        %v3143 = vpop.f32.mrb[0].mxu0
        %v3144 = vadd.f32 %v2891, %v3143
        %v3145 = vpop.f32.mrb[0].mxu0
        %v3146 = vadd.f32 %v2891, %v3145
        %3147 = vmatprep.mubr.f32.mxu0 %v2708
        %3148 = vmatmul.mubr.f32.gmra.mrb[0].mxu0 %v2707
        %v3149 = vpop.f32.mrb[0].mxu0
        %v3150 = vadd.f32 %v2896, %v3149
        %v3151 = vpop.f32.mrb[0].mxu0
        %v3152 = vadd.f32 %v2896, %v3151
        %3153 = vmatprep.mubr.f32.mxu0 %v2710
        %3154 = vmatmul.mubr.f32.gmra.mrb[0].mxu0 %v2709
        %v3155 = vpop.f32.mrb[0].mxu0
        %v3156 = vadd.f32 %v2901, %v3155
        %v3157 = vpop.f32.mrb[0].mxu0
        %v3158 = vadd.f32 %v2901, %v3157
        %3159 = vdwg.mxu0
        %3160 = vmatprep.subr.mxu0 %v2522
        %3161 = vmatpush1.msra.mxu0 %v2521
        %3162 = vmatprep.subr.mxu0 %v2526
        %3163 = vmatpush1.msra.mxu0 %v2525
        %3164 = vmatprep.subr.mxu0 %v2530
        %3165 = vmatpush1.msra.mxu0 %v2529
        %3166 = vmatprep.subr.mxu0 %v2534
        %3167 = vmatpush1.msra.mxu0 %v2533
        %3168 = vmatprep.subr.mxu0 %v2538
        %3169 = vmatpush1.msra.mxu0 %v2537
        %3170 = vmatprep.subr.mxu0 %v2542
        %3171 = vmatpush1.msra.mxu0 %v2541
        %3172 = vmatprep.subr.mxu0 %v2546
        %3173 = vmatpush1.msra.mxu0 %v2545
        %3174 = vmatprep.subr.mxu0 %v2550
        %3175 = vmatpush1.msra.mxu0 %v2549
        %3176 = vmatprep.subr.mxu0 %v2554
        %3177 = vmatpush1.msra.mxu0 %v2553
        %3178 = vmatprep.subr.mxu0 %v2558
        %3179 = vmatpush1.msra.mxu0 %v2557
        %3180 = vmatprep.subr.mxu0 %v2562
        %3181 = vmatpush1.msra.mxu0 %v2561
        %3182 = vmatprep.subr.mxu0 %v2566
        %3183 = vmatpush1.msra.mxu0 %v2565
        %3184 = vmatprep.subr.mxu0 %v2570
        %3185 = vmatpush1.msra.mxu0 %v2569
        %3186 = vmatprep.subr.mxu0 %v2574
        %3187 = vmatpush1.msra.mxu0 %v2573
        %3188 = vmatprep.subr.mxu0 %v2578
        %3189 = vmatpush1.msra.mxu0 %v2577
        %3190 = vmatprep.subr.mxu0 %v2582
        %3191 = vmatpush1.msra.mxu0 %v2581
        %3192 = vmatprep.subr.mxu0 %v2586
        %3193 = vmatpush1.msra.mxu0 %v2585
        %3194 = vmatprep.subr.mxu0 %v2590
        %3195 = vmatpush1.msra.mxu0 %v2589
        %3196 = vmatprep.subr.mxu0 %v2594
        %3197 = vmatpush1.msra.mxu0 %v2593
        %3198 = vmatprep.subr.mxu0 %v2598
        %3199 = vmatpush1.msra.mxu0 %v2597
        %3200 = vmatprep.subr.mxu0 %v2602
        %3201 = vmatpush1.msra.mxu0 %v2601
        %3202 = vmatprep.subr.mxu0 %v2606
        %3203 = vmatpush1.msra.mxu0 %v2605
        %3204 = vmatprep.subr.mxu0 %v2610
        %3205 = vmatpush1.msra.mxu0 %v2609
        %3206 = vmatprep.subr.mxu0 %v2614
        %3207 = vmatpush1.msra.mxu0 %v2613
        %3208 = vmatprep.subr.mxu0 %v2618
        %3209 = vmatpush1.msra.mxu0 %v2617
        %3210 = vmatprep.subr.mxu0 %v2622
        %3211 = vmatpush1.msra.mxu0 %v2621
        %3212 = vmatprep.subr.mxu0 %v2626
        %3213 = vmatpush1.msra.mxu0 %v2625
        %3214 = vmatprep.subr.mxu0 %v2630
        %3215 = vmatpush1.msra.mxu0 %v2629
        %3216 = vmatprep.subr.mxu0 %v2634
        %3217 = vmatpush1.msra.mxu0 %v2633
        %3218 = vmatprep.subr.mxu0 %v2638
        %3219 = vmatpush1.msra.mxu0 %v2637
        %3220 = vmatprep.subr.mxu0 %v2642
        %3221 = vmatpush1.msra.mxu0 %v2641
        %3222 = vmatprep.subr.mxu0 %v2646
        %3223 = vmatpush1.msra.mxu0 %v2645
        %3224 = vmatprep.mubr.f32.mxu0 %v2648
        %3225 = vmatmul.mubr.f32.gmra.mrb[0].mxu0 %v2647
        %v3226 = vpop.f32.mrb[0].mxu0
        %v3227 = vadd.f32 %v2746, %v3226
        %v3228 = vpop.f32.mrb[0].mxu0
        %v3229 = vadd.f32 %v2746, %v3228
        %3230 = vmatprep.mubr.f32.mxu0 %v2650
        %3231 = vmatmul.mubr.f32.gmra.mrb[0].mxu0 %v2649
        %v3232 = vpop.f32.mrb[0].mxu0
        %v3233 = vadd.f32 %v2751, %v3232
        %v3234 = vpop.f32.mrb[0].mxu0
        %v3235 = vadd.f32 %v2751, %v3234
        %3236 = vmatprep.mubr.f32.mxu0 %v2652
        %3237 = vmatmul.mubr.f32.gmra.mrb[0].mxu0 %v2651
        %v3238 = vpop.f32.mrb[0].mxu0
        %v3239 = vadd.f32 %v2756, %v3238
        %v3240 = vpop.f32.mrb[0].mxu0
        %v3241 = vadd.f32 %v2756, %v3240
        %3242 = vmatprep.mubr.f32.mxu0 %v2654
        %3243 = vmatmul.mubr.f32.gmra.mrb[0].mxu0 %v2653
        %v3244 = vpop.f32.mrb[0].mxu0
        %v3245 = vadd.f32 %v2761, %v3244
        %v3246 = vpop.f32.mrb[0].mxu0
        %v3247 = vadd.f32 %v2761, %v3246
        %3248 = vmatprep.mubr.f32.mxu0 %v2656
        %3249 = vmatmul.mubr.f32.gmra.mrb[0].mxu0 %v2655
        %v3250 = vpop.f32.mrb[0].mxu0
        %v3251 = vadd.f32 %v2766, %v3250
        %v3252 = vpop.f32.mrb[0].mxu0
        %v3253 = vadd.f32 %v2766, %v3252
        %3254 = vmatprep.mubr.f32.mxu0 %v2658
        %3255 = vmatmul.mubr.f32.gmra.mrb[0].mxu0 %v2657
        %v3256 = vpop.f32.mrb[0].mxu0
        %v3257 = vadd.f32 %v2771, %v3256
        %v3258 = vpop.f32.mrb[0].mxu0
        %v3259 = vadd.f32 %v2771, %v3258
        %3260 = vmatprep.mubr.f32.mxu0 %v2660
        %3261 = vmatmul.mubr.f32.gmra.mrb[0].mxu0 %v2659
        %v3262 = vpop.f32.mrb[0].mxu0
        %v3263 = vadd.f32 %v2776, %v3262
        %v3264 = vpop.f32.mrb[0].mxu0
        %v3265 = vadd.f32 %v2776, %v3264
        %3266 = vmatprep.mubr.f32.mxu0 %v2662
        %3267 = vmatmul.mubr.f32.gmra.mrb[0].mxu0 %v2661
        %v3268 = vpop.f32.mrb[0].mxu0
        %v3269 = vadd.f32 %v2781, %v3268
        %v3270 = vpop.f32.mrb[0].mxu0
        %v3271 = vadd.f32 %v2781, %v3270
        %3272 = vmatprep.mubr.f32.mxu0 %v2664
        %3273 = vmatmul.mubr.f32.gmra.mrb[0].mxu0 %v2663
        %v3274 = vpop.f32.mrb[0].mxu0
        %v3275 = vadd.f32 %v2786, %v3274
        %v3276 = vpop.f32.mrb[0].mxu0
        %v3277 = vadd.f32 %v2786, %v3276
        %3278 = vmatprep.mubr.f32.mxu0 %v2666
        %3279 = vmatmul.mubr.f32.gmra.mrb[0].mxu0 %v2665
        %v3280 = vpop.f32.mrb[0].mxu0
        %v3281 = vadd.f32 %v2791, %v3280
        %v3282 = vpop.f32.mrb[0].mxu0
        %v3283 = vadd.f32 %v2791, %v3282
        %3284 = vmatprep.mubr.f32.mxu0 %v2668
        %3285 = vmatmul.mubr.f32.gmra.mrb[0].mxu0 %v2667
        %v3286 = vpop.f32.mrb[0].mxu0
        %v3287 = vadd.f32 %v2796, %v3286
        %v3288 = vpop.f32.mrb[0].mxu0
        %v3289 = vadd.f32 %v2796, %v3288
        %3290 = vmatprep.mubr.f32.mxu0 %v2670
        %3291 = vmatmul.mubr.f32.gmra.mrb[0].mxu0 %v2669
        %v3292 = vpop.f32.mrb[0].mxu0
        %v3293 = vadd.f32 %v2801, %v3292
        %v3294 = vpop.f32.mrb[0].mxu0
        %v3295 = vadd.f32 %v2801, %v3294
        %3296 = vmatprep.mubr.f32.mxu0 %v2672
        %3297 = vmatmul.mubr.f32.gmra.mrb[0].mxu0 %v2671
        %v3298 = vpop.f32.mrb[0].mxu0
        %v3299 = vadd.f32 %v2806, %v3298
        %v3300 = vpop.f32.mrb[0].mxu0
        %v3301 = vadd.f32 %v2806, %v3300
        %3302 = vmatprep.mubr.f32.mxu0 %v2674
        %3303 = vmatmul.mubr.f32.gmra.mrb[0].mxu0 %v2673
        %v3304 = vpop.f32.mrb[0].mxu0
        %v3305 = vadd.f32 %v2811, %v3304
        %v3306 = vpop.f32.mrb[0].mxu0
        %v3307 = vadd.f32 %v2811, %v3306
        %3308 = vmatprep.mubr.f32.mxu0 %v2676
        %3309 = vmatmul.mubr.f32.gmra.mrb[0].mxu0 %v2675
        %v3310 = vpop.f32.mrb[0].mxu0
        %v3311 = vadd.f32 %v2816, %v3310
        %v3312 = vpop.f32.mrb[0].mxu0
        %v3313 = vadd.f32 %v2816, %v3312
        %3314 = vmatprep.mubr.f32.mxu0 %v2678
        %3315 = vmatmul.mubr.f32.gmra.mrb[0].mxu0 %v2677
        %v3316 = vpop.f32.mrb[0].mxu0
        %v3317 = vadd.f32 %v2821, %v3316
        %v3318 = vpop.f32.mrb[0].mxu0
        %v3319 = vadd.f32 %v2821, %v3318
        %3320 = vmatprep.mubr.f32.mxu0 %v2680
        %3321 = vmatmul.mubr.f32.gmra.mrb[0].mxu0 %v2679
        %v3322 = vpop.f32.mrb[0].mxu0
        %v3323 = vadd.f32 %v2826, %v3322
        %v3324 = vpop.f32.mrb[0].mxu0
        %v3325 = vadd.f32 %v2826, %v3324
        %3326 = vmatprep.mubr.f32.mxu0 %v2682
        %3327 = vmatmul.mubr.f32.gmra.mrb[0].mxu0 %v2681
        %v3328 = vpop.f32.mrb[0].mxu0
        %v3329 = vadd.f32 %v2831, %v3328
        %v3330 = vpop.f32.mrb[0].mxu0
        %v3331 = vadd.f32 %v2831, %v3330
        %3332 = vmatprep.mubr.f32.mxu0 %v2684
        %3333 = vmatmul.mubr.f32.gmra.mrb[0].mxu0 %v2683
        %v3334 = vpop.f32.mrb[0].mxu0
        %v3335 = vadd.f32 %v2836, %v3334
        %v3336 = vpop.f32.mrb[0].mxu0
        %v3337 = vadd.f32 %v2836, %v3336
        %3338 = vmatprep.mubr.f32.mxu0 %v2686
        %3339 = vmatmul.mubr.f32.gmra.mrb[0].mxu0 %v2685
        %v3340 = vpop.f32.mrb[0].mxu0
        %v3341 = vadd.f32 %v2841, %v3340
        %v3342 = vpop.f32.mrb[0].mxu0
        %v3343 = vadd.f32 %v2841, %v3342
        %3344 = vmatprep.mubr.f32.mxu0 %v2688
        %3345 = vmatmul.mubr.f32.gmra.mrb[0].mxu0 %v2687
        %v3346 = vpop.f32.mrb[0].mxu0
        %v3347 = vadd.f32 %v2846, %v3346
        %v3348 = vpop.f32.mrb[0].mxu0
        %v3349 = vadd.f32 %v2846, %v3348
        %3350 = vmatprep.mubr.f32.mxu0 %v2690
        %3351 = vmatmul.mubr.f32.gmra.mrb[0].mxu0 %v2689
        %v3352 = vpop.f32.mrb[0].mxu0
        %v3353 = vadd.f32 %v2851, %v3352
        %v3354 = vpop.f32.mrb[0].mxu0
        %v3355 = vadd.f32 %v2851, %v3354
        %3356 = vmatprep.mubr.f32.mxu0 %v2692
        %3357 = vmatmul.mubr.f32.gmra.mrb[0].mxu0 %v2691
        %v3358 = vpop.f32.mrb[0].mxu0
        %v3359 = vadd.f32 %v2856, %v3358
        %v3360 = vpop.f32.mrb[0].mxu0
        %v3361 = vadd.f32 %v2856, %v3360
        %3362 = vmatprep.mubr.f32.mxu0 %v2694
        %3363 = vmatmul.mubr.f32.gmra.mrb[0].mxu0 %v2693
        %v3364 = vpop.f32.mrb[0].mxu0
        %v3365 = vadd.f32 %v2861, %v3364
        %v3366 = vpop.f32.mrb[0].mxu0
        %v3367 = vadd.f32 %v2861, %v3366
        %3368 = vmatprep.mubr.f32.mxu0 %v2696
        %3369 = vmatmul.mubr.f32.gmra.mrb[0].mxu0 %v2695
        %v3370 = vpop.f32.mrb[0].mxu0
        %v3371 = vadd.f32 %v2866, %v3370
        %v3372 = vpop.f32.mrb[0].mxu0
        %v3373 = vadd.f32 %v2866, %v3372
        %3374 = vmatprep.mubr.f32.mxu0 %v2698
        %3375 = vmatmul.mubr.f32.gmra.mrb[0].mxu0 %v2697
        %v3376 = vpop.f32.mrb[0].mxu0
        %v3377 = vadd.f32 %v2871, %v3376
        %v3378 = vpop.f32.mrb[0].mxu0
        %v3379 = vadd.f32 %v2871, %v3378
        %3380 = vmatprep.mubr.f32.mxu0 %v2700
        %3381 = vmatmul.mubr.f32.gmra.mrb[0].mxu0 %v2699
        %v3382 = vpop.f32.mrb[0].mxu0
        %v3383 = vadd.f32 %v2876, %v3382
        %v3384 = vpop.f32.mrb[0].mxu0
        %v3385 = vadd.f32 %v2876, %v3384
        %3386 = vmatprep.mubr.f32.mxu0 %v2702
        %3387 = vmatmul.mubr.f32.gmra.mrb[0].mxu0 %v2701
        %v3388 = vpop.f32.mrb[0].mxu0
        %v3389 = vadd.f32 %v2881, %v3388
        %v3390 = vpop.f32.mrb[0].mxu0
        %v3391 = vadd.f32 %v2881, %v3390
        %3392 = vmatprep.mubr.f32.mxu0 %v2704
        %3393 = vmatmul.mubr.f32.gmra.mrb[0].mxu0 %v2703
        %v3394 = vpop.f32.mrb[0].mxu0
        %v3395 = vadd.f32 %v2886, %v3394
        %v3396 = vpop.f32.mrb[0].mxu0
        %v3397 = vadd.f32 %v2886, %v3396
        %3398 = vmatprep.mubr.f32.mxu0 %v2706
        %3399 = vmatmul.mubr.f32.gmra.mrb[0].mxu0 %v2705
        %v3400 = vpop.f32.mrb[0].mxu0
        %v3401 = vadd.f32 %v2891, %v3400
        %v3402 = vpop.f32.mrb[0].mxu0
        %v3403 = vadd.f32 %v2891, %v3402
        %3404 = vmatprep.mubr.f32.mxu0 %v2708
        %3405 = vmatmul.mubr.f32.gmra.mrb[0].mxu0 %v2707
        %v3406 = vpop.f32.mrb[0].mxu0
        %v3407 = vadd.f32 %v2896, %v3406
        %v3408 = vpop.f32.mrb[0].mxu0
        %v3409 = vadd.f32 %v2896, %v3408
        %3410 = vmatprep.mubr.f32.mxu0 %v2710
        %3411 = vmatmul.mubr.f32.gmra.mrb[0].mxu0 %v2709
        %v3412 = vpop.f32.mrb[0].mxu0
        %v3413 = vadd.f32 %v2901, %v3412
        %v3414 = vpop.f32.mrb[0].mxu0
        %v3415 = vadd.f32 %v2901, %v3414
        %3416 = vdwg.mxu0
        %v3417 = vmax.f32 %v2970, 0.0
        %v3418 = vmax.f32 %v2972, 0.0
        %v3419 = vmax.f32 %v3227, 0.0
        %v3420 = vmax.f32 %v3229, 0.0
        %v3421 = vmax.f32 %v2976, 0.0
        %v3422 = vmax.f32 %v2978, 0.0
        %v3423 = vmax.f32 %v3233, 0.0
        %v3424 = vmax.f32 %v3235, 0.0
        %v3425 = vmax.f32 %v2982, 0.0
        %v3426 = vmax.f32 %v2984, 0.0
        %v3427 = vmax.f32 %v3239, 0.0
        %v3428 = vmax.f32 %v3241, 0.0
        %v3429 = vmax.f32 %v2988, 0.0
        %v3430 = vmax.f32 %v2990, 0.0
        %v3431 = vmax.f32 %v3245, 0.0
        %v3432 = vmax.f32 %v3247, 0.0
        %v3433 = vmax.f32 %v2994, 0.0
        %v3434 = vmax.f32 %v2996, 0.0
        %v3435 = vmax.f32 %v3251, 0.0
        %v3436 = vmax.f32 %v3253, 0.0
        %v3437 = vmax.f32 %v3000, 0.0
        %v3438 = vmax.f32 %v3002, 0.0
        %v3439 = vmax.f32 %v3257, 0.0
        %v3440 = vmax.f32 %v3259, 0.0
        %v3441 = vmax.f32 %v3006, 0.0
        %v3442 = vmax.f32 %v3008, 0.0
        %v3443 = vmax.f32 %v3263, 0.0
        %v3444 = vmax.f32 %v3265, 0.0
        %v3445 = vmax.f32 %v3012, 0.0
        %v3446 = vmax.f32 %v3014, 0.0
        %v3447 = vmax.f32 %v3269, 0.0
        %v3448 = vmax.f32 %v3271, 0.0
        %v3449 = vmax.f32 %v3018, 0.0
        %v3450 = vmax.f32 %v3020, 0.0
        %v3451 = vmax.f32 %v3275, 0.0
        %v3452 = vmax.f32 %v3277, 0.0
        %v3453 = vmax.f32 %v3024, 0.0
        %v3454 = vmax.f32 %v3026, 0.0
        %v3455 = vmax.f32 %v3281, 0.0
        %v3456 = vmax.f32 %v3283, 0.0
        %v3457 = vmax.f32 %v3030, 0.0
        %v3458 = vmax.f32 %v3032, 0.0
        %v3459 = vmax.f32 %v3287, 0.0
        %v3460 = vmax.f32 %v3289, 0.0
        %v3461 = vmax.f32 %v3036, 0.0
        %v3462 = vmax.f32 %v3038, 0.0
        %v3463 = vmax.f32 %v3293, 0.0
        %v3464 = vmax.f32 %v3295, 0.0
        %v3465 = vmax.f32 %v3042, 0.0
        %v3466 = vmax.f32 %v3044, 0.0
        %v3467 = vmax.f32 %v3299, 0.0
        %v3468 = vmax.f32 %v3301, 0.0
        %v3469 = vmax.f32 %v3048, 0.0
        %v3470 = vmax.f32 %v3050, 0.0
        %v3471 = vmax.f32 %v3305, 0.0
        %v3472 = vmax.f32 %v3307, 0.0
        %v3473 = vmax.f32 %v3054, 0.0
        %v3474 = vmax.f32 %v3056, 0.0
        %v3475 = vmax.f32 %v3311, 0.0
        %v3476 = vmax.f32 %v3313, 0.0
        %v3477 = vmax.f32 %v3060, 0.0
        %v3478 = vmax.f32 %v3062, 0.0
        %v3479 = vmax.f32 %v3317, 0.0
        %v3480 = vmax.f32 %v3319, 0.0
        %v3481 = vmax.f32 %v3066, 0.0
        %v3482 = vmax.f32 %v3068, 0.0
        %v3483 = vmax.f32 %v3323, 0.0
        %v3484 = vmax.f32 %v3325, 0.0
        %v3485 = vmax.f32 %v3072, 0.0
        %v3486 = vmax.f32 %v3074, 0.0
        %v3487 = vmax.f32 %v3329, 0.0
        %v3488 = vmax.f32 %v3331, 0.0
        %v3489 = vmax.f32 %v3078, 0.0
        %v3490 = vmax.f32 %v3080, 0.0
        %v3491 = vmax.f32 %v3335, 0.0
        %v3492 = vmax.f32 %v3337, 0.0
        %v3493 = vmax.f32 %v3084, 0.0
        %v3494 = vmax.f32 %v3086, 0.0
        %v3495 = vmax.f32 %v3341, 0.0
        %v3496 = vmax.f32 %v3343, 0.0
        %v3497 = vmax.f32 %v3090, 0.0
        %v3498 = vmax.f32 %v3092, 0.0
        %v3499 = vmax.f32 %v3347, 0.0
        %v3500 = vmax.f32 %v3349, 0.0
        %v3501 = vmax.f32 %v3096, 0.0
        %v3502 = vmax.f32 %v3098, 0.0
        %v3503 = vmax.f32 %v3353, 0.0
        %v3504 = vmax.f32 %v3355, 0.0
        %v3505 = vmax.f32 %v3102, 0.0
        %v3506 = vmax.f32 %v3104, 0.0
        %v3507 = vmax.f32 %v3359, 0.0
        %v3508 = vmax.f32 %v3361, 0.0
        %v3509 = vmax.f32 %v3108, 0.0
        %v3510 = vmax.f32 %v3110, 0.0
        %v3511 = vmax.f32 %v3365, 0.0
        %v3512 = vmax.f32 %v3367, 0.0
        %v3513 = vmax.f32 %v3114, 0.0
        %v3514 = vmax.f32 %v3116, 0.0
        %v3515 = vmax.f32 %v3371, 0.0
        %v3516 = vmax.f32 %v3373, 0.0
        %v3517 = vmax.f32 %v3120, 0.0
        %v3518 = vmax.f32 %v3122, 0.0
        %v3519 = vmax.f32 %v3377, 0.0
        %v3520 = vmax.f32 %v3379, 0.0
        %v3521 = vmax.f32 %v3126, 0.0
        %v3522 = vmax.f32 %v3128, 0.0
        %v3523 = vmax.f32 %v3383, 0.0
        %v3524 = vmax.f32 %v3385, 0.0
        %v3525 = vmax.f32 %v3132, 0.0
        %v3526 = vmax.f32 %v3134, 0.0
        %v3527 = vmax.f32 %v3389, 0.0
        %v3528 = vmax.f32 %v3391, 0.0
        %v3529 = vmax.f32 %v3138, 0.0
        %v3530 = vmax.f32 %v3140, 0.0
        %v3531 = vmax.f32 %v3395, 0.0
        %v3532 = vmax.f32 %v3397, 0.0
        %v3533 = vmax.f32 %v3144, 0.0
        %v3534 = vmax.f32 %v3146, 0.0
        %v3535 = vmax.f32 %v3401, 0.0
        %v3536 = vmax.f32 %v3403, 0.0
        %v3537 = vmax.f32 %v3150, 0.0
        %v3538 = vmax.f32 %v3152, 0.0
        %v3539 = vmax.f32 %v3407, 0.0
        %v3540 = vmax.f32 %v3409, 0.0
        %v3541 = vmax.f32 %v3156, 0.0
        %v3542 = vmax.f32 %v3158, 0.0
        %v3543 = vmax.f32 %v3413, 0.0
        %v3544 = vmax.f32 %v3415, 0.0
        %v3545 = vld [vmem:[%s7] sm:$0xff]
        %v3546 = vld [vmem:[%s7 + $0x8] sm:$0xff]
        %v3547 = vld [vmem:[%s7 + $0x10] sm:$0xff]
        %v3548 = vld [vmem:[%s7 + $0x18] sm:$0xff]
        %v3549 = vld [vmem:[%s7 + $0x20] sm:$0xff]
        %v3550 = vld [vmem:[%s7 + $0x28] sm:$0xff]
        %v3551 = vld [vmem:[%s7 + $0x30] sm:$0xff]
        %v3552 = vld [vmem:[%s7 + $0x38] sm:$0xff]
        %v3553 = vld [vmem:[%s7 + $0x40] sm:$0xff]
        %v3554 = vld [vmem:[%s7 + $0x48] sm:$0xff]
        %v3555 = vld [vmem:[%s7 + $0x50] sm:$0xff]
        %v3556 = vld [vmem:[%s7 + $0x58] sm:$0xff]
        %v3557 = vld [vmem:[%s7 + $0x60] sm:$0xff]
        %v3558 = vld [vmem:[%s7 + $0x68] sm:$0xff]
        %v3559 = vld [vmem:[%s7 + $0x70] sm:$0xff]
        %v3560 = vld [vmem:[%s7 + $0x78] sm:$0xff]
        %v3561 = vld [vmem:[%s7 + $0x80] sm:$0xff]
        %v3562 = vld [vmem:[%s7 + $0x88] sm:$0xff]
        %v3563 = vld [vmem:[%s7 + $0x90] sm:$0xff]
        %v3564 = vld [vmem:[%s7 + $0x98] sm:$0xff]
        %v3565 = vld [vmem:[%s7 + $0xa0] sm:$0xff]
        %v3566 = vld [vmem:[%s7 + $0xa8] sm:$0xff]
        %v3567 = vld [vmem:[%s7 + $0xb0] sm:$0xff]
        %v3568 = vld [vmem:[%s7 + $0xb8] sm:$0xff]
        %v3569 = vld [vmem:[%s7 + $0xc0] sm:$0xff]
        %v3570 = vld [vmem:[%s7 + $0xc8] sm:$0xff]
        %v3571 = vld [vmem:[%s7 + $0xd0] sm:$0xff]
        %v3572 = vld [vmem:[%s7 + $0xd8] sm:$0xff]
        %v3573 = vld [vmem:[%s7 + $0xe0] sm:$0xff]
        %v3574 = vld [vmem:[%s7 + $0xe8] sm:$0xff]
        %v3575 = vld [vmem:[%s7 + $0xf0] sm:$0xff]
        %v3576 = vld [vmem:[%s7 + $0xf8] sm:$0xff]
        %3578 = vset.pattern.permute.xlu0 0
        %3579 = vperm.xlu0 %3578, %v3545
        %v3580 = vpop.permute.xlu0 %3579
        %3583 = vset.pattern.permute.xlu0 0
        %3584 = vperm.xlu0 %3583, %v3546
        %v3585 = vpop.permute.xlu0 %3584
        %3588 = vset.pattern.permute.xlu0 0
        %3589 = vperm.xlu0 %3588, %v3547
        %v3590 = vpop.permute.xlu0 %3589
        %3593 = vset.pattern.permute.xlu0 0
        %3594 = vperm.xlu0 %3593, %v3548
        %v3595 = vpop.permute.xlu0 %3594
        %3598 = vset.pattern.permute.xlu0 0
        %3599 = vperm.xlu0 %3598, %v3549
        %v3600 = vpop.permute.xlu0 %3599
        %3603 = vset.pattern.permute.xlu0 0
        %3604 = vperm.xlu0 %3603, %v3550
        %v3605 = vpop.permute.xlu0 %3604
        %3608 = vset.pattern.permute.xlu0 0
        %3609 = vperm.xlu0 %3608, %v3551
        %v3610 = vpop.permute.xlu0 %3609
        %3613 = vset.pattern.permute.xlu0 0
        %3614 = vperm.xlu0 %3613, %v3552
        %v3615 = vpop.permute.xlu0 %3614
        %3618 = vset.pattern.permute.xlu0 0
        %3619 = vperm.xlu0 %3618, %v3553
        %v3620 = vpop.permute.xlu0 %3619
        %3623 = vset.pattern.permute.xlu0 0
        %3624 = vperm.xlu0 %3623, %v3554
        %v3625 = vpop.permute.xlu0 %3624
        %3628 = vset.pattern.permute.xlu0 0
        %3629 = vperm.xlu0 %3628, %v3555
        %v3630 = vpop.permute.xlu0 %3629
        %3633 = vset.pattern.permute.xlu0 0
        %3634 = vperm.xlu0 %3633, %v3556
        %v3635 = vpop.permute.xlu0 %3634
        %3638 = vset.pattern.permute.xlu0 0
        %3639 = vperm.xlu0 %3638, %v3557
        %v3640 = vpop.permute.xlu0 %3639
        %3643 = vset.pattern.permute.xlu0 0
        %3644 = vperm.xlu0 %3643, %v3558
        %v3645 = vpop.permute.xlu0 %3644
        %3648 = vset.pattern.permute.xlu0 0
        %3649 = vperm.xlu0 %3648, %v3559
        %v3650 = vpop.permute.xlu0 %3649
        %3653 = vset.pattern.permute.xlu0 0
        %3654 = vperm.xlu0 %3653, %v3560
        %v3655 = vpop.permute.xlu0 %3654
        %3658 = vset.pattern.permute.xlu0 0
        %3659 = vperm.xlu0 %3658, %v3561
        %v3660 = vpop.permute.xlu0 %3659
        %3663 = vset.pattern.permute.xlu0 0
        %3664 = vperm.xlu0 %3663, %v3562
        %v3665 = vpop.permute.xlu0 %3664
        %3668 = vset.pattern.permute.xlu0 0
        %3669 = vperm.xlu0 %3668, %v3563
        %v3670 = vpop.permute.xlu0 %3669
        %3673 = vset.pattern.permute.xlu0 0
        %3674 = vperm.xlu0 %3673, %v3564
        %v3675 = vpop.permute.xlu0 %3674
        %3678 = vset.pattern.permute.xlu0 0
        %3679 = vperm.xlu0 %3678, %v3565
        %v3680 = vpop.permute.xlu0 %3679
        %3683 = vset.pattern.permute.xlu0 0
        %3684 = vperm.xlu0 %3683, %v3566
        %v3685 = vpop.permute.xlu0 %3684
        %3688 = vset.pattern.permute.xlu0 0
        %3689 = vperm.xlu0 %3688, %v3567
        %v3690 = vpop.permute.xlu0 %3689
        %3693 = vset.pattern.permute.xlu0 0
        %3694 = vperm.xlu0 %3693, %v3568
        %v3695 = vpop.permute.xlu0 %3694
        %3698 = vset.pattern.permute.xlu0 0
        %3699 = vperm.xlu0 %3698, %v3569
        %v3700 = vpop.permute.xlu0 %3699
        %3703 = vset.pattern.permute.xlu0 0
        %3704 = vperm.xlu0 %3703, %v3570
        %v3705 = vpop.permute.xlu0 %3704
        %3708 = vset.pattern.permute.xlu0 0
        %3709 = vperm.xlu0 %3708, %v3571
        %v3710 = vpop.permute.xlu0 %3709
        %3713 = vset.pattern.permute.xlu0 0
        %3714 = vperm.xlu0 %3713, %v3572
        %v3715 = vpop.permute.xlu0 %3714
        %3718 = vset.pattern.permute.xlu0 0
        %3719 = vperm.xlu0 %3718, %v3573
        %v3720 = vpop.permute.xlu0 %3719
        %3723 = vset.pattern.permute.xlu0 0
        %3724 = vperm.xlu0 %3723, %v3574
        %v3725 = vpop.permute.xlu0 %3724
        %3728 = vset.pattern.permute.xlu0 0
        %3729 = vperm.xlu0 %3728, %v3575
        %v3730 = vpop.permute.xlu0 %3729
        %3733 = vset.pattern.permute.xlu0 0
        %3734 = vperm.xlu0 %3733, %v3576
        %v3735 = vpop.permute.xlu0 %3734
        %v3737 = vmul.f32 %v3417, %v3580
        %v3738 = vmul.f32 %v3418, %v3580
        %v3739 = vmul.f32 %v3419, %v3580
        %v3740 = vmul.f32 %v3420, %v3580
        %v3741 = vmul.f32 %v3421, %v3585
        %v3742 = vmul.f32 %v3422, %v3585
        %v3743 = vmul.f32 %v3423, %v3585
        %v3744 = vmul.f32 %v3424, %v3585
        %v3745 = vmul.f32 %v3425, %v3590
        %v3746 = vmul.f32 %v3426, %v3590
        %v3747 = vmul.f32 %v3427, %v3590
        %v3748 = vmul.f32 %v3428, %v3590
        %v3749 = vmul.f32 %v3429, %v3595
        %v3750 = vmul.f32 %v3430, %v3595
        %v3751 = vmul.f32 %v3431, %v3595
        %v3752 = vmul.f32 %v3432, %v3595
        %v3753 = vmul.f32 %v3433, %v3600
        %v3754 = vmul.f32 %v3434, %v3600
        %v3755 = vmul.f32 %v3435, %v3600
        %v3756 = vmul.f32 %v3436, %v3600
        %v3757 = vmul.f32 %v3437, %v3605
        %v3758 = vmul.f32 %v3438, %v3605
        %v3759 = vmul.f32 %v3439, %v3605
        %v3760 = vmul.f32 %v3440, %v3605
        %v3761 = vmul.f32 %v3441, %v3610
        %v3762 = vmul.f32 %v3442, %v3610
        %v3763 = vmul.f32 %v3443, %v3610
        %v3764 = vmul.f32 %v3444, %v3610
        %v3765 = vmul.f32 %v3445, %v3615
        %v3766 = vmul.f32 %v3446, %v3615
        %v3767 = vmul.f32 %v3447, %v3615
        %v3768 = vmul.f32 %v3448, %v3615
        %v3769 = vmul.f32 %v3449, %v3620
        %v3770 = vmul.f32 %v3450, %v3620
        %v3771 = vmul.f32 %v3451, %v3620
        %v3772 = vmul.f32 %v3452, %v3620
        %v3773 = vmul.f32 %v3453, %v3625
        %v3774 = vmul.f32 %v3454, %v3625
        %v3775 = vmul.f32 %v3455, %v3625
        %v3776 = vmul.f32 %v3456, %v3625
        %v3777 = vmul.f32 %v3457, %v3630
        %v3778 = vmul.f32 %v3458, %v3630
        %v3779 = vmul.f32 %v3459, %v3630
        %v3780 = vmul.f32 %v3460, %v3630
        %v3781 = vmul.f32 %v3461, %v3635
        %v3782 = vmul.f32 %v3462, %v3635
        %v3783 = vmul.f32 %v3463, %v3635
        %v3784 = vmul.f32 %v3464, %v3635
        %v3785 = vmul.f32 %v3465, %v3640
        %v3786 = vmul.f32 %v3466, %v3640
        %v3787 = vmul.f32 %v3467, %v3640
        %v3788 = vmul.f32 %v3468, %v3640
        %v3789 = vmul.f32 %v3469, %v3645
        %v3790 = vmul.f32 %v3470, %v3645
        %v3791 = vmul.f32 %v3471, %v3645
        %v3792 = vmul.f32 %v3472, %v3645
        %v3793 = vmul.f32 %v3473, %v3650
        %v3794 = vmul.f32 %v3474, %v3650
        %v3795 = vmul.f32 %v3475, %v3650
        %v3796 = vmul.f32 %v3476, %v3650
        %v3797 = vmul.f32 %v3477, %v3655
        %v3798 = vmul.f32 %v3478, %v3655
        %v3799 = vmul.f32 %v3479, %v3655
        %v3800 = vmul.f32 %v3480, %v3655
        %v3801 = vmul.f32 %v3481, %v3660
        %v3802 = vmul.f32 %v3482, %v3660
        %v3803 = vmul.f32 %v3483, %v3660
        %v3804 = vmul.f32 %v3484, %v3660
        %v3805 = vmul.f32 %v3485, %v3665
        %v3806 = vmul.f32 %v3486, %v3665
        %v3807 = vmul.f32 %v3487, %v3665
        %v3808 = vmul.f32 %v3488, %v3665
        %v3809 = vmul.f32 %v3489, %v3670
        %v3810 = vmul.f32 %v3490, %v3670
        %v3811 = vmul.f32 %v3491, %v3670
        %v3812 = vmul.f32 %v3492, %v3670
        %v3813 = vmul.f32 %v3493, %v3675
        %v3814 = vmul.f32 %v3494, %v3675
        %v3815 = vmul.f32 %v3495, %v3675
        %v3816 = vmul.f32 %v3496, %v3675
        %v3817 = vmul.f32 %v3497, %v3680
        %v3818 = vmul.f32 %v3498, %v3680
        %v3819 = vmul.f32 %v3499, %v3680
        %v3820 = vmul.f32 %v3500, %v3680
        %v3821 = vmul.f32 %v3501, %v3685
        %v3822 = vmul.f32 %v3502, %v3685
        %v3823 = vmul.f32 %v3503, %v3685
        %v3824 = vmul.f32 %v3504, %v3685
        %v3825 = vmul.f32 %v3505, %v3690
        %v3826 = vmul.f32 %v3506, %v3690
        %v3827 = vmul.f32 %v3507, %v3690
        %v3828 = vmul.f32 %v3508, %v3690
        %v3829 = vmul.f32 %v3509, %v3695
        %v3830 = vmul.f32 %v3510, %v3695
        %v3831 = vmul.f32 %v3511, %v3695
        %v3832 = vmul.f32 %v3512, %v3695
        %v3833 = vmul.f32 %v3513, %v3700
        %v3834 = vmul.f32 %v3514, %v3700
        %v3835 = vmul.f32 %v3515, %v3700
        %v3836 = vmul.f32 %v3516, %v3700
        %v3837 = vmul.f32 %v3517, %v3705
        %v3838 = vmul.f32 %v3518, %v3705
        %v3839 = vmul.f32 %v3519, %v3705
        %v3840 = vmul.f32 %v3520, %v3705
        %v3841 = vmul.f32 %v3521, %v3710
        %v3842 = vmul.f32 %v3522, %v3710
        %v3843 = vmul.f32 %v3523, %v3710
        %v3844 = vmul.f32 %v3524, %v3710
        %v3845 = vmul.f32 %v3525, %v3715
        %v3846 = vmul.f32 %v3526, %v3715
        %v3847 = vmul.f32 %v3527, %v3715
        %v3848 = vmul.f32 %v3528, %v3715
        %v3849 = vmul.f32 %v3529, %v3720
        %v3850 = vmul.f32 %v3530, %v3720
        %v3851 = vmul.f32 %v3531, %v3720
        %v3852 = vmul.f32 %v3532, %v3720
        %v3853 = vmul.f32 %v3533, %v3725
        %v3854 = vmul.f32 %v3534, %v3725
        %v3855 = vmul.f32 %v3535, %v3725
        %v3856 = vmul.f32 %v3536, %v3725
        %v3857 = vmul.f32 %v3537, %v3730
        %v3858 = vmul.f32 %v3538, %v3730
        %v3859 = vmul.f32 %v3539, %v3730
        %v3860 = vmul.f32 %v3540, %v3730
        %v3861 = vmul.f32 %v3541, %v3735
        %v3862 = vmul.f32 %v3542, %v3735
        %v3863 = vmul.f32 %v3543, %v3735
        %v3864 = vmul.f32 %v3544, %v3735
        %v3865 = vadd.f32 %v3737, %v3741
        %v3866 = vadd.f32 %v3865, %v3745
        %v3867 = vadd.f32 %v3866, %v3749
        %v3868 = vadd.f32 %v3867, %v3753
        %v3869 = vadd.f32 %v3868, %v3757
        %v3870 = vadd.f32 %v3869, %v3761
        %v3871 = vadd.f32 %v3870, %v3765
        %v3872 = vadd.f32 %v3871, %v3769
        %v3873 = vadd.f32 %v3872, %v3773
        %v3874 = vadd.f32 %v3873, %v3777
        %v3875 = vadd.f32 %v3874, %v3781
        %v3876 = vadd.f32 %v3875, %v3785
        %v3877 = vadd.f32 %v3876, %v3789
        %v3878 = vadd.f32 %v3877, %v3793
        %v3879 = vadd.f32 %v3878, %v3797
        %v3880 = vadd.f32 %v3879, %v3801
        %v3881 = vadd.f32 %v3880, %v3805
        %v3882 = vadd.f32 %v3881, %v3809
        %v3883 = vadd.f32 %v3882, %v3813
        %v3884 = vadd.f32 %v3883, %v3817
        %v3885 = vadd.f32 %v3884, %v3821
        %v3886 = vadd.f32 %v3885, %v3825
        %v3887 = vadd.f32 %v3886, %v3829
        %v3888 = vadd.f32 %v3887, %v3833
        %v3889 = vadd.f32 %v3888, %v3837
        %v3890 = vadd.f32 %v3889, %v3841
        %v3891 = vadd.f32 %v3890, %v3845
        %v3892 = vadd.f32 %v3891, %v3849
        %v3893 = vadd.f32 %v3892, %v3853
        %v3894 = vadd.f32 %v3893, %v3857
        %v3895 = vadd.f32 %v3894, %v3861
        %v3896 = vrot.slane %v3895, 4
        %v3897 = vadd.f32 %v3895, %v3896
        %v3898 = vrot.slane %v3897, 2
        %v3899 = vadd.f32 %v3897, %v3898
        %v3900 = vrot.slane %v3899, 1
        %v3901 = vadd.f32 %v3899, %v3900
        %v3902 = vadd.f32 %v3738, %v3742
        %v3903 = vadd.f32 %v3902, %v3746
        %v3904 = vadd.f32 %v3903, %v3750
        %v3905 = vadd.f32 %v3904, %v3754
        %v3906 = vadd.f32 %v3905, %v3758
        %v3907 = vadd.f32 %v3906, %v3762
        %v3908 = vadd.f32 %v3907, %v3766
        %v3909 = vadd.f32 %v3908, %v3770
        %v3910 = vadd.f32 %v3909, %v3774
        %v3911 = vadd.f32 %v3910, %v3778
        %v3912 = vadd.f32 %v3911, %v3782
        %v3913 = vadd.f32 %v3912, %v3786
        %v3914 = vadd.f32 %v3913, %v3790
        %v3915 = vadd.f32 %v3914, %v3794
        %v3916 = vadd.f32 %v3915, %v3798
        %v3917 = vadd.f32 %v3916, %v3802
        %v3918 = vadd.f32 %v3917, %v3806
        %v3919 = vadd.f32 %v3918, %v3810
        %v3920 = vadd.f32 %v3919, %v3814
        %v3921 = vadd.f32 %v3920, %v3818
        %v3922 = vadd.f32 %v3921, %v3822
        %v3923 = vadd.f32 %v3922, %v3826
        %v3924 = vadd.f32 %v3923, %v3830
        %v3925 = vadd.f32 %v3924, %v3834
        %v3926 = vadd.f32 %v3925, %v3838
        %v3927 = vadd.f32 %v3926, %v3842
        %v3928 = vadd.f32 %v3927, %v3846
        %v3929 = vadd.f32 %v3928, %v3850
        %v3930 = vadd.f32 %v3929, %v3854
        %v3931 = vadd.f32 %v3930, %v3858
        %v3932 = vadd.f32 %v3931, %v3862
        %v3933 = vrot.slane %v3932, 4
        %v3934 = vadd.f32 %v3932, %v3933
        %v3935 = vrot.slane %v3934, 2
        %v3936 = vadd.f32 %v3934, %v3935
        %v3937 = vrot.slane %v3936, 1
        %v3938 = vadd.f32 %v3936, %v3937
        %v3939 = vadd.f32 %v3739, %v3743
        %v3940 = vadd.f32 %v3939, %v3747
        %v3941 = vadd.f32 %v3940, %v3751
        %v3942 = vadd.f32 %v3941, %v3755
        %v3943 = vadd.f32 %v3942, %v3759
        %v3944 = vadd.f32 %v3943, %v3763
        %v3945 = vadd.f32 %v3944, %v3767
        %v3946 = vadd.f32 %v3945, %v3771
        %v3947 = vadd.f32 %v3946, %v3775
        %v3948 = vadd.f32 %v3947, %v3779
        %v3949 = vadd.f32 %v3948, %v3783
        %v3950 = vadd.f32 %v3949, %v3787
        %v3951 = vadd.f32 %v3950, %v3791
        %v3952 = vadd.f32 %v3951, %v3795
        %v3953 = vadd.f32 %v3952, %v3799
        %v3954 = vadd.f32 %v3953, %v3803
        %v3955 = vadd.f32 %v3954, %v3807
        %v3956 = vadd.f32 %v3955, %v3811
        %v3957 = vadd.f32 %v3956, %v3815
        %v3958 = vadd.f32 %v3957, %v3819
        %v3959 = vadd.f32 %v3958, %v3823
        %v3960 = vadd.f32 %v3959, %v3827
        %v3961 = vadd.f32 %v3960, %v3831
        %v3962 = vadd.f32 %v3961, %v3835
        %v3963 = vadd.f32 %v3962, %v3839
        %v3964 = vadd.f32 %v3963, %v3843
        %v3965 = vadd.f32 %v3964, %v3847
        %v3966 = vadd.f32 %v3965, %v3851
        %v3967 = vadd.f32 %v3966, %v3855
        %v3968 = vadd.f32 %v3967, %v3859
        %v3969 = vadd.f32 %v3968, %v3863
        %v3970 = vrot.slane %v3969, 4
        %v3971 = vadd.f32 %v3969, %v3970
        %v3972 = vrot.slane %v3971, 2
        %v3973 = vadd.f32 %v3971, %v3972
        %v3974 = vrot.slane %v3973, 1
        %v3975 = vadd.f32 %v3973, %v3974
        %v3976 = vadd.f32 %v3740, %v3744
        %v3977 = vadd.f32 %v3976, %v3748
        %v3978 = vadd.f32 %v3977, %v3752
        %v3979 = vadd.f32 %v3978, %v3756
        %v3980 = vadd.f32 %v3979, %v3760
        %v3981 = vadd.f32 %v3980, %v3764
        %v3982 = vadd.f32 %v3981, %v3768
        %v3983 = vadd.f32 %v3982, %v3772
        %v3984 = vadd.f32 %v3983, %v3776
        %v3985 = vadd.f32 %v3984, %v3780
        %v3986 = vadd.f32 %v3985, %v3784
        %v3987 = vadd.f32 %v3986, %v3788
        %v3988 = vadd.f32 %v3987, %v3792
        %v3989 = vadd.f32 %v3988, %v3796
        %v3990 = vadd.f32 %v3989, %v3800
        %v3991 = vadd.f32 %v3990, %v3804
        %v3992 = vadd.f32 %v3991, %v3808
        %v3993 = vadd.f32 %v3992, %v3812
        %v3994 = vadd.f32 %v3993, %v3816
        %v3995 = vadd.f32 %v3994, %v3820
        %v3996 = vadd.f32 %v3995, %v3824
        %v3997 = vadd.f32 %v3996, %v3828
        %v3998 = vadd.f32 %v3997, %v3832
        %v3999 = vadd.f32 %v3998, %v3836
        %v4000 = vadd.f32 %v3999, %v3840
        %v4001 = vadd.f32 %v4000, %v3844
        %v4002 = vadd.f32 %v4001, %v3848
        %v4003 = vadd.f32 %v4002, %v3852
        %v4004 = vadd.f32 %v4003, %v3856
        %v4005 = vadd.f32 %v4004, %v3860
        %v4006 = vadd.f32 %v4005, %v3864
        %v4007 = vrot.slane %v4006, 4
        %v4008 = vadd.f32 %v4006, %v4007
        %v4009 = vrot.slane %v4008, 2
        %v4010 = vadd.f32 %v4008, %v4009
        %v4011 = vrot.slane %v4010, 1
        %v4012 = vadd.f32 %v4010, %v4011
        %s4013 = sld [smem:[#allocation2]]
        %v4014 = vstv %s4013
        %v4015 = vadd.f32 %v3901, %v4014
        %v4016 = vadd.f32 %v3938, %v4014
        %v4017 = vadd.f32 %v3975, %v4014
        %v4018 = vadd.f32 %v4012, %v4014
        %v4023 = vcombine.low %v4015, %v4016
        %v4024 = vcombine.low %v4017, %v4018
        %v4026 = vunpack.c.l.s4 1966171168
        %v4027 = vunpack.c.0.s8 %v4026
        %v4028 = vlaneseq
        %v4029 = vshrl.u32 %v4028, 7
        %v4030 = vsub.s32 %v4027, %v4029
        %v4031 = vrot.slane %v4023, %v4030
        %v4033 = vunpack.c.l.s4 1966171168
        %v4034 = vunpack.c.0.s8 %v4033
        %v4035 = vlaneseq
        %v4036 = vshrl.u32 %v4035, 7
        %v4037 = vsub.s32 %v4034, %v4036
        %v4038 = vrot.slane %v4024, %v4037
        %v4039 = vcombine.low %v4031, %v4038
        %v4041 = vunpack.c.l.s4 1966171168
        %v4042 = vunpack.c.0.s8 %v4041
        %v4043 = vlaneseq
        %v4044 = vshrl.u32 %v4043, 7
        %v4045 = vsub.s32 %v4042, %v4044
        %v4046 = vrot.slane %v4039, %v4045
        %v4048 = vlaneseq
        %vm4049 = vcmp.ge.s32.totalorder %v4048, 0
        %vm4050 = vcmp.lt.s32.totalorder %v4048, 512
        %vm4051 = vmand %vm4049, %vm4050
        %4052 = vst.msk [vmem:[%s367] sm:$0xf] %vm4051, %v4046
        %s4053 = sand.u32 %s231, 1
        %s4054 = scalar_lea.sflag [#allocation4], %s4053
        %s4055 = sand.u32 %s231, 1
        %s4056 = smul.addr %s4055, 4
        %s4057 = scalar_lea.vmem [#allocation3], %s4056
        // Predicated region
        $region57: #{tpu_custom_call.1} parent=55 // pred_check
          %p4058 = pneg %p241
        $region58: #{tpu_custom_call.1} parent=55 // pred_check_branch
          %4060 = sbr.rel (%p4058) target = $region60
        $region59: #{tpu_custom_call.1} parent=55 // pred_region
          %s4061 = smul.u32 4, %s24
          %s4062 = ssub.s32 5, %s4061
          %p4063 = scmp.lt.s32.totalorder %s4062, 4
          %s4064 = scalar_select %p4063, %s4062, 4
          %s4065 = smul.u32 16, %s4064
          %s4067 = ssub.s32 64, %s4065
          %4068 = vsyncadd %s4054, %s4067
          %p4069 = scmp.ne.s32.totalorder 0, %s4065
          %s4070 = smul.addr %s4061, 16
          %s4071 = scalar_lea.hbm %s9, %s4070
          %s4072 = sshll.u32 %s4064, 4
          %s4073 = sshll.u32 %s4057, 4
          %s4074 = int_to_ptr.vmem [resolvable:$true] %s4073
          %4076 = dma.vmem_to_hbm [thread:$0]  (%p4069), %s4074, %s4072, %s4071, %s4054
        $region60: #{tpu_custom_call.1} parent=55 // pred_fallthru
          _
      $region56: #{tpu_custom_call.1} parent=5 // pred_fallthru
        _
      %p4077 = scmp.le.s32.totalorder 2, %s19
      // Predicated region
      $region61: #{tpu_custom_call.1} parent=5 // pred_check
        %p4078 = pneg %p4077
      $region62: #{tpu_custom_call.1} parent=5 // pred_check_branch
        %4080 = sbr.rel (%p4078) target = $region64
      $region63: #{tpu_custom_call.1} parent=5 // pred_region
        %s4081 = ssub.s32 %s19, 2
        // Predicated region
        $region65: #{tpu_custom_call.1} parent=63 // pred_check
          %p4082 = pneg %p247
        $region66: #{tpu_custom_call.1} parent=63 // pred_check_branch
          %4084 = sbr.rel (%p4082) target = $region68
        $region67: #{tpu_custom_call.1} parent=63 // pred_region
          %s4085 = sand.u32 %s232, 1
          %s4086 = scalar_lea.sflag [#allocation4], %s4085
          %s4087 = sand.u32 %s232, 1
          %s4088 = smul.addr %s4087, 4
          %s4089 = scalar_lea.vmem [#allocation3], %s4088
          %4090 = dma.done %s4086, 64
        $region68: #{tpu_custom_call.1} parent=63 // pred_fallthru
          _
      $region64: #{tpu_custom_call.1} parent=5 // pred_fallthru
        _
    $region6: #{tpu_custom_call.1} parent=1 // loop_footer
      %s23 = sadd.s32 1, %s19
    $region7: #{tpu_custom_call.1} parent=1 // loop_footer_branch
      %18 = sbr.rel target = $region3
    $region8: #{tpu_custom_call.1} parent=1 // loop_exit
      _
    %4091 = vsyncpa [#allocation4], 1
    %s4092 = scalar_lea.sflag [#allocation4], 1
    %4093 = vsyncpa %s4092, 1

</llo_original>
